<compile_context>
chip_gen: v7x
topology: tpu7x:2x2x1
jax: 0.10.0
libtpu: 0.0.40
codegen_flags: <defaults>
</compile_context>

<pallas_src>
import jax
import jax.numpy as jnp
import numpy as np
from jax import lax
from jax.experimental import pallas as pl
from jax.experimental.pallas import tpu as pltpu

EXPANSION = 4
BN_EPS = 1e-5


def _fold_bn(gamma, beta, mean, var):
    scale = gamma / jnp.sqrt(var + BN_EPS)
    bias = beta - mean * scale
    return scale, bias


def make_kernel(H, W, Cin, P):
    """Build the fused bottleneck kernel for fixed spatial/channel sizes."""
    M = H * W
    Cout = P * EXPANSION
    FRONT = ((W + 1 + 7) // 8) * 8       # sublane-aligned zero halo (>= W+1 rows)
    PADLEN = FRONT + M + FRONT           # zero halo | t1 (M rows) | zero halo

    def kernel(x_ref, w1_ref, w2_ref, w3_ref,
               s1_ref, b1_ref, s2_ref, b2_ref, s3_ref, b3_ref,
               o_ref, pad_ref):
        # ---- conv1 (1x1) + bn1 + relu : bf16 MXU operands, f32 accumulate ----
        t1 = jnp.dot(x_ref[0].astype(jnp.bfloat16), w1_ref[...],
                     preferred_element_type=jnp.float32)               # (M, P)
        t1 = jnp.maximum(t1 * s1_ref[...] + b1_ref[...], 0.0)

        # ---- conv2 (3x3, stride=1, pad=1) as ONE (M, 9P) x (9P, P) matmul ----
        # Padded flat buffer: zeros | t1 | zeros.  Only the halos need zeroing
        # each step; the middle M rows are fully overwritten by t1.
        pad_ref[pl.ds(0, FRONT), :] = jnp.zeros((FRONT, P), jnp.float32)
        pad_ref[pl.ds(FRONT + M, FRONT), :] = jnp.zeros((FRONT, P), jnp.float32)
        pad_ref[pl.ds(FRONT, M), :] = t1

        # Column-validity masks for the left/right taps (remove row wrap-around),
        # computed in-kernel as lane-dense VPU work.  col = m mod W via an exact
        # float floor-division (exact for M well below 2^22).
        m_f = lax.broadcasted_iota(jnp.int32, (M, P), 0).astype(jnp.float32)
        col = m_f - W * jnp.floor((m_f + 0.5) * (1.0 / W))
        left_ok = col >= 0.5            # source column c-1 is in range
        right_ok = col <= W - 1.5       # source column c+1 is in range

        # im2col: 9 shifted/masked copies of t1 concatenated along channels.
        taps = []
        for dy in range(3):
            for dx in range(3):
                off = FRONT - (W + 1) + dy * W + dx          # static offset
                sh = pad_ref[pl.ds(off, M), :]               # (M, P) f32
                if dx == 0:
                    sh = jnp.where(left_ok, sh, 0.0)
                elif dx == 2:
                    sh = jnp.where(right_ok, sh, 0.0)
                taps.append(sh.astype(jnp.bfloat16))
        patches = jnp.concatenate(taps, axis=1)              # (M, 9P) bf16

        t2 = jnp.dot(patches, w2_ref[...], preferred_element_type=jnp.float32)
        t2 = jnp.maximum(t2 * s2_ref[...] + b2_ref[...], 0.0)           # (M, P)

        # ---- conv3 (1x1) + bn3 + residual + relu ----
        t3 = jnp.dot(t2.astype(jnp.bfloat16), w3_ref[...],
                     preferred_element_type=jnp.float32)                # (M, Cout)
        t3 = t3 * s3_ref[...] + b3_ref[...]
        # residual re-read here (f32, Cin == Cout) instead of kept live from the top
        o_ref[0] = jnp.maximum(t3 + x_ref[0], 0.0)

    return kernel, M, Cout, PADLEN


def bottleneck_forward(x_nchw, params):
    """Runs the Bottleneck forward pass. x_nchw: (N, Cin, H, W) float32."""
    N, Cin, H, W = x_nchw.shape
    P = params["w1"].shape[0]                      # planes
    Cout = P * EXPANSION
    assert Cin == Cout, "default Bottleneck config requires inplanes == planes*4"

    kernel, M, Cout, PADLEN = make_kernel(H, W, Cin, P)

    bf16 = jnp.bfloat16
    # --- parameter plumbing (glue) ---
    w1m = params["w1"].reshape(P, Cin).T.astype(bf16)                    # (Cin, P)
    # im2col weight: rows ordered (dy, dx, cin) to match the patch layout.
    w2m = (params["w2"].transpose(2, 3, 1, 0)                            # (3,3,P,P)
           .reshape(9 * P, P).astype(bf16))                              # (9P, P)
    w3m = params["w3"].reshape(Cout, P).T.astype(bf16)                   # (P, Cout)
    s1, b1 = _fold_bn(*params["bn1"]); s1 = s1.reshape(1, P); b1 = b1.reshape(1, P)
    s2, b2 = _fold_bn(*params["bn2"]); s2 = s2.reshape(1, P); b2 = b2.reshape(1, P)
    s3, b3 = _fold_bn(*params["bn3"]); s3 = s3.reshape(1, Cout); b3 = b3.reshape(1, Cout)

    # NCHW -> (N, H*W, C)
    x_flat = x_nchw.transpose(0, 2, 3, 1).reshape(N, M, Cin)

    grid_spec = pltpu.PrefetchScalarGridSpec(
        num_scalar_prefetch=0,
        grid=(N,),
        in_specs=[
            pl.BlockSpec((1, M, Cin), lambda n: (n, 0, 0)),   # x
            pl.BlockSpec((Cin, P), lambda n: (0, 0)),         # w1
            pl.BlockSpec((9 * P, P), lambda n: (0, 0)),       # w2 (im2col layout)
            pl.BlockSpec((P, Cout), lambda n: (0, 0)),        # w3
            pl.BlockSpec((1, P), lambda n: (0, 0)),           # s1
            pl.BlockSpec((1, P), lambda n: (0, 0)),           # b1
            pl.BlockSpec((1, P), lambda n: (0, 0)),           # s2
            pl.BlockSpec((1, P), lambda n: (0, 0)),           # b2
            pl.BlockSpec((1, Cout), lambda n: (0, 0)),        # s3
            pl.BlockSpec((1, Cout), lambda n: (0, 0)),        # b3
        ],
        out_specs=pl.BlockSpec((1, M, Cout), lambda n: (n, 0, 0)),
        scratch_shapes=[pltpu.VMEM((PADLEN, P), jnp.float32)],
    )

    # Rough per-step VMEM budget: double-buffered x/out blocks, resident weights,
    # pad scratch, im2col temporary, plus headroom; clamped to a sane range.
    est = (2 * M * Cin * 4 + 2 * M * Cout * 4
           + (Cin * P + 9 * P * P + P * Cout) * 2
           + PADLEN * P * 4 + 2 * M * 9 * P * 2 + (8 << 20))
    vmem_limit = int(min(max(est, 32 << 20), 100 << 20))

    out_flat = pl.pallas_call(
        kernel,
        out_shape=jax.ShapeDtypeStruct((N, M, Cout), jnp.float32),
        grid_spec=grid_spec,
        compiler_params=pltpu.CompilerParams(
            dimension_semantics=("parallel",),       # batch elems are independent
            vmem_limit_bytes=vmem_limit,
        ),
    )(x_flat, w1m, w2m, w3m, s1, b1, s2, b2, s3, b3)

    # (N, H*W, Cout) -> NCHW
    return out_flat.reshape(N, H, W, Cout).transpose(0, 3, 1, 2)


# ---------------- pure-JAX reference (matches PyTorch semantics) ----------------
def bottleneck_reference(x, p):
    def conv(x, w, stride=1, pad=0):
        return lax.conv_general_dilated(
            x, w, (stride, stride), [(pad, pad), (pad, pad)],
            dimension_numbers=("NCHW", "OIHW", "NCHW"))

    def bn(x, stats):
        g, b, m, v = stats
        s = g / jnp.sqrt(v + BN_EPS)
        return x * s[None, :, None, None] + (b - m * s)[None, :, None, None]

    out = jax.nn.relu(bn(conv(x, p["w1"]), p["bn1"]))
    out = jax.nn.relu(bn(conv(out, p["w2"], 1, 1), p["bn2"]))
    out = bn(conv(out, p["w3"]), p["bn3"])
    return jax.nn.relu(out + x)


def init_params(key, inplanes, planes):
    cout = planes * EXPANSION
    ks = jax.random.split(key, 6)

    def bn_stats(k, c):
        k1, k2, k3, k4 = jax.random.split(k, 4)
        gamma = jax.random.uniform(k1, (c,), jnp.float32, 0.9, 1.1)
        beta = 0.05 * jax.random.normal(k2, (c,), jnp.float32)
        mean = 0.05 * jax.random.normal(k3, (c,), jnp.float32)
        var = jax.random.uniform(k4, (c,), jnp.float32, 0.8, 1.25)
        return (gamma, beta, mean, var)

    return {
        "w1": 0.05 * jax.random.normal(ks[0], (planes, inplanes, 1, 1), jnp.float32),
        "w2": 0.05 * jax.random.normal(ks[1], (planes, planes, 3, 3), jnp.float32),
        "w3": 0.05 * jax.random.normal(ks[2], (cout, planes, 1, 1), jnp.float32),
        "bn1": bn_stats(ks[3], planes),
        "bn2": bn_stats(ks[4], planes),
        "bn3": bn_stats(ks[5], cout),
    }


if __name__ == "__main__":
    key = jax.random.PRNGKey(0)
    kx, kp = jax.random.split(key)

    # Small but ResNet-like, lane-friendly shape: inplanes == planes * expansion,
    # channels a multiple of 128 so matmul operands and output stores are lane-dense.
    N, inplanes, planes, H, W = 2, 512, 128, 16, 16
    x = jax.random.normal(kx, (N, inplanes, H, W), jnp.float32)
    params = init_params(kp, inplanes, planes)

    out = jax.block_until_ready(bottleneck_forward(x, params))
    ref = jax.block_until_ready(bottleneck_reference(x, params))

    # Tolerance sized for bf16 MXU operands with f32 accumulation (reference is f32).
    np.testing.assert_allclose(np.asarray(out), np.asarray(ref), rtol=2e-2, atol=3e-2)
    assert out.shape == (N, planes * EXPANSION, H, W)

    print("KERNEL_OK")
</pallas_src>

<mosaic_0001>
module attributes {stable_mosaic.version = 11 : i64} {
  func.func @kernel(%arg0: i32, %arg1: memref<1x256x512xf32, #tpu.memory_space<vmem>>, %arg2: memref<512x128xbf16, #tpu.memory_space<vmem>>, %arg3: memref<1152x128xbf16, #tpu.memory_space<vmem>>, %arg4: memref<128x512xbf16, #tpu.memory_space<vmem>>, %arg5: memref<1x128xf32, #tpu.memory_space<vmem>>, %arg6: memref<1x128xf32, #tpu.memory_space<vmem>>, %arg7: memref<1x128xf32, #tpu.memory_space<vmem>>, %arg8: memref<1x128xf32, #tpu.memory_space<vmem>>, %arg9: memref<1x512xf32, #tpu.memory_space<vmem>>, %arg10: memref<1x512xf32, #tpu.memory_space<vmem>>, %arg11: memref<1x256x512xf32, #tpu.memory_space<vmem>>, %arg12: memref<304x128xf32, #tpu.memory_space<vmem>>) attributes {dimension_semantics = [#tpu.dimension_semantics<parallel>], iteration_bounds = array<i64: 2>, scalar_prefetch = 0 : i64, scratch_operands = 1 : i64, tpu.core_type = #tpu.core_type<tc>, window_params = [{transform_indices = @transform_0, window_bounds = array<i64: 1, 256, 512>}, {pipeline_mode = #tpu.pipeline_mode<synchronous>, transform_indices = @transform_1, window_bounds = array<i64: 512, 128>}, {pipeline_mode = #tpu.pipeline_mode<synchronous>, transform_indices = @transform_2, window_bounds = array<i64: 1152, 128>}, {pipeline_mode = #tpu.pipeline_mode<synchronous>, transform_indices = @transform_3, window_bounds = array<i64: 128, 512>}, {pipeline_mode = #tpu.pipeline_mode<synchronous>, transform_indices = @transform_4, window_bounds = array<i64: 1, 128>}, {pipeline_mode = #tpu.pipeline_mode<synchronous>, transform_indices = @transform_5, window_bounds = array<i64: 1, 128>}, {pipeline_mode = #tpu.pipeline_mode<synchronous>, transform_indices = @transform_6, window_bounds = array<i64: 1, 128>}, {pipeline_mode = #tpu.pipeline_mode<synchronous>, transform_indices = @transform_7, window_bounds = array<i64: 1, 128>}, {pipeline_mode = #tpu.pipeline_mode<synchronous>, transform_indices = @transform_8, window_bounds = array<i64: 1, 512>}, {pipeline_mode = #tpu.pipeline_mode<synchronous>, transform_indices = @transform_9, window_bounds = array<i64: 1, 512>}, {transform_indices = @transform_10, window_bounds = array<i64: 1, 256, 512>}]} {
    %c0 = arith.constant 0 : index
    %c0_0 = arith.constant 0 : index
    %c0_1 = arith.constant 0 : index
    %0 = vector.load %arg1[%c0, %c0_0, %c0_1] : memref<1x256x512xf32, #tpu.memory_space<vmem>>, vector<1x256x512xf32>
    %1 = vector.shape_cast %0 : vector<1x256x512xf32> to vector<256x512xf32>
    %2 = arith.truncf %1 : vector<256x512xf32> to vector<256x512xbf16>
    %c0_2 = arith.constant 0 : index
    %c0_3 = arith.constant 0 : index
    %3 = vector.load %arg2[%c0_2, %c0_3] : memref<512x128xbf16, #tpu.memory_space<vmem>>, vector<512x128xbf16>
    %cst = arith.constant dense<0.000000e+00> : vector<256x128xf32>
    %4 = tpu.matmul %2, %3, %cst {dimension_numbers = #tpu.dot_dimension_numbers<[1], [0], [0], [1], [0, 0, 1, 1], [], []>} : vector<256x512xbf16>, vector<512x128xbf16>, vector<256x128xf32> -> vector<256x128xf32>
    %c0_4 = arith.constant 0 : index
    %c0_5 = arith.constant 0 : index
    %5 = vector.load %arg5[%c0_4, %c0_5] : memref<1x128xf32, #tpu.memory_space<vmem>>, vector<1x128xf32>
    %6 = vector.broadcast %5 : vector<1x128xf32> to vector<256x128xf32>
    %7 = arith.mulf %4, %6 : vector<256x128xf32>
    %c0_6 = arith.constant 0 : index
    %c0_7 = arith.constant 0 : index
    %8 = vector.load %arg6[%c0_6, %c0_7] : memref<1x128xf32, #tpu.memory_space<vmem>>, vector<1x128xf32>
    %9 = vector.broadcast %8 : vector<1x128xf32> to vector<256x128xf32>
    %10 = arith.addf %7, %9 : vector<256x128xf32>
    %cst_8 = arith.constant 0.000000e+00 : f32
    %11 = vector.broadcast %cst_8 : f32 to vector<256x128xf32>
    %12 = arith.maximumf %10, %11 : vector<256x128xf32>
    %cst_9 = arith.constant 0.000000e+00 : f32
    %13 = vector.broadcast %cst_9 : f32 to vector<24x128xf32>
    %c0_10 = arith.constant 0 : index
    %c0_11 = arith.constant 0 : index
    %14 = vector.load %arg12[%c0_10, %c0_11] : memref<304x128xf32, #tpu.memory_space<vmem>>, vector<24x128xf32>
    tpu.vector_store %arg12[%c0_10, %c0_11], %13 {strides = array<i32>} : memref<304x128xf32, #tpu.memory_space<vmem>>, vector<24x128xf32>,
    %cst_12 = arith.constant 0.000000e+00 : f32
    %15 = vector.broadcast %cst_12 : f32 to vector<24x128xf32>
    %c280 = arith.constant 280 : index
    %c0_13 = arith.constant 0 : index
    %16 = vector.load %arg12[%c280, %c0_13] : memref<304x128xf32, #tpu.memory_space<vmem>>, vector<24x128xf32>
    tpu.vector_store %arg12[%c280, %c0_13], %15 {strides = array<i32>} : memref<304x128xf32, #tpu.memory_space<vmem>>, vector<24x128xf32>,
    %c24 = arith.constant 24 : index
    %c0_14 = arith.constant 0 : index
    %17 = vector.load %arg12[%c24, %c0_14] : memref<304x128xf32, #tpu.memory_space<vmem>>, vector<256x128xf32>
    tpu.vector_store %arg12[%c24, %c0_14], %12 {strides = array<i32>} : memref<304x128xf32, #tpu.memory_space<vmem>>, vector<256x128xf32>,
    %18 = tpu.iota {dimensions = array<i32: 0>} : vector<256x128xi32>
    %19 = arith.sitofp %18 : vector<256x128xi32> to vector<256x128xf32>
    %cst_15 = arith.constant 5.000000e-01 : f32
    %20 = vector.broadcast %cst_15 : f32 to vector<256x128xf32>
    %21 = arith.addf %19, %20 : vector<256x128xf32>
    %cst_16 = arith.constant 6.250000e-02 : f32
    %22 = vector.broadcast %cst_16 : f32 to vector<256x128xf32>
    %23 = arith.mulf %21, %22 : vector<256x128xf32>
    %24 = math.floor %23 : vector<256x128xf32>
    %cst_17 = arith.constant 1.600000e+01 : f32
    %25 = vector.broadcast %cst_17 : f32 to vector<256x128xf32>
    %26 = arith.mulf %25, %24 : vector<256x128xf32>
    %27 = arith.subf %19, %26 : vector<256x128xf32>
    %cst_18 = arith.constant 5.000000e-01 : f32
    %28 = vector.broadcast %cst_18 : f32 to vector<256x128xf32>
    %29 = arith.cmpf oge, %27, %28 : vector<256x128xf32>
    %cst_19 = arith.constant 1.450000e+01 : f32
    %30 = vector.broadcast %cst_19 : f32 to vector<256x128xf32>
    %31 = arith.cmpf ole, %27, %30 : vector<256x128xf32>
    %c7 = arith.constant 7 : index
    %c0_20 = arith.constant 0 : index
    %32 = vector.load %arg12[%c7, %c0_20] : memref<304x128xf32, #tpu.memory_space<vmem>>, vector<256x128xf32>
    %cst_21 = arith.constant 0.000000e+00 : f32
    %33 = vector.broadcast %cst_21 : f32 to vector<256x128xf32>
    %34 = arith.select %29, %32, %33 : vector<256x128xi1>, vector<256x128xf32>
    %35 = arith.truncf %34 : vector<256x128xf32> to vector<256x128xbf16>
    %c8 = arith.constant 8 : index
    %c0_22 = arith.constant 0 : index
    %36 = vector.load %arg12[%c8, %c0_22] : memref<304x128xf32, #tpu.memory_space<vmem>>, vector<256x128xf32>
    %37 = arith.truncf %36 : vector<256x128xf32> to vector<256x128xbf16>
    %c9 = arith.constant 9 : index
    %c0_23 = arith.constant 0 : index
    %38 = vector.load %arg12[%c9, %c0_23] : memref<304x128xf32, #tpu.memory_space<vmem>>, vector<256x128xf32>
    %cst_24 = arith.constant 0.000000e+00 : f32
    %39 = vector.broadcast %cst_24 : f32 to vector<256x128xf32>
    %40 = arith.select %31, %38, %39 : vector<256x128xi1>, vector<256x128xf32>
    %41 = arith.truncf %40 : vector<256x128xf32> to vector<256x128xbf16>
    %c23 = arith.constant 23 : index
    %c0_25 = arith.constant 0 : index
    %42 = vector.load %arg12[%c23, %c0_25] : memref<304x128xf32, #tpu.memory_space<vmem>>, vector<256x128xf32>
    %cst_26 = arith.constant 0.000000e+00 : f32
    %43 = vector.broadcast %cst_26 : f32 to vector<256x128xf32>
    %44 = arith.select %29, %42, %43 : vector<256x128xi1>, vector<256x128xf32>
    %45 = arith.truncf %44 : vector<256x128xf32> to vector<256x128xbf16>
    %c24_27 = arith.constant 24 : index
    %c0_28 = arith.constant 0 : index
    %46 = vector.load %arg12[%c24_27, %c0_28] : memref<304x128xf32, #tpu.memory_space<vmem>>, vector<256x128xf32>
    %47 = arith.truncf %46 : vector<256x128xf32> to vector<256x128xbf16>
    %c25 = arith.constant 25 : index
    %c0_29 = arith.constant 0 : index
    %48 = vector.load %arg12[%c25, %c0_29] : memref<304x128xf32, #tpu.memory_space<vmem>>, vector<256x128xf32>
    %cst_30 = arith.constant 0.000000e+00 : f32
    %49 = vector.broadcast %cst_30 : f32 to vector<256x128xf32>
    %50 = arith.select %31, %48, %49 : vector<256x128xi1>, vector<256x128xf32>
    %51 = arith.truncf %50 : vector<256x128xf32> to vector<256x128xbf16>
    %c39 = arith.constant 39 : index
    %c0_31 = arith.constant 0 : index
    %52 = vector.load %arg12[%c39, %c0_31] : memref<304x128xf32, #tpu.memory_space<vmem>>, vector<256x128xf32>
    %cst_32 = arith.constant 0.000000e+00 : f32
    %53 = vector.broadcast %cst_32 : f32 to vector<256x128xf32>
    %54 = arith.select %29, %52, %53 : vector<256x128xi1>, vector<256x128xf32>
    %55 = arith.truncf %54 : vector<256x128xf32> to vector<256x128xbf16>
    %c40 = arith.constant 40 : index
    %c0_33 = arith.constant 0 : index
    %56 = vector.load %arg12[%c40, %c0_33] : memref<304x128xf32, #tpu.memory_space<vmem>>, vector<256x128xf32>
    %57 = arith.truncf %56 : vector<256x128xf32> to vector<256x128xbf16>
    %c41 = arith.constant 41 : index
    %c0_34 = arith.constant 0 : index
    %58 = vector.load %arg12[%c41, %c0_34] : memref<304x128xf32, #tpu.memory_space<vmem>>, vector<256x128xf32>
    %cst_35 = arith.constant 0.000000e+00 : f32
    %59 = vector.broadcast %cst_35 : f32 to vector<256x128xf32>
    %60 = arith.select %31, %58, %59 : vector<256x128xi1>, vector<256x128xf32>
    %61 = arith.truncf %60 : vector<256x128xf32> to vector<256x128xbf16>
    %62 = tpu.concatenate %35, %37, %41, %45, %47, %51, %55, %57, %61 in 1 : vector<256x128xbf16>, vector<256x128xbf16>, vector<256x128xbf16>, vector<256x128xbf16>, vector<256x128xbf16>, vector<256x128xbf16>, vector<256x128xbf16>, vector<256x128xbf16>, vector<256x128xbf16> -> vector<256x1152xbf16>
    %c0_36 = arith.constant 0 : index
    %c0_37 = arith.constant 0 : index
    %63 = vector.load %arg3[%c0_36, %c0_37] : memref<1152x128xbf16, #tpu.memory_space<vmem>>, vector<1152x128xbf16>
    %cst_38 = arith.constant dense<0.000000e+00> : vector<256x128xf32>
    %64 = tpu.matmul %62, %63, %cst_38 {dimension_numbers = #tpu.dot_dimension_numbers<[1], [0], [0], [1], [0, 0, 1, 1], [], []>} : vector<256x1152xbf16>, vector<1152x128xbf16>, vector<256x128xf32> -> vector<256x128xf32>
    %c0_39 = arith.constant 0 : index
    %c0_40 = arith.constant 0 : index
    %65 = vector.load %arg7[%c0_39, %c0_40] : memref<1x128xf32, #tpu.memory_space<vmem>>, vector<1x128xf32>
    %66 = vector.broadcast %65 : vector<1x128xf32> to vector<256x128xf32>
    %67 = arith.mulf %64, %66 : vector<256x128xf32>
    %c0_41 = arith.constant 0 : index
    %c0_42 = arith.constant 0 : index
    %68 = vector.load %arg8[%c0_41, %c0_42] : memref<1x128xf32, #tpu.memory_space<vmem>>, vector<1x128xf32>
    %69 = vector.broadcast %68 : vector<1x128xf32> to vector<256x128xf32>
    %70 = arith.addf %67, %69 : vector<256x128xf32>
    %cst_43 = arith.constant 0.000000e+00 : f32
    %71 = vector.broadcast %cst_43 : f32 to vector<256x128xf32>
    %72 = arith.maximumf %70, %71 : vector<256x128xf32>
    %73 = arith.truncf %72 : vector<256x128xf32> to vector<256x128xbf16>
    %c0_44 = arith.constant 0 : index
    %c0_45 = arith.constant 0 : index
    %74 = vector.load %arg4[%c0_44, %c0_45] : memref<128x512xbf16, #tpu.memory_space<vmem>>, vector<128x512xbf16>
    %cst_46 = arith.constant dense<0.000000e+00> : vector<256x512xf32>
    %75 = tpu.matmul %73, %74, %cst_46 {dimension_numbers = #tpu.dot_dimension_numbers<[1], [0], [0], [1], [0, 0, 1, 1], [], []>} : vector<256x128xbf16>, vector<128x512xbf16>, vector<256x512xf32> -> vector<256x512xf32>
    %c0_47 = arith.constant 0 : index
    %c0_48 = arith.constant 0 : index
    %76 = vector.load %arg9[%c0_47, %c0_48] : memref<1x512xf32, #tpu.memory_space<vmem>>, vector<1x512xf32>
    %77 = vector.broadcast %76 : vector<1x512xf32> to vector<256x512xf32>
    %78 = arith.mulf %75, %77 : vector<256x512xf32>
    %c0_49 = arith.constant 0 : index
    %c0_50 = arith.constant 0 : index
    %79 = vector.load %arg10[%c0_49, %c0_50] : memref<1x512xf32, #tpu.memory_space<vmem>>, vector<1x512xf32>
    %80 = vector.broadcast %79 : vector<1x512xf32> to vector<256x512xf32>
    %81 = arith.addf %78, %80 : vector<256x512xf32>
    %c0_51 = arith.constant 0 : index
    %c0_52 = arith.constant 0 : index
    %c0_53 = arith.constant 0 : index
    %82 = vector.load %arg1[%c0_51, %c0_52, %c0_53] : memref<1x256x512xf32, #tpu.memory_space<vmem>>, vector<1x256x512xf32>
    %83 = vector.shape_cast %82 : vector<1x256x512xf32> to vector<256x512xf32>
    %84 = arith.addf %81, %83 : vector<256x512xf32>
    %cst_54 = arith.constant 0.000000e+00 : f32
    %85 = vector.broadcast %cst_54 : f32 to vector<256x512xf32>
    %86 = arith.maximumf %84, %85 : vector<256x512xf32>
    %c0_55 = arith.constant 0 : index
    %c0_56 = arith.constant 0 : index
    %c0_57 = arith.constant 0 : index
    %87 = vector.load %arg11[%c0_55, %c0_56, %c0_57] : memref<1x256x512xf32, #tpu.memory_space<vmem>>, vector<1x256x512xf32>
    %88 = vector.shape_cast %87 : vector<1x256x512xf32> to vector<256x512xf32>
    %89 = vector.shape_cast %86 : vector<256x512xf32> to vector<1x256x512xf32>
    tpu.vector_store %arg11[%c0_55, %c0_56, %c0_57], %89 {strides = array<i32>} : memref<1x256x512xf32, #tpu.memory_space<vmem>>, vector<1x256x512xf32>,
    return
  }
  func.func @transform_0(%arg0: i32) -> (i32, i32, i32) {
    %c0_i32 = arith.constant 0 : i32
    %c0_i32_0 = arith.constant 0 : i32
    %c0_i32_1 = arith.constant 0 : i32
    return %arg0, %c0_i32, %c0_i32_0 : i32, i32, i32
  }
  func.func @transform_1(%arg0: i32) -> (i32, i32) {
    %c0_i32 = arith.constant 0 : i32
    %c0_i32_0 = arith.constant 0 : i32
    %c0_i32_1 = arith.constant 0 : i32
    return %c0_i32, %c0_i32_0 : i32, i32
  }
  func.func @transform_2(%arg0: i32) -> (i32, i32) {
    %c0_i32 = arith.constant 0 : i32
    %c0_i32_0 = arith.constant 0 : i32
    %c0_i32_1 = arith.constant 0 : i32
    return %c0_i32, %c0_i32_0 : i32, i32
  }
  func.func @transform_3(%arg0: i32) -> (i32, i32) {
    %c0_i32 = arith.constant 0 : i32
    %c0_i32_0 = arith.constant 0 : i32
    %c0_i32_1 = arith.constant 0 : i32
    return %c0_i32, %c0_i32_0 : i32, i32
  }
  func.func @transform_4(%arg0: i32) -> (i32, i32) {
    %c0_i32 = arith.constant 0 : i32
    %c0_i32_0 = arith.constant 0 : i32
    %c0_i32_1 = arith.constant 0 : i32
    return %c0_i32, %c0_i32_0 : i32, i32
  }
  func.func @transform_5(%arg0: i32) -> (i32, i32) {
    %c0_i32 = arith.constant 0 : i32
    %c0_i32_0 = arith.constant 0 : i32
    %c0_i32_1 = arith.constant 0 : i32
    return %c0_i32, %c0_i32_0 : i32, i32
  }
  func.func @transform_6(%arg0: i32) -> (i32, i32) {
    %c0_i32 = arith.constant 0 : i32
    %c0_i32_0 = arith.constant 0 : i32
    %c0_i32_1 = arith.constant 0 : i32
    return %c0_i32, %c0_i32_0 : i32, i32
  }
  func.func @transform_7(%arg0: i32) -> (i32, i32) {
    %c0_i32 = arith.constant 0 : i32
    %c0_i32_0 = arith.constant 0 : i32
    %c0_i32_1 = arith.constant 0 : i32
    return %c0_i32, %c0_i32_0 : i32, i32
  }
  func.func @transform_8(%arg0: i32) -> (i32, i32) {
    %c0_i32 = arith.constant 0 : i32
    %c0_i32_0 = arith.constant 0 : i32
    %c0_i32_1 = arith.constant 0 : i32
    return %c0_i32, %c0_i32_0 : i32, i32
  }
  func.func @transform_9(%arg0: i32) -> (i32, i32) {
    %c0_i32 = arith.constant 0 : i32
    %c0_i32_0 = arith.constant 0 : i32
    %c0_i32_1 = arith.constant 0 : i32
    return %c0_i32, %c0_i32_0 : i32, i32
  }
  func.func @transform_10(%arg0: i32) -> (i32, i32, i32) {
    %c0_i32 = arith.constant 0 : i32
    %c0_i32_0 = arith.constant 0 : i32
    %c0_i32_1 = arith.constant 0 : i32
    return %arg0, %c0_i32, %c0_i32_0 : i32, i32, i32
  }
}

</mosaic_0001>

<llo_original>
// kernel: tpu_custom_call.1
$region0: #{tpu_custom_call.1}
  #allocation0 [shape = 'u32[]', space=smem, size = 0x4, offset = 0x4, fixed_abs, tag = 'smem constant byte address 0x4 - core index']
  #allocation1 [shape = 'u32[144,128]{1,0:T(1,128)}', space=vmem, size = 0x12000, scoped, tag = 'internal scratch']
  #allocation2 [shape = 'f32[304,128]{1,0:T(8,128)}', space=vmem, size = 0x26000, scoped, tag = 'scratch operand']
  %s0 = inlined_call_operand.hbm [shape: f32[2,256,512], index: 0, kind: input, shape index: {}]
  %s1 = inlined_call_operand.hbm [shape: bf16[512,128], index: 1, kind: input, shape index: {}]
  %s2 = inlined_call_operand.hbm [shape: bf16[1152,128], index: 2, kind: input, shape index: {}]
  %s3 = inlined_call_operand.hbm [shape: bf16[128,512], index: 3, kind: input, shape index: {}]
  %s4 = inlined_call_operand.vmem [shape: f32[1,128], index: 4, kind: input, shape index: {}]
  %s5 = inlined_call_operand.vmem [shape: f32[1,128], index: 5, kind: input, shape index: {}]
  %s6 = inlined_call_operand.vmem [shape: f32[1,128], index: 6, kind: input, shape index: {}]
  %s7 = inlined_call_operand.vmem [shape: f32[1,128], index: 7, kind: input, shape index: {}]
  %s8 = inlined_call_operand.vmem [shape: f32[1,512], index: 8, kind: input, shape index: {}]
  %s9 = inlined_call_operand.vmem [shape: f32[1,512], index: 9, kind: input, shape index: {}]
  %s10 = inlined_call_operand.hbm [shape: f32[2,256,512], index: 10, kind: output, shape index: {}]
  %s11 = sld [smem:[#allocation0]]
  $region89: #{tpu_custom_call.1} parent=0
    _
  %s13 = ssub.s32 1, %s11
  %s14 = scalar_select 0, %s13, %s11
  $region1: #{tpu_custom_call.1} parent=0
    #allocation3 [shape = 'u8[1048576]{0}', space=vmem, size = 0x100000, scoped, tag = 'input window, operand 0']
    #allocation4 [shape = 's32[2]{0}', space=sflag, size = 0x8, scoped, tag = 'scoped memory for tpu_custom_call.1']
    #allocation5 [shape = 's32[2]{0}', space=sflag, size = 0x8, scoped, tag = 'scoped memory for tpu_custom_call.1']
    #allocation6 [shape = 'u8[131072]{0}', space=vmem, size = 0x20000, scoped, tag = 'input window, operand 1, single buffered']
    #allocation7 [shape = 's32[1]{0}', space=sflag, size = 0x4, scoped, tag = 'scoped memory for tpu_custom_call.1']
    #allocation8 [shape = 'u8[294912]{0}', space=vmem, size = 0x48000, scoped, tag = 'input window, operand 2, single buffered']
    #allocation9 [shape = 'u8[131072]{0}', space=vmem, size = 0x20000, scoped, tag = 'input window, operand 3, single buffered']
    #allocation10 [shape = 's32[1]{0}', space=sflag, size = 0x4, scoped, tag = 'scoped memory for tpu_custom_call.1']
    #allocation11 [shape = 'u8[1048576]{0}', space=vmem, size = 0x100000, scoped, tag = 'output window, operand 0']
    %15 = vsyncpa [#allocation4], 0
    %s16 = scalar_lea.sflag [#allocation4], 1
    %17 = vsyncpa %s16, 0
    %18 = vsyncpa [#allocation7], 0
    %19 = vsyncpa [#allocation10], 0
    %20 = vsyncpa [#allocation5], 0
    %s21 = scalar_lea.sflag [#allocation5], 1
    %22 = vsyncpa %s21, 0
    loop: start=0, step=1, limit=4
    $region2: #{tpu_custom_call.1} parent=1 // loop_pre_header
      _
    $region3: #{tpu_custom_call.1} parent=1 // loop_header
      %s24 = sphi 0, %s28
      %p25 = scmp.ge.s32.totalorder %s24, 4
      %s34 = sphi 0, %s36
      %s37 = sphi 0, %s34
      %s38 = sphi 0, %s37
      %s54 = sphi 0, %s38
      %s58 = sphi 0, %s58
      %s60 = sphi 0, %s58
      %s61 = sphi 0, %s60
      %s75 = sphi 0, %s61
      %s79 = sphi 0, %s79
      %s81 = sphi 0, %s79
      %s82 = sphi 0, %s81
      %s96 = sphi 0, %s82
      %s100 = sphi 0, %s100
      %s102 = sphi 0, %s100
      %s103 = sphi 0, %s102
      %s117 = sphi 0, %s103
      %s121 = sphi 0, %s121
      %s123 = sphi 0, %s121
      %s124 = sphi 0, %s123
      %s138 = sphi 0, %s124
      %s142 = sphi 0, %s142
      %s144 = sphi 0, %s142
      %s145 = sphi 0, %s144
      %s159 = sphi 0, %s145
      %s163 = sphi 0, %s163
      %s165 = sphi 0, %s163
      %s166 = sphi 0, %s165
      %s180 = sphi 0, %s166
      %s184 = sphi 0, %s184
      %s186 = sphi 0, %s184
      %s187 = sphi 0, %s186
      %s201 = sphi 0, %s187
      %s205 = sphi 0, %s205
      %s207 = sphi 0, %s205
      %s208 = sphi 0, %s207
      %s222 = sphi 0, %s208
      %s226 = sphi 0, %s226
      %s228 = sphi 0, %s226
      %s229 = sphi 0, %s228
      %s243 = sphi 0, %s229
      %s249 = sphi 0, %s251
      %s252 = sphi 0, %s249
      %s253 = sphi 0, %s252
      %s269 = sphi 0, %s253
    $region4: #{tpu_custom_call.1} parent=1 // loop_header_branch
      %27 = sbr.rel (%p25) target = $region8
    $region5: #{tpu_custom_call.1} parent=1 // loop_body
      %s29 = ssub.s32 %s24, 1
      %s30 = ssub.s32 %s24, 2
      %s31 = sadd.s32 %s24, 1
      %s32 = ssub.s32 %s24, %s31
      %p33 = scmp.eq.s32.totalorder %s32, 0
      %s35 = sadd.s32 %s34, 1
      %s36 = scalar_select %p33, %s34, %s35
      %p39 = pneg %p33
      %p40 = scmp.eq.s32.totalorder %s24, 1
      %p41 = por %p39, %p40
      %p42 = scmp.ne.s32.totalorder %s34, %s37
      %p43 = scmp.eq.s32.totalorder %s24, 0
      %p44 = por %p42, %p43
      %p45 = scmp.ne.s32.totalorder %s34, %s37
      %p46 = scmp.eq.s32.totalorder %s29, 1
      %p47 = por %p45, %p46
      %p48 = scmp.ne.s32.totalorder %s37, %s38
      %p49 = scmp.eq.s32.totalorder %s29, 0
      %p50 = por %p48, %p49
      %p51 = scmp.ne.s32.totalorder %s37, %s38
      %p52 = scmp.eq.s32.totalorder %s30, 1
      %p53 = por %p51, %p52
      %p55 = scmp.ne.s32.totalorder %s38, %s54
      %p56 = scmp.eq.s32.totalorder %s30, 0
      %p57 = por %p55, %p56
      %s59 = sadd.s32 %s58, 1
      %p62 = scmp.eq.s32.totalorder %s24, 1
      %p63 = scmp.ne.s32.totalorder %s58, %s60
      %p64 = scmp.eq.s32.totalorder %s24, 0
      %p65 = por %p63, %p64
      %p66 = scmp.ne.s32.totalorder %s58, %s60
      %p67 = scmp.eq.s32.totalorder %s29, 1
      %p68 = por %p66, %p67
      %p69 = scmp.ne.s32.totalorder %s60, %s61
      %p70 = scmp.eq.s32.totalorder %s29, 0
      %p71 = por %p69, %p70
      %p72 = scmp.ne.s32.totalorder %s60, %s61
      %p73 = scmp.eq.s32.totalorder %s30, 1
      %p74 = por %p72, %p73
      %p76 = scmp.ne.s32.totalorder %s61, %s75
      %p77 = scmp.eq.s32.totalorder %s30, 0
      %p78 = por %p76, %p77
      %s80 = sadd.s32 %s79, 1
      %p83 = scmp.eq.s32.totalorder %s24, 1
      %p84 = scmp.ne.s32.totalorder %s79, %s81
      %p85 = scmp.eq.s32.totalorder %s24, 0
      %p86 = por %p84, %p85
      %p87 = scmp.ne.s32.totalorder %s79, %s81
      %p88 = scmp.eq.s32.totalorder %s29, 1
      %p89 = por %p87, %p88
      %p90 = scmp.ne.s32.totalorder %s81, %s82
      %p91 = scmp.eq.s32.totalorder %s29, 0
      %p92 = por %p90, %p91
      %p93 = scmp.ne.s32.totalorder %s81, %s82
      %p94 = scmp.eq.s32.totalorder %s30, 1
      %p95 = por %p93, %p94
      %p97 = scmp.ne.s32.totalorder %s82, %s96
      %p98 = scmp.eq.s32.totalorder %s30, 0
      %p99 = por %p97, %p98
      %s101 = sadd.s32 %s100, 1
      %p104 = scmp.eq.s32.totalorder %s24, 1
      %p105 = scmp.ne.s32.totalorder %s100, %s102
      %p106 = scmp.eq.s32.totalorder %s24, 0
      %p107 = por %p105, %p106
      %p108 = scmp.ne.s32.totalorder %s100, %s102
      %p109 = scmp.eq.s32.totalorder %s29, 1
      %p110 = por %p108, %p109
      %p111 = scmp.ne.s32.totalorder %s102, %s103
      %p112 = scmp.eq.s32.totalorder %s29, 0
      %p113 = por %p111, %p112
      %p114 = scmp.ne.s32.totalorder %s102, %s103
      %p115 = scmp.eq.s32.totalorder %s30, 1
      %p116 = por %p114, %p115
      %p118 = scmp.ne.s32.totalorder %s103, %s117
      %p119 = scmp.eq.s32.totalorder %s30, 0
      %p120 = por %p118, %p119
      %s122 = sadd.s32 %s121, 1
      %p125 = scmp.eq.s32.totalorder %s24, 1
      %p126 = scmp.ne.s32.totalorder %s121, %s123
      %p127 = scmp.eq.s32.totalorder %s24, 0
      %p128 = por %p126, %p127
      %p129 = scmp.ne.s32.totalorder %s121, %s123
      %p130 = scmp.eq.s32.totalorder %s29, 1
      %p131 = por %p129, %p130
      %p132 = scmp.ne.s32.totalorder %s123, %s124
      %p133 = scmp.eq.s32.totalorder %s29, 0
      %p134 = por %p132, %p133
      %p135 = scmp.ne.s32.totalorder %s123, %s124
      %p136 = scmp.eq.s32.totalorder %s30, 1
      %p137 = por %p135, %p136
      %p139 = scmp.ne.s32.totalorder %s124, %s138
      %p140 = scmp.eq.s32.totalorder %s30, 0
      %p141 = por %p139, %p140
      %s143 = sadd.s32 %s142, 1
      %p146 = scmp.eq.s32.totalorder %s24, 1
      %p147 = scmp.ne.s32.totalorder %s142, %s144
      %p148 = scmp.eq.s32.totalorder %s24, 0
      %p149 = por %p147, %p148
      %p150 = scmp.ne.s32.totalorder %s142, %s144
      %p151 = scmp.eq.s32.totalorder %s29, 1
      %p152 = por %p150, %p151
      %p153 = scmp.ne.s32.totalorder %s144, %s145
      %p154 = scmp.eq.s32.totalorder %s29, 0
      %p155 = por %p153, %p154
      %p156 = scmp.ne.s32.totalorder %s144, %s145
      %p157 = scmp.eq.s32.totalorder %s30, 1
      %p158 = por %p156, %p157
      %p160 = scmp.ne.s32.totalorder %s145, %s159
      %p161 = scmp.eq.s32.totalorder %s30, 0
      %p162 = por %p160, %p161
      %s164 = sadd.s32 %s163, 1
      %p167 = scmp.eq.s32.totalorder %s24, 1
      %p168 = scmp.ne.s32.totalorder %s163, %s165
      %p169 = scmp.eq.s32.totalorder %s24, 0
      %p170 = por %p168, %p169
      %p171 = scmp.ne.s32.totalorder %s163, %s165
      %p172 = scmp.eq.s32.totalorder %s29, 1
      %p173 = por %p171, %p172
      %p174 = scmp.ne.s32.totalorder %s165, %s166
      %p175 = scmp.eq.s32.totalorder %s29, 0
      %p176 = por %p174, %p175
      %p177 = scmp.ne.s32.totalorder %s165, %s166
      %p178 = scmp.eq.s32.totalorder %s30, 1
      %p179 = por %p177, %p178
      %p181 = scmp.ne.s32.totalorder %s166, %s180
      %p182 = scmp.eq.s32.totalorder %s30, 0
      %p183 = por %p181, %p182
      %s185 = sadd.s32 %s184, 1
      %p188 = scmp.eq.s32.totalorder %s24, 1
      %p189 = scmp.ne.s32.totalorder %s184, %s186
      %p190 = scmp.eq.s32.totalorder %s24, 0
      %p191 = por %p189, %p190
      %p192 = scmp.ne.s32.totalorder %s184, %s186
      %p193 = scmp.eq.s32.totalorder %s29, 1
      %p194 = por %p192, %p193
      %p195 = scmp.ne.s32.totalorder %s186, %s187
      %p196 = scmp.eq.s32.totalorder %s29, 0
      %p197 = por %p195, %p196
      %p198 = scmp.ne.s32.totalorder %s186, %s187
      %p199 = scmp.eq.s32.totalorder %s30, 1
      %p200 = por %p198, %p199
      %p202 = scmp.ne.s32.totalorder %s187, %s201
      %p203 = scmp.eq.s32.totalorder %s30, 0
      %p204 = por %p202, %p203
      %s206 = sadd.s32 %s205, 1
      %p209 = scmp.eq.s32.totalorder %s24, 1
      %p210 = scmp.ne.s32.totalorder %s205, %s207
      %p211 = scmp.eq.s32.totalorder %s24, 0
      %p212 = por %p210, %p211
      %p213 = scmp.ne.s32.totalorder %s205, %s207
      %p214 = scmp.eq.s32.totalorder %s29, 1
      %p215 = por %p213, %p214
      %p216 = scmp.ne.s32.totalorder %s207, %s208
      %p217 = scmp.eq.s32.totalorder %s29, 0
      %p218 = por %p216, %p217
      %p219 = scmp.ne.s32.totalorder %s207, %s208
      %p220 = scmp.eq.s32.totalorder %s30, 1
      %p221 = por %p219, %p220
      %p223 = scmp.ne.s32.totalorder %s208, %s222
      %p224 = scmp.eq.s32.totalorder %s30, 0
      %p225 = por %p223, %p224
      %s227 = sadd.s32 %s226, 1
      %p230 = scmp.eq.s32.totalorder %s24, 1
      %p231 = scmp.ne.s32.totalorder %s226, %s228
      %p232 = scmp.eq.s32.totalorder %s24, 0
      %p233 = por %p231, %p232
      %p234 = scmp.ne.s32.totalorder %s226, %s228
      %p235 = scmp.eq.s32.totalorder %s29, 1
      %p236 = por %p234, %p235
      %p237 = scmp.ne.s32.totalorder %s228, %s229
      %p238 = scmp.eq.s32.totalorder %s29, 0
      %p239 = por %p237, %p238
      %p240 = scmp.ne.s32.totalorder %s228, %s229
      %p241 = scmp.eq.s32.totalorder %s30, 1
      %p242 = por %p240, %p241
      %p244 = scmp.ne.s32.totalorder %s229, %s243
      %p245 = scmp.eq.s32.totalorder %s30, 0
      %p246 = por %p244, %p245
      %s247 = ssub.s32 %s24, %s31
      %p248 = scmp.eq.s32.totalorder %s247, 0
      %s250 = sadd.s32 %s249, 1
      %s251 = scalar_select %p248, %s249, %s250
      %p254 = pneg %p248
      %p255 = scmp.eq.s32.totalorder %s24, 1
      %p256 = por %p254, %p255
      %p257 = scmp.ne.s32.totalorder %s249, %s252
      %p258 = scmp.eq.s32.totalorder %s24, 0
      %p259 = por %p257, %p258
      %p260 = scmp.ne.s32.totalorder %s249, %s252
      %p261 = scmp.eq.s32.totalorder %s29, 1
      %p262 = por %p260, %p261
      %p263 = scmp.ne.s32.totalorder %s252, %s253
      %p264 = scmp.eq.s32.totalorder %s29, 0
      %p265 = por %p263, %p264
      %p266 = scmp.ne.s32.totalorder %s252, %s253
      %p267 = scmp.eq.s32.totalorder %s30, 1
      %p268 = por %p266, %p267
      %p270 = scmp.ne.s32.totalorder %s253, %s269
      %p271 = scmp.eq.s32.totalorder %s30, 0
      %p272 = por %p270, %p271
      %p273 = scmp.le.s32.totalorder 1, %s24
      %p274 = scmp.lt.s32.totalorder %s24, 3
      %p275 = pnand %p273, %p274
      %p276 = pneg %p275
      // Predicated region
      $region9: #{tpu_custom_call.1} parent=5 // pred_check
        _
      $region10: #{tpu_custom_call.1} parent=5 // pred_check_branch
        %278 = sbr.rel (%p275) target = $region12
      $region11: #{tpu_custom_call.1} parent=5 // pred_region
        %s279 = ssub.s32 %s24, 1
        // Predicated region
        $region13: #{tpu_custom_call.1} parent=11 // pred_check
          %p280 = pneg %p71
        $region14: #{tpu_custom_call.1} parent=11 // pred_check_branch
          %282 = sbr.rel (%p280) target = $region16
        $region15: #{tpu_custom_call.1} parent=11 // pred_region
          %s284 = ssub.s32 4096, 4096
          %285 = vsyncadd [#allocation7], %s284
          %s286 = sshll.u32 [#allocation6], 4
          %s287 = int_to_ptr.vmem [resolvable:$true] %s286
          %292 = dma.hbm_to_vmem [thread:$0]  %s1, 4096, %s287, [#allocation7], 64, 64, 4
        $region16: #{tpu_custom_call.1} parent=11 // pred_fallthru
          _
        // Predicated region
        $region17: #{tpu_custom_call.1} parent=11 // pred_check
          %p293 = pneg %p92
        $region18: #{tpu_custom_call.1} parent=11 // pred_check_branch
          %295 = sbr.rel (%p293) target = $region20
        $region19: #{tpu_custom_call.1} parent=11 // pred_region
          %s297 = ssub.s32 9216, 9216
          %298 = vsyncadd [#allocation7], %s297
          %s299 = sshll.u32 [#allocation8], 4
          %s300 = int_to_ptr.vmem [resolvable:$true] %s299
          %305 = dma.hbm_to_vmem [thread:$0]  %s2, 9216, %s300, [#allocation7], 64, 64, 4
        $region20: #{tpu_custom_call.1} parent=11 // pred_fallthru
          _
        // Predicated region
        $region21: #{tpu_custom_call.1} parent=11 // pred_check
          %p306 = pneg %p113
        $region22: #{tpu_custom_call.1} parent=11 // pred_check_branch
          %308 = sbr.rel (%p306) target = $region24
        $region23: #{tpu_custom_call.1} parent=11 // pred_region
          %s310 = ssub.s32 4096, 4096
          %311 = vsyncadd [#allocation10], %s310
          %s312 = sshll.u32 [#allocation9], 4
          %s313 = int_to_ptr.vmem [resolvable:$true] %s312
          %318 = dma.hbm_to_vmem [thread:$0]  %s3, 4096, %s313, [#allocation10], 256, 256, 16
        $region24: #{tpu_custom_call.1} parent=11 // pred_fallthru
          _
        // Predicated region
        $region25: #{tpu_custom_call.1} parent=11 // pred_check
          %p319 = pneg %p134
        $region26: #{tpu_custom_call.1} parent=11 // pred_check_branch
          %321 = sbr.rel (%p319) target = $region28
        $region27: #{tpu_custom_call.1} parent=11 // pred_region
          _
        $region28: #{tpu_custom_call.1} parent=11 // pred_fallthru
          _
        // Predicated region
        $region29: #{tpu_custom_call.1} parent=11 // pred_check
          %p322 = pneg %p155
        $region30: #{tpu_custom_call.1} parent=11 // pred_check_branch
          %324 = sbr.rel (%p322) target = $region32
        $region31: #{tpu_custom_call.1} parent=11 // pred_region
          _
        $region32: #{tpu_custom_call.1} parent=11 // pred_fallthru
          _
        // Predicated region
        $region33: #{tpu_custom_call.1} parent=11 // pred_check
          %p325 = pneg %p176
        $region34: #{tpu_custom_call.1} parent=11 // pred_check_branch
          %327 = sbr.rel (%p325) target = $region36
        $region35: #{tpu_custom_call.1} parent=11 // pred_region
          _
        $region36: #{tpu_custom_call.1} parent=11 // pred_fallthru
          _
        // Predicated region
        $region37: #{tpu_custom_call.1} parent=11 // pred_check
          %p328 = pneg %p197
        $region38: #{tpu_custom_call.1} parent=11 // pred_check_branch
          %330 = sbr.rel (%p328) target = $region40
        $region39: #{tpu_custom_call.1} parent=11 // pred_region
          _
        $region40: #{tpu_custom_call.1} parent=11 // pred_fallthru
          _
        // Predicated region
        $region41: #{tpu_custom_call.1} parent=11 // pred_check
          %p331 = pneg %p218
        $region42: #{tpu_custom_call.1} parent=11 // pred_check_branch
          %333 = sbr.rel (%p331) target = $region44
        $region43: #{tpu_custom_call.1} parent=11 // pred_region
          _
        $region44: #{tpu_custom_call.1} parent=11 // pred_fallthru
          _
        // Predicated region
        $region45: #{tpu_custom_call.1} parent=11 // pred_check
          %p334 = pneg %p239
        $region46: #{tpu_custom_call.1} parent=11 // pred_check_branch
          %336 = sbr.rel (%p334) target = $region48
        $region47: #{tpu_custom_call.1} parent=11 // pred_region
          _
        $region48: #{tpu_custom_call.1} parent=11 // pred_fallthru
          _
      $region12: #{tpu_custom_call.1} parent=5 // pred_fallthru
        _
      %p337 = scmp.lt.s32.totalorder %s24, 2
      // Predicated region
      $region49: #{tpu_custom_call.1} parent=5 // pred_check
        %p338 = pneg %p337
      $region50: #{tpu_custom_call.1} parent=5 // pred_check_branch
        %340 = sbr.rel (%p338) target = $region52
      $region51: #{tpu_custom_call.1} parent=5 // pred_region
        // Predicated region
        $region53: #{tpu_custom_call.1} parent=51 // pred_check
          %p341 = pneg %p44
        $region54: #{tpu_custom_call.1} parent=51 // pred_check_branch
          %343 = sbr.rel (%p341) target = $region56
        $region55: #{tpu_custom_call.1} parent=51 // pred_region
          %s344 = sand.u32 %s34, 1
          %s345 = scalar_lea.sflag [#allocation4], %s344
          %s346 = sand.u32 %s34, 1
          %s347 = smul.addr %s346, 1024
          %s348 = scalar_lea.vmem [#allocation3], %s347
          %s350 = ssub.s32 16384, 16384
          %351 = vsyncadd %s345, %s350
          %s352 = smul.addr %s24, 128
          %s353 = smul.addr %s352, 128
          %s354 = scalar_lea.hbm %s0, %s353
          %s355 = sshll.u32 %s348, 4
          %s356 = int_to_ptr.vmem [resolvable:$true] %s355
          %361 = dma.hbm_to_vmem [thread:$0]  %s354, 16384, %s356, %s345, 512, 512, 32
        $region56: #{tpu_custom_call.1} parent=51 // pred_fallthru
          _
      $region52: #{tpu_custom_call.1} parent=5 // pred_fallthru
        _
      %p362 = scmp.le.s32.totalorder 1, %s24
      %p363 = scmp.lt.s32.totalorder %s24, 3
      %p364 = pnand %p362, %p363
      %p365 = pneg %p364
      // Predicated region
      $region57: #{tpu_custom_call.1} parent=5 // pred_check
        _
      $region58: #{tpu_custom_call.1} parent=5 // pred_check_branch
        %367 = sbr.rel (%p364) target = $region60
      $region59: #{tpu_custom_call.1} parent=5 // pred_region
        %s368 = ssub.s32 %s24, 1
        %s369 = sand.u32 %s37, 1
        %s370 = scalar_lea.sflag [#allocation4], %s369
        %s371 = sand.u32 %s37, 1
        %s372 = smul.addr %s371, 1024
        %s373 = scalar_lea.vmem [#allocation3], %s372
        // Predicated region
        $region61: #{tpu_custom_call.1} parent=59 // pred_check
          %p374 = pneg %p50
        $region62: #{tpu_custom_call.1} parent=59 // pred_check_branch
          %376 = sbr.rel (%p374) target = $region64
        $region63: #{tpu_custom_call.1} parent=59 // pred_region
          %377 = dma.done %s370, 16384
        $region64: #{tpu_custom_call.1} parent=59 // pred_fallthru
          _
        // Predicated region
        $region65: #{tpu_custom_call.1} parent=59 // pred_check
          %p378 = pneg %p71
        $region66: #{tpu_custom_call.1} parent=59 // pred_check_branch
          %380 = sbr.rel (%p378) target = $region68
        $region67: #{tpu_custom_call.1} parent=59 // pred_region
          %381 = dma.done [#allocation7], 4096
        $region68: #{tpu_custom_call.1} parent=59 // pred_fallthru
          _
        // Predicated region
        $region69: #{tpu_custom_call.1} parent=59 // pred_check
          %p382 = pneg %p92
        $region70: #{tpu_custom_call.1} parent=59 // pred_check_branch
          %384 = sbr.rel (%p382) target = $region72
        $region71: #{tpu_custom_call.1} parent=59 // pred_region
          %385 = dma.done [#allocation7], 9216
        $region72: #{tpu_custom_call.1} parent=59 // pred_fallthru
          _
        // Predicated region
        $region73: #{tpu_custom_call.1} parent=59 // pred_check
          %p386 = pneg %p113
        $region74: #{tpu_custom_call.1} parent=59 // pred_check_branch
          %388 = sbr.rel (%p386) target = $region76
        $region75: #{tpu_custom_call.1} parent=59 // pred_region
          %389 = dma.done [#allocation10], 4096
        $region76: #{tpu_custom_call.1} parent=59 // pred_fallthru
          _
        %s390 = sand.u32 %s37, 1
        %s391 = scalar_lea.sflag [#allocation4], %s390
        %s392 = sand.u32 %s37, 1
        %s393 = smul.addr %s392, 1024
        %s394 = scalar_lea.vmem [#allocation3], %s393
        %p395 = pneg %p50
        %p396 = pneg %p47
        %p397 = pneg %p71
        %p398 = pneg %p68
        %p399 = pneg %p92
        %p400 = pneg %p89
        %p401 = pneg %p113
        %p402 = pneg %p110
        %p403 = pneg %p134
        %p404 = pneg %p131
        %p405 = pneg %p155
        %p406 = pneg %p152
        %p407 = pneg %p176
        %p408 = pneg %p173
        %p409 = pneg %p197
        %p410 = pneg %p194
        %p411 = pneg %p218
        %p412 = pneg %p215
        %p413 = pneg %p239
        %p414 = pneg %p236
        %p415 = pneg %p265
        %p416 = pneg %p262
        %s417 = sand.u32 %s252, 1
        %s418 = scalar_lea.sflag [#allocation5], %s417
        %s419 = sand.u32 %s252, 1
        %s420 = smul.addr %s419, 1024
        %s421 = scalar_lea.vmem [#allocation11], %s420
        %v423 = vld [vmem:[%s373] sm:$0xff]
        %v424 = vld [vmem:[%s373 + $0x8] sm:$0xff]
        %v425 = vld [vmem:[%s373 + $0x10] sm:$0xff]
        %v426 = vld [vmem:[%s373 + $0x18] sm:$0xff]
        %v427 = vld [vmem:[%s373 + $0x20] sm:$0xff]
        %v428 = vld [vmem:[%s373 + $0x28] sm:$0xff]
        %v429 = vld [vmem:[%s373 + $0x30] sm:$0xff]
        %v430 = vld [vmem:[%s373 + $0x38] sm:$0xff]
        %v431 = vld [vmem:[%s373 + $0x40] sm:$0xff]
        %v432 = vld [vmem:[%s373 + $0x48] sm:$0xff]
        %v433 = vld [vmem:[%s373 + $0x50] sm:$0xff]
        %v434 = vld [vmem:[%s373 + $0x58] sm:$0xff]
        %v435 = vld [vmem:[%s373 + $0x60] sm:$0xff]
        %v436 = vld [vmem:[%s373 + $0x68] sm:$0xff]
        %v437 = vld [vmem:[%s373 + $0x70] sm:$0xff]
        %v438 = vld [vmem:[%s373 + $0x78] sm:$0xff]
        %v439 = vld [vmem:[%s373 + $0x80] sm:$0xff]
        %v440 = vld [vmem:[%s373 + $0x88] sm:$0xff]
        %v441 = vld [vmem:[%s373 + $0x90] sm:$0xff]
        %v442 = vld [vmem:[%s373 + $0x98] sm:$0xff]
        %v443 = vld [vmem:[%s373 + $0xa0] sm:$0xff]
        %v444 = vld [vmem:[%s373 + $0xa8] sm:$0xff]
        %v445 = vld [vmem:[%s373 + $0xb0] sm:$0xff]
        %v446 = vld [vmem:[%s373 + $0xb8] sm:$0xff]
        %v447 = vld [vmem:[%s373 + $0xc0] sm:$0xff]
        %v448 = vld [vmem:[%s373 + $0xc8] sm:$0xff]
        %v449 = vld [vmem:[%s373 + $0xd0] sm:$0xff]
        %v450 = vld [vmem:[%s373 + $0xd8] sm:$0xff]
        %v451 = vld [vmem:[%s373 + $0xe0] sm:$0xff]
        %v452 = vld [vmem:[%s373 + $0xe8] sm:$0xff]
        %v453 = vld [vmem:[%s373 + $0xf0] sm:$0xff]
        %v454 = vld [vmem:[%s373 + $0xf8] sm:$0xff]
        %v455 = vld [vmem:[%s373 + $0x100] sm:$0xff]
        %v456 = vld [vmem:[%s373 + $0x108] sm:$0xff]
        %v457 = vld [vmem:[%s373 + $0x110] sm:$0xff]
        %v458 = vld [vmem:[%s373 + $0x118] sm:$0xff]
        %v459 = vld [vmem:[%s373 + $0x120] sm:$0xff]
        %v460 = vld [vmem:[%s373 + $0x128] sm:$0xff]
        %v461 = vld [vmem:[%s373 + $0x130] sm:$0xff]
        %v462 = vld [vmem:[%s373 + $0x138] sm:$0xff]
        %v463 = vld [vmem:[%s373 + $0x140] sm:$0xff]
        %v464 = vld [vmem:[%s373 + $0x148] sm:$0xff]
        %v465 = vld [vmem:[%s373 + $0x150] sm:$0xff]
        %v466 = vld [vmem:[%s373 + $0x158] sm:$0xff]
        %v467 = vld [vmem:[%s373 + $0x160] sm:$0xff]
        %v468 = vld [vmem:[%s373 + $0x168] sm:$0xff]
        %v469 = vld [vmem:[%s373 + $0x170] sm:$0xff]
        %v470 = vld [vmem:[%s373 + $0x178] sm:$0xff]
        %v471 = vld [vmem:[%s373 + $0x180] sm:$0xff]
        %v472 = vld [vmem:[%s373 + $0x188] sm:$0xff]
        %v473 = vld [vmem:[%s373 + $0x190] sm:$0xff]
        %v474 = vld [vmem:[%s373 + $0x198] sm:$0xff]
        %v475 = vld [vmem:[%s373 + $0x1a0] sm:$0xff]
        %v476 = vld [vmem:[%s373 + $0x1a8] sm:$0xff]
        %v477 = vld [vmem:[%s373 + $0x1b0] sm:$0xff]
        %v478 = vld [vmem:[%s373 + $0x1b8] sm:$0xff]
        %v479 = vld [vmem:[%s373 + $0x1c0] sm:$0xff]
        %v480 = vld [vmem:[%s373 + $0x1c8] sm:$0xff]
        %v481 = vld [vmem:[%s373 + $0x1d0] sm:$0xff]
        %v482 = vld [vmem:[%s373 + $0x1d8] sm:$0xff]
        %v483 = vld [vmem:[%s373 + $0x1e0] sm:$0xff]
        %v484 = vld [vmem:[%s373 + $0x1e8] sm:$0xff]
        %v485 = vld [vmem:[%s373 + $0x1f0] sm:$0xff]
        %v486 = vld [vmem:[%s373 + $0x1f8] sm:$0xff]
        %v487 = vld [vmem:[%s373 + $0x200] sm:$0xff]
        %v488 = vld [vmem:[%s373 + $0x208] sm:$0xff]
        %v489 = vld [vmem:[%s373 + $0x210] sm:$0xff]
        %v490 = vld [vmem:[%s373 + $0x218] sm:$0xff]
        %v491 = vld [vmem:[%s373 + $0x220] sm:$0xff]
        %v492 = vld [vmem:[%s373 + $0x228] sm:$0xff]
        %v493 = vld [vmem:[%s373 + $0x230] sm:$0xff]
        %v494 = vld [vmem:[%s373 + $0x238] sm:$0xff]
        %v495 = vld [vmem:[%s373 + $0x240] sm:$0xff]
        %v496 = vld [vmem:[%s373 + $0x248] sm:$0xff]
        %v497 = vld [vmem:[%s373 + $0x250] sm:$0xff]
        %v498 = vld [vmem:[%s373 + $0x258] sm:$0xff]
        %v499 = vld [vmem:[%s373 + $0x260] sm:$0xff]
        %v500 = vld [vmem:[%s373 + $0x268] sm:$0xff]
        %v501 = vld [vmem:[%s373 + $0x270] sm:$0xff]
        %v502 = vld [vmem:[%s373 + $0x278] sm:$0xff]
        %v503 = vld [vmem:[%s373 + $0x280] sm:$0xff]
        %v504 = vld [vmem:[%s373 + $0x288] sm:$0xff]
        %v505 = vld [vmem:[%s373 + $0x290] sm:$0xff]
        %v506 = vld [vmem:[%s373 + $0x298] sm:$0xff]
        %v507 = vld [vmem:[%s373 + $0x2a0] sm:$0xff]
        %v508 = vld [vmem:[%s373 + $0x2a8] sm:$0xff]
        %v509 = vld [vmem:[%s373 + $0x2b0] sm:$0xff]
        %v510 = vld [vmem:[%s373 + $0x2b8] sm:$0xff]
        %v511 = vld [vmem:[%s373 + $0x2c0] sm:$0xff]
        %v512 = vld [vmem:[%s373 + $0x2c8] sm:$0xff]
        %v513 = vld [vmem:[%s373 + $0x2d0] sm:$0xff]
        %v514 = vld [vmem:[%s373 + $0x2d8] sm:$0xff]
        %v515 = vld [vmem:[%s373 + $0x2e0] sm:$0xff]
        %v516 = vld [vmem:[%s373 + $0x2e8] sm:$0xff]
        %v517 = vld [vmem:[%s373 + $0x2f0] sm:$0xff]
        %v518 = vld [vmem:[%s373 + $0x2f8] sm:$0xff]
        %v519 = vld [vmem:[%s373 + $0x300] sm:$0xff]
        %v520 = vld [vmem:[%s373 + $0x308] sm:$0xff]
        %v521 = vld [vmem:[%s373 + $0x310] sm:$0xff]
        %v522 = vld [vmem:[%s373 + $0x318] sm:$0xff]
        %v523 = vld [vmem:[%s373 + $0x320] sm:$0xff]
        %v524 = vld [vmem:[%s373 + $0x328] sm:$0xff]
        %v525 = vld [vmem:[%s373 + $0x330] sm:$0xff]
        %v526 = vld [vmem:[%s373 + $0x338] sm:$0xff]
        %v527 = vld [vmem:[%s373 + $0x340] sm:$0xff]
        %v528 = vld [vmem:[%s373 + $0x348] sm:$0xff]
        %v529 = vld [vmem:[%s373 + $0x350] sm:$0xff]
        %v530 = vld [vmem:[%s373 + $0x358] sm:$0xff]
        %v531 = vld [vmem:[%s373 + $0x360] sm:$0xff]
        %v532 = vld [vmem:[%s373 + $0x368] sm:$0xff]
        %v533 = vld [vmem:[%s373 + $0x370] sm:$0xff]
        %v534 = vld [vmem:[%s373 + $0x378] sm:$0xff]
        %v535 = vld [vmem:[%s373 + $0x380] sm:$0xff]
        %v536 = vld [vmem:[%s373 + $0x388] sm:$0xff]
        %v537 = vld [vmem:[%s373 + $0x390] sm:$0xff]
        %v538 = vld [vmem:[%s373 + $0x398] sm:$0xff]
        %v539 = vld [vmem:[%s373 + $0x3a0] sm:$0xff]
        %v540 = vld [vmem:[%s373 + $0x3a8] sm:$0xff]
        %v541 = vld [vmem:[%s373 + $0x3b0] sm:$0xff]
        %v542 = vld [vmem:[%s373 + $0x3b8] sm:$0xff]
        %v543 = vld [vmem:[%s373 + $0x3c0] sm:$0xff]
        %v544 = vld [vmem:[%s373 + $0x3c8] sm:$0xff]
        %v545 = vld [vmem:[%s373 + $0x3d0] sm:$0xff]
        %v546 = vld [vmem:[%s373 + $0x3d8] sm:$0xff]
        %v547 = vld [vmem:[%s373 + $0x3e0] sm:$0xff]
        %v548 = vld [vmem:[%s373 + $0x3e8] sm:$0xff]
        %v549 = vld [vmem:[%s373 + $0x3f0] sm:$0xff]
        %v550 = vld [vmem:[%s373 + $0x3f8] sm:$0xff]
        %v551 = vpack.c.bf16 %v427, %v423
        %v552 = vpack.c.bf16 %v428, %v424
        %v553 = vpack.c.bf16 %v429, %v425
        %v554 = vpack.c.bf16 %v430, %v426
        %v555 = vpack.c.bf16 %v435, %v431
        %v556 = vpack.c.bf16 %v436, %v432
        %v557 = vpack.c.bf16 %v437, %v433
        %v558 = vpack.c.bf16 %v438, %v434
        %v559 = vpack.c.bf16 %v443, %v439
        %v560 = vpack.c.bf16 %v444, %v440
        %v561 = vpack.c.bf16 %v445, %v441
        %v562 = vpack.c.bf16 %v446, %v442
        %v563 = vpack.c.bf16 %v451, %v447
        %v564 = vpack.c.bf16 %v452, %v448
        %v565 = vpack.c.bf16 %v453, %v449
        %v566 = vpack.c.bf16 %v454, %v450
        %v567 = vpack.c.bf16 %v459, %v455
        %v568 = vpack.c.bf16 %v460, %v456
        %v569 = vpack.c.bf16 %v461, %v457
        %v570 = vpack.c.bf16 %v462, %v458
        %v571 = vpack.c.bf16 %v467, %v463
        %v572 = vpack.c.bf16 %v468, %v464
        %v573 = vpack.c.bf16 %v469, %v465
        %v574 = vpack.c.bf16 %v470, %v466
        %v575 = vpack.c.bf16 %v475, %v471
        %v576 = vpack.c.bf16 %v476, %v472
        %v577 = vpack.c.bf16 %v477, %v473
        %v578 = vpack.c.bf16 %v478, %v474
        %v579 = vpack.c.bf16 %v483, %v479
        %v580 = vpack.c.bf16 %v484, %v480
        %v581 = vpack.c.bf16 %v485, %v481
        %v582 = vpack.c.bf16 %v486, %v482
        %v583 = vpack.c.bf16 %v491, %v487
        %v584 = vpack.c.bf16 %v492, %v488
        %v585 = vpack.c.bf16 %v493, %v489
        %v586 = vpack.c.bf16 %v494, %v490
        %v587 = vpack.c.bf16 %v499, %v495
        %v588 = vpack.c.bf16 %v500, %v496
        %v589 = vpack.c.bf16 %v501, %v497
        %v590 = vpack.c.bf16 %v502, %v498
        %v591 = vpack.c.bf16 %v507, %v503
        %v592 = vpack.c.bf16 %v508, %v504
        %v593 = vpack.c.bf16 %v509, %v505
        %v594 = vpack.c.bf16 %v510, %v506
        %v595 = vpack.c.bf16 %v515, %v511
        %v596 = vpack.c.bf16 %v516, %v512
        %v597 = vpack.c.bf16 %v517, %v513
        %v598 = vpack.c.bf16 %v518, %v514
        %v599 = vpack.c.bf16 %v523, %v519
        %v600 = vpack.c.bf16 %v524, %v520
        %v601 = vpack.c.bf16 %v525, %v521
        %v602 = vpack.c.bf16 %v526, %v522
        %v603 = vpack.c.bf16 %v531, %v527
        %v604 = vpack.c.bf16 %v532, %v528
        %v605 = vpack.c.bf16 %v533, %v529
        %v606 = vpack.c.bf16 %v534, %v530
        %v607 = vpack.c.bf16 %v539, %v535
        %v608 = vpack.c.bf16 %v540, %v536
        %v609 = vpack.c.bf16 %v541, %v537
        %v610 = vpack.c.bf16 %v542, %v538
        %v611 = vpack.c.bf16 %v547, %v543
        %v612 = vpack.c.bf16 %v548, %v544
        %v613 = vpack.c.bf16 %v549, %v545
        %v614 = vpack.c.bf16 %v550, %v546
        %v615 = vld [vmem:[#allocation6] sm:$0xf]
        %v616 = vld [vmem:[#allocation6 + $0x4] sm:$0xf]
        %v617 = vld [vmem:[#allocation6 + $0x8] sm:$0xf]
        %v618 = vld [vmem:[#allocation6 + $0xc] sm:$0xf]
        %v619 = vld [vmem:[#allocation6 + $0x10] sm:$0xf]
        %v620 = vld [vmem:[#allocation6 + $0x14] sm:$0xf]
        %v621 = vld [vmem:[#allocation6 + $0x18] sm:$0xf]
        %v622 = vld [vmem:[#allocation6 + $0x1c] sm:$0xf]
        %v623 = vld [vmem:[#allocation6 + $0x20] sm:$0xf]
        %v624 = vld [vmem:[#allocation6 + $0x24] sm:$0xf]
        %v625 = vld [vmem:[#allocation6 + $0x28] sm:$0xf]
        %v626 = vld [vmem:[#allocation6 + $0x2c] sm:$0xf]
        %v627 = vld [vmem:[#allocation6 + $0x30] sm:$0xf]
        %v628 = vld [vmem:[#allocation6 + $0x34] sm:$0xf]
        %v629 = vld [vmem:[#allocation6 + $0x38] sm:$0xf]
        %v630 = vld [vmem:[#allocation6 + $0x3c] sm:$0xf]
        %v631 = vld [vmem:[#allocation6 + $0x40] sm:$0xf]
        %v632 = vld [vmem:[#allocation6 + $0x44] sm:$0xf]
        %v633 = vld [vmem:[#allocation6 + $0x48] sm:$0xf]
        %v634 = vld [vmem:[#allocation6 + $0x4c] sm:$0xf]
        %v635 = vld [vmem:[#allocation6 + $0x50] sm:$0xf]
        %v636 = vld [vmem:[#allocation6 + $0x54] sm:$0xf]
        %v637 = vld [vmem:[#allocation6 + $0x58] sm:$0xf]
        %v638 = vld [vmem:[#allocation6 + $0x5c] sm:$0xf]
        %v639 = vld [vmem:[#allocation6 + $0x60] sm:$0xf]
        %v640 = vld [vmem:[#allocation6 + $0x64] sm:$0xf]
        %v641 = vld [vmem:[#allocation6 + $0x68] sm:$0xf]
        %v642 = vld [vmem:[#allocation6 + $0x6c] sm:$0xf]
        %v643 = vld [vmem:[#allocation6 + $0x70] sm:$0xf]
        %v644 = vld [vmem:[#allocation6 + $0x74] sm:$0xf]
        %v645 = vld [vmem:[#allocation6 + $0x78] sm:$0xf]
        %v646 = vld [vmem:[#allocation6 + $0x7c] sm:$0xf]
        %v647 = vld [vmem:[#allocation6 + $0x80] sm:$0xf]
        %v648 = vld [vmem:[#allocation6 + $0x84] sm:$0xf]
        %v649 = vld [vmem:[#allocation6 + $0x88] sm:$0xf]
        %v650 = vld [vmem:[#allocation6 + $0x8c] sm:$0xf]
        %v651 = vld [vmem:[#allocation6 + $0x90] sm:$0xf]
        %v652 = vld [vmem:[#allocation6 + $0x94] sm:$0xf]
        %v653 = vld [vmem:[#allocation6 + $0x98] sm:$0xf]
        %v654 = vld [vmem:[#allocation6 + $0x9c] sm:$0xf]
        %v655 = vld [vmem:[#allocation6 + $0xa0] sm:$0xf]
        %v656 = vld [vmem:[#allocation6 + $0xa4] sm:$0xf]
        %v657 = vld [vmem:[#allocation6 + $0xa8] sm:$0xf]
        %v658 = vld [vmem:[#allocation6 + $0xac] sm:$0xf]
        %v659 = vld [vmem:[#allocation6 + $0xb0] sm:$0xf]
        %v660 = vld [vmem:[#allocation6 + $0xb4] sm:$0xf]
        %v661 = vld [vmem:[#allocation6 + $0xb8] sm:$0xf]
        %v662 = vld [vmem:[#allocation6 + $0xbc] sm:$0xf]
        %v663 = vld [vmem:[#allocation6 + $0xc0] sm:$0xf]
        %v664 = vld [vmem:[#allocation6 + $0xc4] sm:$0xf]
        %v665 = vld [vmem:[#allocation6 + $0xc8] sm:$0xf]
        %v666 = vld [vmem:[#allocation6 + $0xcc] sm:$0xf]
        %v667 = vld [vmem:[#allocation6 + $0xd0] sm:$0xf]
        %v668 = vld [vmem:[#allocation6 + $0xd4] sm:$0xf]
        %v669 = vld [vmem:[#allocation6 + $0xd8] sm:$0xf]
        %v670 = vld [vmem:[#allocation6 + $0xdc] sm:$0xf]
        %v671 = vld [vmem:[#allocation6 + $0xe0] sm:$0xf]
        %v672 = vld [vmem:[#allocation6 + $0xe4] sm:$0xf]
        %v673 = vld [vmem:[#allocation6 + $0xe8] sm:$0xf]
        %v674 = vld [vmem:[#allocation6 + $0xec] sm:$0xf]
        %v675 = vld [vmem:[#allocation6 + $0xf0] sm:$0xf]
        %v676 = vld [vmem:[#allocation6 + $0xf4] sm:$0xf]
        %v677 = vld [vmem:[#allocation6 + $0xf8] sm:$0xf]
        %v678 = vld [vmem:[#allocation6 + $0xfc] sm:$0xf]
        %v743 = vunpack.c.l.b16 %v615
        %v744 = vunpack.c.l.b16 %v616
        %v745 = vunpack.c.l.b16 %v617
        %v746 = vunpack.c.l.b16 %v618
        %v747 = vunpack.c.l.b16 %v619
        %v748 = vunpack.c.l.b16 %v620
        %v749 = vunpack.c.l.b16 %v621
        %v750 = vunpack.c.l.b16 %v622
        %v751 = vunpack.c.l.b16 %v623
        %v752 = vunpack.c.l.b16 %v624
        %v753 = vunpack.c.l.b16 %v625
        %v754 = vunpack.c.l.b16 %v626
        %v755 = vunpack.c.l.b16 %v627
        %v756 = vunpack.c.l.b16 %v628
        %v757 = vunpack.c.l.b16 %v629
        %v758 = vunpack.c.l.b16 %v630
        %v759 = vunpack.c.l.b16 %v631
        %v760 = vunpack.c.l.b16 %v632
        %v761 = vunpack.c.l.b16 %v633
        %v762 = vunpack.c.l.b16 %v634
        %v763 = vunpack.c.l.b16 %v635
        %v764 = vunpack.c.l.b16 %v636
        %v765 = vunpack.c.l.b16 %v637
        %v766 = vunpack.c.l.b16 %v638
        %v767 = vunpack.c.l.b16 %v639
        %v768 = vunpack.c.l.b16 %v640
        %v769 = vunpack.c.l.b16 %v641
        %v770 = vunpack.c.l.b16 %v642
        %v771 = vunpack.c.l.b16 %v643
        %v772 = vunpack.c.l.b16 %v644
        %v773 = vunpack.c.l.b16 %v645
        %v774 = vunpack.c.l.b16 %v646
        %v775 = vunpack.c.l.b16 %v647
        %v776 = vunpack.c.l.b16 %v648
        %v777 = vunpack.c.l.b16 %v649
        %v778 = vunpack.c.l.b16 %v650
        %v779 = vunpack.c.l.b16 %v651
        %v780 = vunpack.c.l.b16 %v652
        %v781 = vunpack.c.l.b16 %v653
        %v782 = vunpack.c.l.b16 %v654
        %v783 = vunpack.c.l.b16 %v655
        %v784 = vunpack.c.l.b16 %v656
        %v785 = vunpack.c.l.b16 %v657
        %v786 = vunpack.c.l.b16 %v658
        %v787 = vunpack.c.l.b16 %v659
        %v788 = vunpack.c.l.b16 %v660
        %v789 = vunpack.c.l.b16 %v661
        %v790 = vunpack.c.l.b16 %v662
        %v791 = vunpack.c.l.b16 %v663
        %v792 = vunpack.c.l.b16 %v664
        %v793 = vunpack.c.l.b16 %v665
        %v794 = vunpack.c.l.b16 %v666
        %v795 = vunpack.c.l.b16 %v667
        %v796 = vunpack.c.l.b16 %v668
        %v797 = vunpack.c.l.b16 %v669
        %v798 = vunpack.c.l.b16 %v670
        %v799 = vunpack.c.l.b16 %v671
        %v800 = vunpack.c.l.b16 %v672
        %v801 = vunpack.c.l.b16 %v673
        %v802 = vunpack.c.l.b16 %v674
        %v803 = vunpack.c.l.b16 %v675
        %v804 = vunpack.c.l.b16 %v676
        %v805 = vunpack.c.l.b16 %v677
        %v806 = vunpack.c.l.b16 %v678
        %v807 = vpack.c.b16 %v744, %v743
        %v808 = vpack.c.b16 %v746, %v745
        %v809 = vpack.c.b16 %v748, %v747
        %v810 = vpack.c.b16 %v750, %v749
        %v811 = vpack.c.b16 %v752, %v751
        %v812 = vpack.c.b16 %v754, %v753
        %v813 = vpack.c.b16 %v756, %v755
        %v814 = vpack.c.b16 %v758, %v757
        %v815 = vpack.c.b16 %v760, %v759
        %v816 = vpack.c.b16 %v762, %v761
        %v817 = vpack.c.b16 %v764, %v763
        %v818 = vpack.c.b16 %v766, %v765
        %v819 = vpack.c.b16 %v768, %v767
        %v820 = vpack.c.b16 %v770, %v769
        %v821 = vpack.c.b16 %v772, %v771
        %v822 = vpack.c.b16 %v774, %v773
        %v823 = vpack.c.b16 %v776, %v775
        %v824 = vpack.c.b16 %v778, %v777
        %v825 = vpack.c.b16 %v780, %v779
        %v826 = vpack.c.b16 %v782, %v781
        %v827 = vpack.c.b16 %v784, %v783
        %v828 = vpack.c.b16 %v786, %v785
        %v829 = vpack.c.b16 %v788, %v787
        %v830 = vpack.c.b16 %v790, %v789
        %v831 = vpack.c.b16 %v792, %v791
        %v832 = vpack.c.b16 %v794, %v793
        %v833 = vpack.c.b16 %v796, %v795
        %v834 = vpack.c.b16 %v798, %v797
        %v835 = vpack.c.b16 %v800, %v799
        %v836 = vpack.c.b16 %v802, %v801
        %v837 = vpack.c.b16 %v804, %v803
        %v838 = vpack.c.b16 %v806, %v805
        %871 = vmatprep.subr.bf16.mxu0 0
        %872 = vmatpush1.bf16.msra.mxu0 %v807
        %873 = vmatprep.subr.bf16.mxu0 0
        %874 = vmatpush1.bf16.msra.mxu0 %v808
        %875 = vmatprep.subr.bf16.mxu0 0
        %876 = vmatpush1.bf16.msra.mxu0 %v809
        %877 = vmatprep.subr.bf16.mxu0 0
        %878 = vmatpush1.bf16.msra.mxu0 %v810
        %879 = vmatprep.subr.bf16.mxu0 0
        %880 = vmatpush1.bf16.msra.mxu0 %v811
        %881 = vmatprep.subr.bf16.mxu0 0
        %882 = vmatpush1.bf16.msra.mxu0 %v812
        %883 = vmatprep.subr.bf16.mxu0 0
        %884 = vmatpush1.bf16.msra.mxu0 %v813
        %885 = vmatprep.subr.bf16.mxu0 0
        %886 = vmatpush1.bf16.msra.mxu0 %v814
        %887 = vmatprep.subr.bf16.mxu0 0
        %888 = vmatpush1.bf16.msra.mxu0 %v815
        %889 = vmatprep.subr.bf16.mxu0 0
        %890 = vmatpush1.bf16.msra.mxu0 %v816
        %891 = vmatprep.subr.bf16.mxu0 0
        %892 = vmatpush1.bf16.msra.mxu0 %v817
        %893 = vmatprep.subr.bf16.mxu0 0
        %894 = vmatpush1.bf16.msra.mxu0 %v818
        %895 = vmatprep.subr.bf16.mxu0 0
        %896 = vmatpush1.bf16.msra.mxu0 %v819
        %897 = vmatprep.subr.bf16.mxu0 0
        %898 = vmatpush1.bf16.msra.mxu0 %v820
        %899 = vmatprep.subr.bf16.mxu0 0
        %900 = vmatpush1.bf16.msra.mxu0 %v821
        %901 = vmatprep.subr.bf16.mxu0 0
        %902 = vmatpush1.bf16.msra.mxu0 %v822
        %903 = vmatprep.mubr.bf16.mxu0 %v552
        %904 = vmatmul.mubr.bf16.gmra.mrb[0].mxu0 %v551
        %v905 = vpop.f32.mrb[0].mxu0
        %v906 = vadd.f32 0.0, %v905
        %v907 = vpop.f32.mrb[0].mxu0
        %v908 = vpop.f32.mrb[0].mxu0
        %v909 = vadd.f32 0.0, %v908
        %v910 = vpop.f32.mrb[0].mxu0
        %911 = vmatprep.mubr.bf16.mxu0 %v556
        %912 = vmatmul.mubr.bf16.gmra.mrb[0].mxu0 %v555
        %v913 = vpop.f32.mrb[0].mxu0
        %v914 = vadd.f32 0.0, %v913
        %v915 = vpop.f32.mrb[0].mxu0
        %v916 = vpop.f32.mrb[0].mxu0
        %v917 = vadd.f32 0.0, %v916
        %v918 = vpop.f32.mrb[0].mxu0
        %919 = vmatprep.mubr.bf16.mxu0 %v560
        %920 = vmatmul.mubr.bf16.gmra.mrb[0].mxu0 %v559
        %v921 = vpop.f32.mrb[0].mxu0
        %v922 = vadd.f32 0.0, %v921
        %v923 = vpop.f32.mrb[0].mxu0
        %v924 = vpop.f32.mrb[0].mxu0
        %v925 = vadd.f32 0.0, %v924
        %v926 = vpop.f32.mrb[0].mxu0
        %927 = vmatprep.mubr.bf16.mxu0 %v564
        %928 = vmatmul.mubr.bf16.gmra.mrb[0].mxu0 %v563
        %v929 = vpop.f32.mrb[0].mxu0
        %v930 = vadd.f32 0.0, %v929
        %v931 = vpop.f32.mrb[0].mxu0
        %v932 = vpop.f32.mrb[0].mxu0
        %v933 = vadd.f32 0.0, %v932
        %v934 = vpop.f32.mrb[0].mxu0
        %935 = vmatprep.mubr.bf16.mxu0 %v568
        %936 = vmatmul.mubr.bf16.gmra.mrb[0].mxu0 %v567
        %v937 = vpop.f32.mrb[0].mxu0
        %v938 = vadd.f32 0.0, %v937
        %v939 = vpop.f32.mrb[0].mxu0
        %v940 = vpop.f32.mrb[0].mxu0
        %v941 = vadd.f32 0.0, %v940
        %v942 = vpop.f32.mrb[0].mxu0
        %943 = vmatprep.mubr.bf16.mxu0 %v572
        %944 = vmatmul.mubr.bf16.gmra.mrb[0].mxu0 %v571
        %v945 = vpop.f32.mrb[0].mxu0
        %v946 = vadd.f32 0.0, %v945
        %v947 = vpop.f32.mrb[0].mxu0
        %v948 = vpop.f32.mrb[0].mxu0
        %v949 = vadd.f32 0.0, %v948
        %v950 = vpop.f32.mrb[0].mxu0
        %951 = vmatprep.mubr.bf16.mxu0 %v576
        %952 = vmatmul.mubr.bf16.gmra.mrb[0].mxu0 %v575
        %v953 = vpop.f32.mrb[0].mxu0
        %v954 = vadd.f32 0.0, %v953
        %v955 = vpop.f32.mrb[0].mxu0
        %v956 = vpop.f32.mrb[0].mxu0
        %v957 = vadd.f32 0.0, %v956
        %v958 = vpop.f32.mrb[0].mxu0
        %959 = vmatprep.mubr.bf16.mxu0 %v580
        %960 = vmatmul.mubr.bf16.gmra.mrb[0].mxu0 %v579
        %v961 = vpop.f32.mrb[0].mxu0
        %v962 = vadd.f32 0.0, %v961
        %v963 = vpop.f32.mrb[0].mxu0
        %v964 = vpop.f32.mrb[0].mxu0
        %v965 = vadd.f32 0.0, %v964
        %v966 = vpop.f32.mrb[0].mxu0
        %967 = vmatprep.mubr.bf16.mxu0 %v584
        %968 = vmatmul.mubr.bf16.gmra.mrb[0].mxu0 %v583
        %v969 = vpop.f32.mrb[0].mxu0
        %v970 = vadd.f32 0.0, %v969
        %v971 = vpop.f32.mrb[0].mxu0
        %v972 = vpop.f32.mrb[0].mxu0
        %v973 = vadd.f32 0.0, %v972
        %v974 = vpop.f32.mrb[0].mxu0
        %975 = vmatprep.mubr.bf16.mxu0 %v588
        %976 = vmatmul.mubr.bf16.gmra.mrb[0].mxu0 %v587
        %v977 = vpop.f32.mrb[0].mxu0
        %v978 = vadd.f32 0.0, %v977
        %v979 = vpop.f32.mrb[0].mxu0
        %v980 = vpop.f32.mrb[0].mxu0
        %v981 = vadd.f32 0.0, %v980
        %v982 = vpop.f32.mrb[0].mxu0
        %983 = vmatprep.mubr.bf16.mxu0 %v592
        %984 = vmatmul.mubr.bf16.gmra.mrb[0].mxu0 %v591
        %v985 = vpop.f32.mrb[0].mxu0
        %v986 = vadd.f32 0.0, %v985
        %v987 = vpop.f32.mrb[0].mxu0
        %v988 = vpop.f32.mrb[0].mxu0
        %v989 = vadd.f32 0.0, %v988
        %v990 = vpop.f32.mrb[0].mxu0
        %991 = vmatprep.mubr.bf16.mxu0 %v596
        %992 = vmatmul.mubr.bf16.gmra.mrb[0].mxu0 %v595
        %v993 = vpop.f32.mrb[0].mxu0
        %v994 = vadd.f32 0.0, %v993
        %v995 = vpop.f32.mrb[0].mxu0
        %v996 = vpop.f32.mrb[0].mxu0
        %v997 = vadd.f32 0.0, %v996
        %v998 = vpop.f32.mrb[0].mxu0
        %999 = vmatprep.mubr.bf16.mxu0 %v600
        %1000 = vmatmul.mubr.bf16.gmra.mrb[0].mxu0 %v599
        %v1001 = vpop.f32.mrb[0].mxu0
        %v1002 = vadd.f32 0.0, %v1001
        %v1003 = vpop.f32.mrb[0].mxu0
        %v1004 = vpop.f32.mrb[0].mxu0
        %v1005 = vadd.f32 0.0, %v1004
        %v1006 = vpop.f32.mrb[0].mxu0
        %1007 = vmatprep.mubr.bf16.mxu0 %v604
        %1008 = vmatmul.mubr.bf16.gmra.mrb[0].mxu0 %v603
        %v1009 = vpop.f32.mrb[0].mxu0
        %v1010 = vadd.f32 0.0, %v1009
        %v1011 = vpop.f32.mrb[0].mxu0
        %v1012 = vpop.f32.mrb[0].mxu0
        %v1013 = vadd.f32 0.0, %v1012
        %v1014 = vpop.f32.mrb[0].mxu0
        %1015 = vmatprep.mubr.bf16.mxu0 %v608
        %1016 = vmatmul.mubr.bf16.gmra.mrb[0].mxu0 %v607
        %v1017 = vpop.f32.mrb[0].mxu0
        %v1018 = vadd.f32 0.0, %v1017
        %v1019 = vpop.f32.mrb[0].mxu0
        %v1020 = vpop.f32.mrb[0].mxu0
        %v1021 = vadd.f32 0.0, %v1020
        %v1022 = vpop.f32.mrb[0].mxu0
        %1023 = vmatprep.mubr.bf16.mxu0 %v612
        %1024 = vmatmul.mubr.bf16.gmra.mrb[0].mxu0 %v611
        %v1025 = vpop.f32.mrb[0].mxu0
        %v1026 = vadd.f32 0.0, %v1025
        %v1027 = vpop.f32.mrb[0].mxu0
        %v1028 = vpop.f32.mrb[0].mxu0
        %v1029 = vadd.f32 0.0, %v1028
        %v1030 = vpop.f32.mrb[0].mxu0
        %1031 = vdwg.mxu0
        %1032 = vmatprep.subr.bf16.mxu0 0
        %1033 = vmatpush1.bf16.msra.mxu0 %v823
        %1034 = vmatprep.subr.bf16.mxu0 0
        %1035 = vmatpush1.bf16.msra.mxu0 %v824
        %1036 = vmatprep.subr.bf16.mxu0 0
        %1037 = vmatpush1.bf16.msra.mxu0 %v825
        %1038 = vmatprep.subr.bf16.mxu0 0
        %1039 = vmatpush1.bf16.msra.mxu0 %v826
        %1040 = vmatprep.subr.bf16.mxu0 0
        %1041 = vmatpush1.bf16.msra.mxu0 %v827
        %1042 = vmatprep.subr.bf16.mxu0 0
        %1043 = vmatpush1.bf16.msra.mxu0 %v828
        %1044 = vmatprep.subr.bf16.mxu0 0
        %1045 = vmatpush1.bf16.msra.mxu0 %v829
        %1046 = vmatprep.subr.bf16.mxu0 0
        %1047 = vmatpush1.bf16.msra.mxu0 %v830
        %1048 = vmatprep.subr.bf16.mxu0 0
        %1049 = vmatpush1.bf16.msra.mxu0 %v831
        %1050 = vmatprep.subr.bf16.mxu0 0
        %1051 = vmatpush1.bf16.msra.mxu0 %v832
        %1052 = vmatprep.subr.bf16.mxu0 0
        %1053 = vmatpush1.bf16.msra.mxu0 %v833
        %1054 = vmatprep.subr.bf16.mxu0 0
        %1055 = vmatpush1.bf16.msra.mxu0 %v834
        %1056 = vmatprep.subr.bf16.mxu0 0
        %1057 = vmatpush1.bf16.msra.mxu0 %v835
        %1058 = vmatprep.subr.bf16.mxu0 0
        %1059 = vmatpush1.bf16.msra.mxu0 %v836
        %1060 = vmatprep.subr.bf16.mxu0 0
        %1061 = vmatpush1.bf16.msra.mxu0 %v837
        %1062 = vmatprep.subr.bf16.mxu0 0
        %1063 = vmatpush1.bf16.msra.mxu0 %v838
        %1064 = vmatprep.mubr.bf16.mxu0 %v554
        %1065 = vmatmul.mubr.bf16.gmra.mrb[0].mxu0 %v553
        %v1066 = vpop.f32.mrb[0].mxu0
        %v1067 = vadd.f32 %v906, %v1066
        %v1068 = vpop.f32.mrb[0].mxu0
        %v1069 = vpop.f32.mrb[0].mxu0
        %v1070 = vadd.f32 %v909, %v1069
        %v1071 = vpop.f32.mrb[0].mxu0
        %1072 = vmatprep.mubr.bf16.mxu0 %v558
        %1073 = vmatmul.mubr.bf16.gmra.mrb[0].mxu0 %v557
        %v1074 = vpop.f32.mrb[0].mxu0
        %v1075 = vadd.f32 %v914, %v1074
        %v1076 = vpop.f32.mrb[0].mxu0
        %v1077 = vpop.f32.mrb[0].mxu0
        %v1078 = vadd.f32 %v917, %v1077
        %v1079 = vpop.f32.mrb[0].mxu0
        %1080 = vmatprep.mubr.bf16.mxu0 %v562
        %1081 = vmatmul.mubr.bf16.gmra.mrb[0].mxu0 %v561
        %v1082 = vpop.f32.mrb[0].mxu0
        %v1083 = vadd.f32 %v922, %v1082
        %v1084 = vpop.f32.mrb[0].mxu0
        %v1085 = vpop.f32.mrb[0].mxu0
        %v1086 = vadd.f32 %v925, %v1085
        %v1087 = vpop.f32.mrb[0].mxu0
        %1088 = vmatprep.mubr.bf16.mxu0 %v566
        %1089 = vmatmul.mubr.bf16.gmra.mrb[0].mxu0 %v565
        %v1090 = vpop.f32.mrb[0].mxu0
        %v1091 = vadd.f32 %v930, %v1090
        %v1092 = vpop.f32.mrb[0].mxu0
        %v1093 = vpop.f32.mrb[0].mxu0
        %v1094 = vadd.f32 %v933, %v1093
        %v1095 = vpop.f32.mrb[0].mxu0
        %1096 = vmatprep.mubr.bf16.mxu0 %v570
        %1097 = vmatmul.mubr.bf16.gmra.mrb[0].mxu0 %v569
        %v1098 = vpop.f32.mrb[0].mxu0
        %v1099 = vadd.f32 %v938, %v1098
        %v1100 = vpop.f32.mrb[0].mxu0
        %v1101 = vpop.f32.mrb[0].mxu0
        %v1102 = vadd.f32 %v941, %v1101
        %v1103 = vpop.f32.mrb[0].mxu0
        %1104 = vmatprep.mubr.bf16.mxu0 %v574
        %1105 = vmatmul.mubr.bf16.gmra.mrb[0].mxu0 %v573
        %v1106 = vpop.f32.mrb[0].mxu0
        %v1107 = vadd.f32 %v946, %v1106
        %v1108 = vpop.f32.mrb[0].mxu0
        %v1109 = vpop.f32.mrb[0].mxu0
        %v1110 = vadd.f32 %v949, %v1109
        %v1111 = vpop.f32.mrb[0].mxu0
        %1112 = vmatprep.mubr.bf16.mxu0 %v578
        %1113 = vmatmul.mubr.bf16.gmra.mrb[0].mxu0 %v577
        %v1114 = vpop.f32.mrb[0].mxu0
        %v1115 = vadd.f32 %v954, %v1114
        %v1116 = vpop.f32.mrb[0].mxu0
        %v1117 = vpop.f32.mrb[0].mxu0
        %v1118 = vadd.f32 %v957, %v1117
        %v1119 = vpop.f32.mrb[0].mxu0
        %1120 = vmatprep.mubr.bf16.mxu0 %v582
        %1121 = vmatmul.mubr.bf16.gmra.mrb[0].mxu0 %v581
        %v1122 = vpop.f32.mrb[0].mxu0
        %v1123 = vadd.f32 %v962, %v1122
        %v1124 = vpop.f32.mrb[0].mxu0
        %v1125 = vpop.f32.mrb[0].mxu0
        %v1126 = vadd.f32 %v965, %v1125
        %v1127 = vpop.f32.mrb[0].mxu0
        %1128 = vmatprep.mubr.bf16.mxu0 %v586
        %1129 = vmatmul.mubr.bf16.gmra.mrb[0].mxu0 %v585
        %v1130 = vpop.f32.mrb[0].mxu0
        %v1131 = vadd.f32 %v970, %v1130
        %v1132 = vpop.f32.mrb[0].mxu0
        %v1133 = vpop.f32.mrb[0].mxu0
        %v1134 = vadd.f32 %v973, %v1133
        %v1135 = vpop.f32.mrb[0].mxu0
        %1136 = vmatprep.mubr.bf16.mxu0 %v590
        %1137 = vmatmul.mubr.bf16.gmra.mrb[0].mxu0 %v589
        %v1138 = vpop.f32.mrb[0].mxu0
        %v1139 = vadd.f32 %v978, %v1138
        %v1140 = vpop.f32.mrb[0].mxu0
        %v1141 = vpop.f32.mrb[0].mxu0
        %v1142 = vadd.f32 %v981, %v1141
        %v1143 = vpop.f32.mrb[0].mxu0
        %1144 = vmatprep.mubr.bf16.mxu0 %v594
        %1145 = vmatmul.mubr.bf16.gmra.mrb[0].mxu0 %v593
        %v1146 = vpop.f32.mrb[0].mxu0
        %v1147 = vadd.f32 %v986, %v1146
        %v1148 = vpop.f32.mrb[0].mxu0
        %v1149 = vpop.f32.mrb[0].mxu0
        %v1150 = vadd.f32 %v989, %v1149
        %v1151 = vpop.f32.mrb[0].mxu0
        %1152 = vmatprep.mubr.bf16.mxu0 %v598
        %1153 = vmatmul.mubr.bf16.gmra.mrb[0].mxu0 %v597
        %v1154 = vpop.f32.mrb[0].mxu0
        %v1155 = vadd.f32 %v994, %v1154
        %v1156 = vpop.f32.mrb[0].mxu0
        %v1157 = vpop.f32.mrb[0].mxu0
        %v1158 = vadd.f32 %v997, %v1157
        %v1159 = vpop.f32.mrb[0].mxu0
        %1160 = vmatprep.mubr.bf16.mxu0 %v602
        %1161 = vmatmul.mubr.bf16.gmra.mrb[0].mxu0 %v601
        %v1162 = vpop.f32.mrb[0].mxu0
        %v1163 = vadd.f32 %v1002, %v1162
        %v1164 = vpop.f32.mrb[0].mxu0
        %v1165 = vpop.f32.mrb[0].mxu0
        %v1166 = vadd.f32 %v1005, %v1165
        %v1167 = vpop.f32.mrb[0].mxu0
        %1168 = vmatprep.mubr.bf16.mxu0 %v606
        %1169 = vmatmul.mubr.bf16.gmra.mrb[0].mxu0 %v605
        %v1170 = vpop.f32.mrb[0].mxu0
        %v1171 = vadd.f32 %v1010, %v1170
        %v1172 = vpop.f32.mrb[0].mxu0
        %v1173 = vpop.f32.mrb[0].mxu0
        %v1174 = vadd.f32 %v1013, %v1173
        %v1175 = vpop.f32.mrb[0].mxu0
        %1176 = vmatprep.mubr.bf16.mxu0 %v610
        %1177 = vmatmul.mubr.bf16.gmra.mrb[0].mxu0 %v609
        %v1178 = vpop.f32.mrb[0].mxu0
        %v1179 = vadd.f32 %v1018, %v1178
        %v1180 = vpop.f32.mrb[0].mxu0
        %v1181 = vpop.f32.mrb[0].mxu0
        %v1182 = vadd.f32 %v1021, %v1181
        %v1183 = vpop.f32.mrb[0].mxu0
        %1184 = vmatprep.mubr.bf16.mxu0 %v614
        %1185 = vmatmul.mubr.bf16.gmra.mrb[0].mxu0 %v613
        %v1186 = vpop.f32.mrb[0].mxu0
        %v1187 = vadd.f32 %v1026, %v1186
        %v1188 = vpop.f32.mrb[0].mxu0
        %v1189 = vpop.f32.mrb[0].mxu0
        %v1190 = vadd.f32 %v1029, %v1189
        %v1191 = vpop.f32.mrb[0].mxu0
        %1192 = vdwg.mxu0
        %v1193 = vld [vmem:[%s4] sm:$0x1]
        %v1195 = vlaneseq
        %v1196 = vshrl.u32 %v1195, 7
        %v1197 = vsub.s32 0, %v1196
        %v1198 = vrot.slane %v1193, %v1197
        %v1200 = vmul.f32 %v1067, %v1198
        %v1201 = vmul.f32 %v1070, %v1198
        %v1202 = vmul.f32 %v1075, %v1198
        %v1203 = vmul.f32 %v1078, %v1198
        %v1204 = vmul.f32 %v1083, %v1198
        %v1205 = vmul.f32 %v1086, %v1198
        %v1206 = vmul.f32 %v1091, %v1198
        %v1207 = vmul.f32 %v1094, %v1198
        %v1208 = vmul.f32 %v1099, %v1198
        %v1209 = vmul.f32 %v1102, %v1198
        %v1210 = vmul.f32 %v1107, %v1198
        %v1211 = vmul.f32 %v1110, %v1198
        %v1212 = vmul.f32 %v1115, %v1198
        %v1213 = vmul.f32 %v1118, %v1198
        %v1214 = vmul.f32 %v1123, %v1198
        %v1215 = vmul.f32 %v1126, %v1198
        %v1216 = vmul.f32 %v1131, %v1198
        %v1217 = vmul.f32 %v1134, %v1198
        %v1218 = vmul.f32 %v1139, %v1198
        %v1219 = vmul.f32 %v1142, %v1198
        %v1220 = vmul.f32 %v1147, %v1198
        %v1221 = vmul.f32 %v1150, %v1198
        %v1222 = vmul.f32 %v1155, %v1198
        %v1223 = vmul.f32 %v1158, %v1198
        %v1224 = vmul.f32 %v1163, %v1198
        %v1225 = vmul.f32 %v1166, %v1198
        %v1226 = vmul.f32 %v1171, %v1198
        %v1227 = vmul.f32 %v1174, %v1198
        %v1228 = vmul.f32 %v1179, %v1198
        %v1229 = vmul.f32 %v1182, %v1198
        %v1230 = vmul.f32 %v1187, %v1198
        %v1231 = vmul.f32 %v1190, %v1198
        %v1232 = vld [vmem:[%s5] sm:$0x1]
        %v1234 = vlaneseq
        %v1235 = vshrl.u32 %v1234, 7
        %v1236 = vsub.s32 0, %v1235
        %v1237 = vrot.slane %v1232, %v1236
        %v1239 = vadd.f32 %v1200, %v1237
        %v1240 = vadd.f32 %v1201, %v1237
        %v1241 = vadd.f32 %v1202, %v1237
        %v1242 = vadd.f32 %v1203, %v1237
        %v1243 = vadd.f32 %v1204, %v1237
        %v1244 = vadd.f32 %v1205, %v1237
        %v1245 = vadd.f32 %v1206, %v1237
        %v1246 = vadd.f32 %v1207, %v1237
        %v1247 = vadd.f32 %v1208, %v1237
        %v1248 = vadd.f32 %v1209, %v1237
        %v1249 = vadd.f32 %v1210, %v1237
        %v1250 = vadd.f32 %v1211, %v1237
        %v1251 = vadd.f32 %v1212, %v1237
        %v1252 = vadd.f32 %v1213, %v1237
        %v1253 = vadd.f32 %v1214, %v1237
        %v1254 = vadd.f32 %v1215, %v1237
        %v1255 = vadd.f32 %v1216, %v1237
        %v1256 = vadd.f32 %v1217, %v1237
        %v1257 = vadd.f32 %v1218, %v1237
        %v1258 = vadd.f32 %v1219, %v1237
        %v1259 = vadd.f32 %v1220, %v1237
        %v1260 = vadd.f32 %v1221, %v1237
        %v1261 = vadd.f32 %v1222, %v1237
        %v1262 = vadd.f32 %v1223, %v1237
        %v1263 = vadd.f32 %v1224, %v1237
        %v1264 = vadd.f32 %v1225, %v1237
        %v1265 = vadd.f32 %v1226, %v1237
        %v1266 = vadd.f32 %v1227, %v1237
        %v1267 = vadd.f32 %v1228, %v1237
        %v1268 = vadd.f32 %v1229, %v1237
        %v1269 = vadd.f32 %v1230, %v1237
        %v1270 = vadd.f32 %v1231, %v1237
        %v1271 = vmax.f32 %v1239, 0.0
        %v1272 = vmax.f32 %v1240, 0.0
        %v1273 = vmax.f32 %v1241, 0.0
        %v1274 = vmax.f32 %v1242, 0.0
        %v1275 = vmax.f32 %v1243, 0.0
        %v1276 = vmax.f32 %v1244, 0.0
        %v1277 = vmax.f32 %v1245, 0.0
        %v1278 = vmax.f32 %v1246, 0.0
        %v1279 = vmax.f32 %v1247, 0.0
        %v1280 = vmax.f32 %v1248, 0.0
        %v1281 = vmax.f32 %v1249, 0.0
        %v1282 = vmax.f32 %v1250, 0.0
        %v1283 = vmax.f32 %v1251, 0.0
        %v1284 = vmax.f32 %v1252, 0.0
        %v1285 = vmax.f32 %v1253, 0.0
        %v1286 = vmax.f32 %v1254, 0.0
        %v1287 = vmax.f32 %v1255, 0.0
        %v1288 = vmax.f32 %v1256, 0.0
        %v1289 = vmax.f32 %v1257, 0.0
        %v1290 = vmax.f32 %v1258, 0.0
        %v1291 = vmax.f32 %v1259, 0.0
        %v1292 = vmax.f32 %v1260, 0.0
        %v1293 = vmax.f32 %v1261, 0.0
        %v1294 = vmax.f32 %v1262, 0.0
        %v1295 = vmax.f32 %v1263, 0.0
        %v1296 = vmax.f32 %v1264, 0.0
        %v1297 = vmax.f32 %v1265, 0.0
        %v1298 = vmax.f32 %v1266, 0.0
        %v1299 = vmax.f32 %v1267, 0.0
        %v1300 = vmax.f32 %v1268, 0.0
        %v1301 = vmax.f32 %v1269, 0.0
        %v1302 = vmax.f32 %v1270, 0.0
        %1303 = vst [vmem:[#allocation2] sm:$0xff] 0.0
        %1304 = vst [vmem:[#allocation2 + $0x8] sm:$0xff] 0.0
        %1305 = vst [vmem:[#allocation2 + $0x10] sm:$0xff] 0.0
        %1306 = vst [vmem:[#allocation2 + $0x118] sm:$0xff] 0.0
        %1307 = vst [vmem:[#allocation2 + $0x120] sm:$0xff] 0.0
        %1308 = vst [vmem:[#allocation2 + $0x128] sm:$0xff] 0.0
        %1309 = vst [vmem:[#allocation2 + $0x18] sm:$0xff] %v1271
        %1310 = vst [vmem:[#allocation2 + $0x20] sm:$0xff] %v1272
        %1311 = vst [vmem:[#allocation2 + $0x28] sm:$0xff] %v1273
        %1312 = vst [vmem:[#allocation2 + $0x30] sm:$0xff] %v1274
        %1313 = vst [vmem:[#allocation2 + $0x38] sm:$0xff] %v1275
        %1314 = vst [vmem:[#allocation2 + $0x40] sm:$0xff] %v1276
        %1315 = vst [vmem:[#allocation2 + $0x48] sm:$0xff] %v1277
        %1316 = vst [vmem:[#allocation2 + $0x50] sm:$0xff] %v1278
        %1317 = vst [vmem:[#allocation2 + $0x58] sm:$0xff] %v1279
        %1318 = vst [vmem:[#allocation2 + $0x60] sm:$0xff] %v1280
        %1319 = vst [vmem:[#allocation2 + $0x68] sm:$0xff] %v1281
        %1320 = vst [vmem:[#allocation2 + $0x70] sm:$0xff] %v1282
        %1321 = vst [vmem:[#allocation2 + $0x78] sm:$0xff] %v1283
        %1322 = vst [vmem:[#allocation2 + $0x80] sm:$0xff] %v1284
        %1323 = vst [vmem:[#allocation2 + $0x88] sm:$0xff] %v1285
        %1324 = vst [vmem:[#allocation2 + $0x90] sm:$0xff] %v1286
        %1325 = vst [vmem:[#allocation2 + $0x98] sm:$0xff] %v1287
        %1326 = vst [vmem:[#allocation2 + $0xa0] sm:$0xff] %v1288
        %1327 = vst [vmem:[#allocation2 + $0xa8] sm:$0xff] %v1289
        %1328 = vst [vmem:[#allocation2 + $0xb0] sm:$0xff] %v1290
        %1329 = vst [vmem:[#allocation2 + $0xb8] sm:$0xff] %v1291
        %1330 = vst [vmem:[#allocation2 + $0xc0] sm:$0xff] %v1292
        %1331 = vst [vmem:[#allocation2 + $0xc8] sm:$0xff] %v1293
        %1332 = vst [vmem:[#allocation2 + $0xd0] sm:$0xff] %v1294
        %1333 = vst [vmem:[#allocation2 + $0xd8] sm:$0xff] %v1295
        %1334 = vst [vmem:[#allocation2 + $0xe0] sm:$0xff] %v1296
        %1335 = vst [vmem:[#allocation2 + $0xe8] sm:$0xff] %v1297
        %1336 = vst [vmem:[#allocation2 + $0xf0] sm:$0xff] %v1298
        %1337 = vst [vmem:[#allocation2 + $0xf8] sm:$0xff] %v1299
        %1338 = vst [vmem:[#allocation2 + $0x100] sm:$0xff] %v1300
        %1339 = vst [vmem:[#allocation2 + $0x108] sm:$0xff] %v1301
        %1340 = vst [vmem:[#allocation2 + $0x110] sm:$0xff] %v1302
        %v1341 = vlaneseq
        %v1342 = vshrl.u32 %v1341, 7
        %v1343 = vadd.s32 %v1342, 8
        %v1344 = vadd.s32 %v1342, 16
        %v1345 = vadd.s32 %v1342, 24
        %v1346 = vadd.s32 %v1342, 32
        %v1347 = vadd.s32 %v1342, 40
        %v1348 = vadd.s32 %v1342, 48
        %v1349 = vadd.s32 %v1342, 56
        %v1350 = vadd.s32 %v1342, 64
        %v1351 = vadd.s32 %v1342, 72
        %v1352 = vadd.s32 %v1342, 80
        %v1353 = vadd.s32 %v1342, 88
        %v1354 = vadd.s32 %v1342, 96
        %v1355 = vadd.s32 %v1342, 104
        %v1356 = vadd.s32 %v1342, 112
        %v1357 = vadd.s32 %v1342, 120
        %v1358 = vadd.s32 %v1342, 128
        %v1359 = vadd.s32 %v1342, 136
        %v1360 = vadd.s32 %v1342, 144
        %v1361 = vadd.s32 %v1342, 152
        %v1362 = vadd.s32 %v1342, 160
        %v1363 = vadd.s32 %v1342, 168
        %v1364 = vadd.s32 %v1342, 176
        %v1365 = vadd.s32 %v1342, 184
        %v1366 = vadd.s32 %v1342, 192
        %v1367 = vadd.s32 %v1342, 200
        %v1368 = vadd.s32 %v1342, 208
        %v1369 = vadd.s32 %v1342, 216
        %v1370 = vadd.s32 %v1342, 224
        %v1371 = vadd.s32 %v1342, 232
        %v1372 = vadd.s32 %v1342, 240
        %v1373 = vadd.s32 %v1342, 248
        %v1374 = vcvt.s32.f32 %v1342
        %v1375 = vcvt.s32.f32 %v1343
        %v1376 = vcvt.s32.f32 %v1344
        %v1377 = vcvt.s32.f32 %v1345
        %v1378 = vcvt.s32.f32 %v1346
        %v1379 = vcvt.s32.f32 %v1347
        %v1380 = vcvt.s32.f32 %v1348
        %v1381 = vcvt.s32.f32 %v1349
        %v1382 = vcvt.s32.f32 %v1350
        %v1383 = vcvt.s32.f32 %v1351
        %v1384 = vcvt.s32.f32 %v1352
        %v1385 = vcvt.s32.f32 %v1353
        %v1386 = vcvt.s32.f32 %v1354
        %v1387 = vcvt.s32.f32 %v1355
        %v1388 = vcvt.s32.f32 %v1356
        %v1389 = vcvt.s32.f32 %v1357
        %v1390 = vcvt.s32.f32 %v1358
        %v1391 = vcvt.s32.f32 %v1359
        %v1392 = vcvt.s32.f32 %v1360
        %v1393 = vcvt.s32.f32 %v1361
        %v1394 = vcvt.s32.f32 %v1362
        %v1395 = vcvt.s32.f32 %v1363
        %v1396 = vcvt.s32.f32 %v1364
        %v1397 = vcvt.s32.f32 %v1365
        %v1398 = vcvt.s32.f32 %v1366
        %v1399 = vcvt.s32.f32 %v1367
        %v1400 = vcvt.s32.f32 %v1368
        %v1401 = vcvt.s32.f32 %v1369
        %v1402 = vcvt.s32.f32 %v1370
        %v1403 = vcvt.s32.f32 %v1371
        %v1404 = vcvt.s32.f32 %v1372
        %v1405 = vcvt.s32.f32 %v1373
        %v1406 = vadd.f32 %v1374, 0.5
        %v1407 = vadd.f32 %v1375, 0.5
        %v1408 = vadd.f32 %v1376, 0.5
        %v1409 = vadd.f32 %v1377, 0.5
        %v1410 = vadd.f32 %v1378, 0.5
        %v1411 = vadd.f32 %v1379, 0.5
        %v1412 = vadd.f32 %v1380, 0.5
        %v1413 = vadd.f32 %v1381, 0.5
        %v1414 = vadd.f32 %v1382, 0.5
        %v1415 = vadd.f32 %v1383, 0.5
        %v1416 = vadd.f32 %v1384, 0.5
        %v1417 = vadd.f32 %v1385, 0.5
        %v1418 = vadd.f32 %v1386, 0.5
        %v1419 = vadd.f32 %v1387, 0.5
        %v1420 = vadd.f32 %v1388, 0.5
        %v1421 = vadd.f32 %v1389, 0.5
        %v1422 = vadd.f32 %v1390, 0.5
        %v1423 = vadd.f32 %v1391, 0.5
        %v1424 = vadd.f32 %v1392, 0.5
        %v1425 = vadd.f32 %v1393, 0.5
        %v1426 = vadd.f32 %v1394, 0.5
        %v1427 = vadd.f32 %v1395, 0.5
        %v1428 = vadd.f32 %v1396, 0.5
        %v1429 = vadd.f32 %v1397, 0.5
        %v1430 = vadd.f32 %v1398, 0.5
        %v1431 = vadd.f32 %v1399, 0.5
        %v1432 = vadd.f32 %v1400, 0.5
        %v1433 = vadd.f32 %v1401, 0.5
        %v1434 = vadd.f32 %v1402, 0.5
        %v1435 = vadd.f32 %v1403, 0.5
        %v1436 = vadd.f32 %v1404, 0.5
        %v1437 = vadd.f32 %v1405, 0.5
        %v1438 = vmul.f32 %v1406, 0.0625
        %v1439 = vmul.f32 %v1407, 0.0625
        %v1440 = vmul.f32 %v1408, 0.0625
        %v1441 = vmul.f32 %v1409, 0.0625
        %v1442 = vmul.f32 %v1410, 0.0625
        %v1443 = vmul.f32 %v1411, 0.0625
        %v1444 = vmul.f32 %v1412, 0.0625
        %v1445 = vmul.f32 %v1413, 0.0625
        %v1446 = vmul.f32 %v1414, 0.0625
        %v1447 = vmul.f32 %v1415, 0.0625
        %v1448 = vmul.f32 %v1416, 0.0625
        %v1449 = vmul.f32 %v1417, 0.0625
        %v1450 = vmul.f32 %v1418, 0.0625
        %v1451 = vmul.f32 %v1419, 0.0625
        %v1452 = vmul.f32 %v1420, 0.0625
        %v1453 = vmul.f32 %v1421, 0.0625
        %v1454 = vmul.f32 %v1422, 0.0625
        %v1455 = vmul.f32 %v1423, 0.0625
        %v1456 = vmul.f32 %v1424, 0.0625
        %v1457 = vmul.f32 %v1425, 0.0625
        %v1458 = vmul.f32 %v1426, 0.0625
        %v1459 = vmul.f32 %v1427, 0.0625
        %v1460 = vmul.f32 %v1428, 0.0625
        %v1461 = vmul.f32 %v1429, 0.0625
        %v1462 = vmul.f32 %v1430, 0.0625
        %v1463 = vmul.f32 %v1431, 0.0625
        %v1464 = vmul.f32 %v1432, 0.0625
        %v1465 = vmul.f32 %v1433, 0.0625
        %v1466 = vmul.f32 %v1434, 0.0625
        %v1467 = vmul.f32 %v1435, 0.0625
        %v1468 = vmul.f32 %v1436, 0.0625
        %v1469 = vmul.f32 %v1437, 0.0625
        %v1470 = vfloor.f32 %v1438
        %v1471 = vfloor.f32 %v1439
        %v1472 = vfloor.f32 %v1440
        %v1473 = vfloor.f32 %v1441
        %v1474 = vfloor.f32 %v1442
        %v1475 = vfloor.f32 %v1443
        %v1476 = vfloor.f32 %v1444
        %v1477 = vfloor.f32 %v1445
        %v1478 = vfloor.f32 %v1446
        %v1479 = vfloor.f32 %v1447
        %v1480 = vfloor.f32 %v1448
        %v1481 = vfloor.f32 %v1449
        %v1482 = vfloor.f32 %v1450
        %v1483 = vfloor.f32 %v1451
        %v1484 = vfloor.f32 %v1452
        %v1485 = vfloor.f32 %v1453
        %v1486 = vfloor.f32 %v1454
        %v1487 = vfloor.f32 %v1455
        %v1488 = vfloor.f32 %v1456
        %v1489 = vfloor.f32 %v1457
        %v1490 = vfloor.f32 %v1458
        %v1491 = vfloor.f32 %v1459
        %v1492 = vfloor.f32 %v1460
        %v1493 = vfloor.f32 %v1461
        %v1494 = vfloor.f32 %v1462
        %v1495 = vfloor.f32 %v1463
        %v1496 = vfloor.f32 %v1464
        %v1497 = vfloor.f32 %v1465
        %v1498 = vfloor.f32 %v1466
        %v1499 = vfloor.f32 %v1467
        %v1500 = vfloor.f32 %v1468
        %v1501 = vfloor.f32 %v1469
        %v1502 = vmul.f32 %v1470, 16.0
        %v1503 = vmul.f32 %v1471, 16.0
        %v1504 = vmul.f32 %v1472, 16.0
        %v1505 = vmul.f32 %v1473, 16.0
        %v1506 = vmul.f32 %v1474, 16.0
        %v1507 = vmul.f32 %v1475, 16.0
        %v1508 = vmul.f32 %v1476, 16.0
        %v1509 = vmul.f32 %v1477, 16.0
        %v1510 = vmul.f32 %v1478, 16.0
        %v1511 = vmul.f32 %v1479, 16.0
        %v1512 = vmul.f32 %v1480, 16.0
        %v1513 = vmul.f32 %v1481, 16.0
        %v1514 = vmul.f32 %v1482, 16.0
        %v1515 = vmul.f32 %v1483, 16.0
        %v1516 = vmul.f32 %v1484, 16.0
        %v1517 = vmul.f32 %v1485, 16.0
        %v1518 = vmul.f32 %v1486, 16.0
        %v1519 = vmul.f32 %v1487, 16.0
        %v1520 = vmul.f32 %v1488, 16.0
        %v1521 = vmul.f32 %v1489, 16.0
        %v1522 = vmul.f32 %v1490, 16.0
        %v1523 = vmul.f32 %v1491, 16.0
        %v1524 = vmul.f32 %v1492, 16.0
        %v1525 = vmul.f32 %v1493, 16.0
        %v1526 = vmul.f32 %v1494, 16.0
        %v1527 = vmul.f32 %v1495, 16.0
        %v1528 = vmul.f32 %v1496, 16.0
        %v1529 = vmul.f32 %v1497, 16.0
        %v1530 = vmul.f32 %v1498, 16.0
        %v1531 = vmul.f32 %v1499, 16.0
        %v1532 = vmul.f32 %v1500, 16.0
        %v1533 = vmul.f32 %v1501, 16.0
        %v1534 = vsub.f32 %v1374, %v1502
        %v1535 = vsub.f32 %v1375, %v1503
        %v1536 = vsub.f32 %v1376, %v1504
        %v1537 = vsub.f32 %v1377, %v1505
        %v1538 = vsub.f32 %v1378, %v1506
        %v1539 = vsub.f32 %v1379, %v1507
        %v1540 = vsub.f32 %v1380, %v1508
        %v1541 = vsub.f32 %v1381, %v1509
        %v1542 = vsub.f32 %v1382, %v1510
        %v1543 = vsub.f32 %v1383, %v1511
        %v1544 = vsub.f32 %v1384, %v1512
        %v1545 = vsub.f32 %v1385, %v1513
        %v1546 = vsub.f32 %v1386, %v1514
        %v1547 = vsub.f32 %v1387, %v1515
        %v1548 = vsub.f32 %v1388, %v1516
        %v1549 = vsub.f32 %v1389, %v1517
        %v1550 = vsub.f32 %v1390, %v1518
        %v1551 = vsub.f32 %v1391, %v1519
        %v1552 = vsub.f32 %v1392, %v1520
        %v1553 = vsub.f32 %v1393, %v1521
        %v1554 = vsub.f32 %v1394, %v1522
        %v1555 = vsub.f32 %v1395, %v1523
        %v1556 = vsub.f32 %v1396, %v1524
        %v1557 = vsub.f32 %v1397, %v1525
        %v1558 = vsub.f32 %v1398, %v1526
        %v1559 = vsub.f32 %v1399, %v1527
        %v1560 = vsub.f32 %v1400, %v1528
        %v1561 = vsub.f32 %v1401, %v1529
        %v1562 = vsub.f32 %v1402, %v1530
        %v1563 = vsub.f32 %v1403, %v1531
        %v1564 = vsub.f32 %v1404, %v1532
        %v1565 = vsub.f32 %v1405, %v1533
        %vm1566 = vcmp.ge.f32.partialorder %v1534, 0.5
        %vm1567 = vcmp.ge.f32.partialorder %v1535, 0.5
        %vm1568 = vcmp.ge.f32.partialorder %v1536, 0.5
        %vm1569 = vcmp.ge.f32.partialorder %v1537, 0.5
        %vm1570 = vcmp.ge.f32.partialorder %v1538, 0.5
        %vm1571 = vcmp.ge.f32.partialorder %v1539, 0.5
        %vm1572 = vcmp.ge.f32.partialorder %v1540, 0.5
        %vm1573 = vcmp.ge.f32.partialorder %v1541, 0.5
        %vm1574 = vcmp.ge.f32.partialorder %v1542, 0.5
        %vm1575 = vcmp.ge.f32.partialorder %v1543, 0.5
        %vm1576 = vcmp.ge.f32.partialorder %v1544, 0.5
        %vm1577 = vcmp.ge.f32.partialorder %v1545, 0.5
        %vm1578 = vcmp.ge.f32.partialorder %v1546, 0.5
        %vm1579 = vcmp.ge.f32.partialorder %v1547, 0.5
        %vm1580 = vcmp.ge.f32.partialorder %v1548, 0.5
        %vm1581 = vcmp.ge.f32.partialorder %v1549, 0.5
        %vm1582 = vcmp.ge.f32.partialorder %v1550, 0.5
        %vm1583 = vcmp.ge.f32.partialorder %v1551, 0.5
        %vm1584 = vcmp.ge.f32.partialorder %v1552, 0.5
        %vm1585 = vcmp.ge.f32.partialorder %v1553, 0.5
        %vm1586 = vcmp.ge.f32.partialorder %v1554, 0.5
        %vm1587 = vcmp.ge.f32.partialorder %v1555, 0.5
        %vm1588 = vcmp.ge.f32.partialorder %v1556, 0.5
        %vm1589 = vcmp.ge.f32.partialorder %v1557, 0.5
        %vm1590 = vcmp.ge.f32.partialorder %v1558, 0.5
        %vm1591 = vcmp.ge.f32.partialorder %v1559, 0.5
        %vm1592 = vcmp.ge.f32.partialorder %v1560, 0.5
        %vm1593 = vcmp.ge.f32.partialorder %v1561, 0.5
        %vm1594 = vcmp.ge.f32.partialorder %v1562, 0.5
        %vm1595 = vcmp.ge.f32.partialorder %v1563, 0.5
        %vm1596 = vcmp.ge.f32.partialorder %v1564, 0.5
        %vm1597 = vcmp.ge.f32.partialorder %v1565, 0.5
        %vm1598 = vcmp.le.f32.partialorder %v1534, 14.5
        %vm1599 = vcmp.le.f32.partialorder %v1535, 14.5
        %vm1600 = vcmp.le.f32.partialorder %v1536, 14.5
        %vm1601 = vcmp.le.f32.partialorder %v1537, 14.5
        %vm1602 = vcmp.le.f32.partialorder %v1538, 14.5
        %vm1603 = vcmp.le.f32.partialorder %v1539, 14.5
        %vm1604 = vcmp.le.f32.partialorder %v1540, 14.5
        %vm1605 = vcmp.le.f32.partialorder %v1541, 14.5
        %vm1606 = vcmp.le.f32.partialorder %v1542, 14.5
        %vm1607 = vcmp.le.f32.partialorder %v1543, 14.5
        %vm1608 = vcmp.le.f32.partialorder %v1544, 14.5
        %vm1609 = vcmp.le.f32.partialorder %v1545, 14.5
        %vm1610 = vcmp.le.f32.partialorder %v1546, 14.5
        %vm1611 = vcmp.le.f32.partialorder %v1547, 14.5
        %vm1612 = vcmp.le.f32.partialorder %v1548, 14.5
        %vm1613 = vcmp.le.f32.partialorder %v1549, 14.5
        %vm1614 = vcmp.le.f32.partialorder %v1550, 14.5
        %vm1615 = vcmp.le.f32.partialorder %v1551, 14.5
        %vm1616 = vcmp.le.f32.partialorder %v1552, 14.5
        %vm1617 = vcmp.le.f32.partialorder %v1553, 14.5
        %vm1618 = vcmp.le.f32.partialorder %v1554, 14.5
        %vm1619 = vcmp.le.f32.partialorder %v1555, 14.5
        %vm1620 = vcmp.le.f32.partialorder %v1556, 14.5
        %vm1621 = vcmp.le.f32.partialorder %v1557, 14.5
        %vm1622 = vcmp.le.f32.partialorder %v1558, 14.5
        %vm1623 = vcmp.le.f32.partialorder %v1559, 14.5
        %vm1624 = vcmp.le.f32.partialorder %v1560, 14.5
        %vm1625 = vcmp.le.f32.partialorder %v1561, 14.5
        %vm1626 = vcmp.le.f32.partialorder %v1562, 14.5
        %vm1627 = vcmp.le.f32.partialorder %v1563, 14.5
        %vm1628 = vcmp.le.f32.partialorder %v1564, 14.5
        %vm1629 = vcmp.le.f32.partialorder %v1565, 14.5
        %v1630 = vld [vmem:[#allocation2 + $0x7] sm:$0xff]
        %v1631 = vld [vmem:[#allocation2 + $0xf] sm:$0xff]
        %v1632 = vld [vmem:[#allocation2 + $0x17] sm:$0xff]
        %v1633 = vld [vmem:[#allocation2 + $0x1f] sm:$0xff]
        %v1634 = vld [vmem:[#allocation2 + $0x27] sm:$0xff]
        %v1635 = vld [vmem:[#allocation2 + $0x2f] sm:$0xff]
        %v1636 = vld [vmem:[#allocation2 + $0x37] sm:$0xff]
        %v1637 = vld [vmem:[#allocation2 + $0x3f] sm:$0xff]
        %v1638 = vld [vmem:[#allocation2 + $0x47] sm:$0xff]
        %v1639 = vld [vmem:[#allocation2 + $0x4f] sm:$0xff]
        %v1640 = vld [vmem:[#allocation2 + $0x57] sm:$0xff]
        %v1641 = vld [vmem:[#allocation2 + $0x5f] sm:$0xff]
        %v1642 = vld [vmem:[#allocation2 + $0x67] sm:$0xff]
        %v1643 = vld [vmem:[#allocation2 + $0x6f] sm:$0xff]
        %v1644 = vld [vmem:[#allocation2 + $0x77] sm:$0xff]
        %v1645 = vld [vmem:[#allocation2 + $0x7f] sm:$0xff]
        %v1646 = vld [vmem:[#allocation2 + $0x87] sm:$0xff]
        %v1647 = vld [vmem:[#allocation2 + $0x8f] sm:$0xff]
        %v1648 = vld [vmem:[#allocation2 + $0x97] sm:$0xff]
        %v1649 = vld [vmem:[#allocation2 + $0x9f] sm:$0xff]
        %v1650 = vld [vmem:[#allocation2 + $0xa7] sm:$0xff]
        %v1651 = vld [vmem:[#allocation2 + $0xaf] sm:$0xff]
        %v1652 = vld [vmem:[#allocation2 + $0xb7] sm:$0xff]
        %v1653 = vld [vmem:[#allocation2 + $0xbf] sm:$0xff]
        %v1654 = vld [vmem:[#allocation2 + $0xc7] sm:$0xff]
        %v1655 = vld [vmem:[#allocation2 + $0xcf] sm:$0xff]
        %v1656 = vld [vmem:[#allocation2 + $0xd7] sm:$0xff]
        %v1657 = vld [vmem:[#allocation2 + $0xdf] sm:$0xff]
        %v1658 = vld [vmem:[#allocation2 + $0xe7] sm:$0xff]
        %v1659 = vld [vmem:[#allocation2 + $0xef] sm:$0xff]
        %v1660 = vld [vmem:[#allocation2 + $0xf7] sm:$0xff]
        %v1661 = vld [vmem:[#allocation2 + $0xff] sm:$0xff]
        %v1662 = vsel %vm1566, %v1630, 0.0
        %v1663 = vsel %vm1567, %v1631, 0.0
        %v1664 = vsel %vm1568, %v1632, 0.0
        %v1665 = vsel %vm1569, %v1633, 0.0
        %v1666 = vsel %vm1570, %v1634, 0.0
        %v1667 = vsel %vm1571, %v1635, 0.0
        %v1668 = vsel %vm1572, %v1636, 0.0
        %v1669 = vsel %vm1573, %v1637, 0.0
        %v1670 = vsel %vm1574, %v1638, 0.0
        %v1671 = vsel %vm1575, %v1639, 0.0
        %v1672 = vsel %vm1576, %v1640, 0.0
        %v1673 = vsel %vm1577, %v1641, 0.0
        %v1674 = vsel %vm1578, %v1642, 0.0
        %v1675 = vsel %vm1579, %v1643, 0.0
        %v1676 = vsel %vm1580, %v1644, 0.0
        %v1677 = vsel %vm1581, %v1645, 0.0
        %v1678 = vsel %vm1582, %v1646, 0.0
        %v1679 = vsel %vm1583, %v1647, 0.0
        %v1680 = vsel %vm1584, %v1648, 0.0
        %v1681 = vsel %vm1585, %v1649, 0.0
        %v1682 = vsel %vm1586, %v1650, 0.0
        %v1683 = vsel %vm1587, %v1651, 0.0
        %v1684 = vsel %vm1588, %v1652, 0.0
        %v1685 = vsel %vm1589, %v1653, 0.0
        %v1686 = vsel %vm1590, %v1654, 0.0
        %v1687 = vsel %vm1591, %v1655, 0.0
        %v1688 = vsel %vm1592, %v1656, 0.0
        %v1689 = vsel %vm1593, %v1657, 0.0
        %v1690 = vsel %vm1594, %v1658, 0.0
        %v1691 = vsel %vm1595, %v1659, 0.0
        %v1692 = vsel %vm1596, %v1660, 0.0
        %v1693 = vsel %vm1597, %v1661, 0.0
        %v1694 = vpack.c.bf16 %v1663, %v1662
        %v1695 = vpack.c.bf16 %v1665, %v1664
        %v1696 = vpack.c.bf16 %v1667, %v1666
        %v1697 = vpack.c.bf16 %v1669, %v1668
        %v1698 = vpack.c.bf16 %v1671, %v1670
        %v1699 = vpack.c.bf16 %v1673, %v1672
        %v1700 = vpack.c.bf16 %v1675, %v1674
        %v1701 = vpack.c.bf16 %v1677, %v1676
        %v1702 = vpack.c.bf16 %v1679, %v1678
        %v1703 = vpack.c.bf16 %v1681, %v1680
        %v1704 = vpack.c.bf16 %v1683, %v1682
        %v1705 = vpack.c.bf16 %v1685, %v1684
        %v1706 = vpack.c.bf16 %v1687, %v1686
        %v1707 = vpack.c.bf16 %v1689, %v1688
        %v1708 = vpack.c.bf16 %v1691, %v1690
        %v1709 = vpack.c.bf16 %v1693, %v1692
        %v1710 = vld [vmem:[#allocation2 + $0x8] sm:$0xff]
        %v1711 = vld [vmem:[#allocation2 + $0x10] sm:$0xff]
        %v1712 = vld [vmem:[#allocation2 + $0x18] sm:$0xff]
        %v1713 = vld [vmem:[#allocation2 + $0x20] sm:$0xff]
        %v1714 = vld [vmem:[#allocation2 + $0x28] sm:$0xff]
        %v1715 = vld [vmem:[#allocation2 + $0x30] sm:$0xff]
        %v1716 = vld [vmem:[#allocation2 + $0x38] sm:$0xff]
        %v1717 = vld [vmem:[#allocation2 + $0x40] sm:$0xff]
        %v1718 = vld [vmem:[#allocation2 + $0x48] sm:$0xff]
        %v1719 = vld [vmem:[#allocation2 + $0x50] sm:$0xff]
        %v1720 = vld [vmem:[#allocation2 + $0x58] sm:$0xff]
        %v1721 = vld [vmem:[#allocation2 + $0x60] sm:$0xff]
        %v1722 = vld [vmem:[#allocation2 + $0x68] sm:$0xff]
        %v1723 = vld [vmem:[#allocation2 + $0x70] sm:$0xff]
        %v1724 = vld [vmem:[#allocation2 + $0x78] sm:$0xff]
        %v1725 = vld [vmem:[#allocation2 + $0x80] sm:$0xff]
        %v1726 = vld [vmem:[#allocation2 + $0x88] sm:$0xff]
        %v1727 = vld [vmem:[#allocation2 + $0x90] sm:$0xff]
        %v1728 = vld [vmem:[#allocation2 + $0x98] sm:$0xff]
        %v1729 = vld [vmem:[#allocation2 + $0xa0] sm:$0xff]
        %v1730 = vld [vmem:[#allocation2 + $0xa8] sm:$0xff]
        %v1731 = vld [vmem:[#allocation2 + $0xb0] sm:$0xff]
        %v1732 = vld [vmem:[#allocation2 + $0xb8] sm:$0xff]
        %v1733 = vld [vmem:[#allocation2 + $0xc0] sm:$0xff]
        %v1734 = vld [vmem:[#allocation2 + $0xc8] sm:$0xff]
        %v1735 = vld [vmem:[#allocation2 + $0xd0] sm:$0xff]
        %v1736 = vld [vmem:[#allocation2 + $0xd8] sm:$0xff]
        %v1737 = vld [vmem:[#allocation2 + $0xe0] sm:$0xff]
        %v1738 = vld [vmem:[#allocation2 + $0xe8] sm:$0xff]
        %v1739 = vld [vmem:[#allocation2 + $0xf0] sm:$0xff]
        %v1740 = vld [vmem:[#allocation2 + $0xf8] sm:$0xff]
        %v1741 = vld [vmem:[#allocation2 + $0x100] sm:$0xff]
        %v1742 = vpack.c.bf16 %v1711, %v1710
        %v1743 = vpack.c.bf16 %v1713, %v1712
        %v1744 = vpack.c.bf16 %v1715, %v1714
        %v1745 = vpack.c.bf16 %v1717, %v1716
        %v1746 = vpack.c.bf16 %v1719, %v1718
        %v1747 = vpack.c.bf16 %v1721, %v1720
        %v1748 = vpack.c.bf16 %v1723, %v1722
        %v1749 = vpack.c.bf16 %v1725, %v1724
        %v1750 = vpack.c.bf16 %v1727, %v1726
        %v1751 = vpack.c.bf16 %v1729, %v1728
        %v1752 = vpack.c.bf16 %v1731, %v1730
        %v1753 = vpack.c.bf16 %v1733, %v1732
        %v1754 = vpack.c.bf16 %v1735, %v1734
        %v1755 = vpack.c.bf16 %v1737, %v1736
        %v1756 = vpack.c.bf16 %v1739, %v1738
        %v1757 = vpack.c.bf16 %v1741, %v1740
        %v1758 = vld [vmem:[#allocation2 + $0x9] sm:$0xff]
        %v1759 = vld [vmem:[#allocation2 + $0x11] sm:$0xff]
        %v1760 = vld [vmem:[#allocation2 + $0x19] sm:$0xff]
        %v1761 = vld [vmem:[#allocation2 + $0x21] sm:$0xff]
        %v1762 = vld [vmem:[#allocation2 + $0x29] sm:$0xff]
        %v1763 = vld [vmem:[#allocation2 + $0x31] sm:$0xff]
        %v1764 = vld [vmem:[#allocation2 + $0x39] sm:$0xff]
        %v1765 = vld [vmem:[#allocation2 + $0x41] sm:$0xff]
        %v1766 = vld [vmem:[#allocation2 + $0x49] sm:$0xff]
        %v1767 = vld [vmem:[#allocation2 + $0x51] sm:$0xff]
        %v1768 = vld [vmem:[#allocation2 + $0x59] sm:$0xff]
        %v1769 = vld [vmem:[#allocation2 + $0x61] sm:$0xff]
        %v1770 = vld [vmem:[#allocation2 + $0x69] sm:$0xff]
        %v1771 = vld [vmem:[#allocation2 + $0x71] sm:$0xff]
        %v1772 = vld [vmem:[#allocation2 + $0x79] sm:$0xff]
        %v1773 = vld [vmem:[#allocation2 + $0x81] sm:$0xff]
        %v1774 = vld [vmem:[#allocation2 + $0x89] sm:$0xff]
        %v1775 = vld [vmem:[#allocation2 + $0x91] sm:$0xff]
        %v1776 = vld [vmem:[#allocation2 + $0x99] sm:$0xff]
        %v1777 = vld [vmem:[#allocation2 + $0xa1] sm:$0xff]
        %v1778 = vld [vmem:[#allocation2 + $0xa9] sm:$0xff]
        %v1779 = vld [vmem:[#allocation2 + $0xb1] sm:$0xff]
        %v1780 = vld [vmem:[#allocation2 + $0xb9] sm:$0xff]
        %v1781 = vld [vmem:[#allocation2 + $0xc1] sm:$0xff]
        %v1782 = vld [vmem:[#allocation2 + $0xc9] sm:$0xff]
        %v1783 = vld [vmem:[#allocation2 + $0xd1] sm:$0xff]
        %v1784 = vld [vmem:[#allocation2 + $0xd9] sm:$0xff]
        %v1785 = vld [vmem:[#allocation2 + $0xe1] sm:$0xff]
        %v1786 = vld [vmem:[#allocation2 + $0xe9] sm:$0xff]
        %v1787 = vld [vmem:[#allocation2 + $0xf1] sm:$0xff]
        %v1788 = vld [vmem:[#allocation2 + $0xf9] sm:$0xff]
        %v1789 = vld [vmem:[#allocation2 + $0x101] sm:$0xff]
        %v1790 = vsel %vm1598, %v1758, 0.0
        %v1791 = vsel %vm1599, %v1759, 0.0
        %v1792 = vsel %vm1600, %v1760, 0.0
        %v1793 = vsel %vm1601, %v1761, 0.0
        %v1794 = vsel %vm1602, %v1762, 0.0
        %v1795 = vsel %vm1603, %v1763, 0.0
        %v1796 = vsel %vm1604, %v1764, 0.0
        %v1797 = vsel %vm1605, %v1765, 0.0
        %v1798 = vsel %vm1606, %v1766, 0.0
        %v1799 = vsel %vm1607, %v1767, 0.0
        %v1800 = vsel %vm1608, %v1768, 0.0
        %v1801 = vsel %vm1609, %v1769, 0.0
        %v1802 = vsel %vm1610, %v1770, 0.0
        %v1803 = vsel %vm1611, %v1771, 0.0
        %v1804 = vsel %vm1612, %v1772, 0.0
        %v1805 = vsel %vm1613, %v1773, 0.0
        %v1806 = vsel %vm1614, %v1774, 0.0
        %v1807 = vsel %vm1615, %v1775, 0.0
        %v1808 = vsel %vm1616, %v1776, 0.0
        %v1809 = vsel %vm1617, %v1777, 0.0
        %v1810 = vsel %vm1618, %v1778, 0.0
        %v1811 = vsel %vm1619, %v1779, 0.0
        %v1812 = vsel %vm1620, %v1780, 0.0
        %v1813 = vsel %vm1621, %v1781, 0.0
        %v1814 = vsel %vm1622, %v1782, 0.0
        %v1815 = vsel %vm1623, %v1783, 0.0
        %v1816 = vsel %vm1624, %v1784, 0.0
        %v1817 = vsel %vm1625, %v1785, 0.0
        %v1818 = vsel %vm1626, %v1786, 0.0
        %v1819 = vsel %vm1627, %v1787, 0.0
        %v1820 = vsel %vm1628, %v1788, 0.0
        %v1821 = vsel %vm1629, %v1789, 0.0
        %v1822 = vpack.c.bf16 %v1791, %v1790
        %v1823 = vpack.c.bf16 %v1793, %v1792
        %v1824 = vpack.c.bf16 %v1795, %v1794
        %v1825 = vpack.c.bf16 %v1797, %v1796
        %v1826 = vpack.c.bf16 %v1799, %v1798
        %v1827 = vpack.c.bf16 %v1801, %v1800
        %v1828 = vpack.c.bf16 %v1803, %v1802
        %v1829 = vpack.c.bf16 %v1805, %v1804
        %v1830 = vpack.c.bf16 %v1807, %v1806
        %v1831 = vpack.c.bf16 %v1809, %v1808
        %v1832 = vpack.c.bf16 %v1811, %v1810
        %v1833 = vpack.c.bf16 %v1813, %v1812
        %v1834 = vpack.c.bf16 %v1815, %v1814
        %v1835 = vpack.c.bf16 %v1817, %v1816
        %v1836 = vpack.c.bf16 %v1819, %v1818
        %v1837 = vpack.c.bf16 %v1821, %v1820
        %v1838 = vld [vmem:[#allocation2 + $0x107] sm:$0xff]
        %v1839 = vld [vmem:[#allocation2 + $0x10f] sm:$0xff]
        %v1840 = vsel %vm1566, %v1632, 0.0
        %v1841 = vsel %vm1567, %v1633, 0.0
        %v1842 = vsel %vm1568, %v1634, 0.0
        %v1843 = vsel %vm1569, %v1635, 0.0
        %v1844 = vsel %vm1570, %v1636, 0.0
        %v1845 = vsel %vm1571, %v1637, 0.0
        %v1846 = vsel %vm1572, %v1638, 0.0
        %v1847 = vsel %vm1573, %v1639, 0.0
        %v1848 = vsel %vm1574, %v1640, 0.0
        %v1849 = vsel %vm1575, %v1641, 0.0
        %v1850 = vsel %vm1576, %v1642, 0.0
        %v1851 = vsel %vm1577, %v1643, 0.0
        %v1852 = vsel %vm1578, %v1644, 0.0
        %v1853 = vsel %vm1579, %v1645, 0.0
        %v1854 = vsel %vm1580, %v1646, 0.0
        %v1855 = vsel %vm1581, %v1647, 0.0
        %v1856 = vsel %vm1582, %v1648, 0.0
        %v1857 = vsel %vm1583, %v1649, 0.0
        %v1858 = vsel %vm1584, %v1650, 0.0
        %v1859 = vsel %vm1585, %v1651, 0.0
        %v1860 = vsel %vm1586, %v1652, 0.0
        %v1861 = vsel %vm1587, %v1653, 0.0
        %v1862 = vsel %vm1588, %v1654, 0.0
        %v1863 = vsel %vm1589, %v1655, 0.0
        %v1864 = vsel %vm1590, %v1656, 0.0
        %v1865 = vsel %vm1591, %v1657, 0.0
        %v1866 = vsel %vm1592, %v1658, 0.0
        %v1867 = vsel %vm1593, %v1659, 0.0
        %v1868 = vsel %vm1594, %v1660, 0.0
        %v1869 = vsel %vm1595, %v1661, 0.0
        %v1870 = vsel %vm1596, %v1838, 0.0
        %v1871 = vsel %vm1597, %v1839, 0.0
        %v1872 = vpack.c.bf16 %v1841, %v1840
        %v1873 = vpack.c.bf16 %v1843, %v1842
        %v1874 = vpack.c.bf16 %v1845, %v1844
        %v1875 = vpack.c.bf16 %v1847, %v1846
        %v1876 = vpack.c.bf16 %v1849, %v1848
        %v1877 = vpack.c.bf16 %v1851, %v1850
        %v1878 = vpack.c.bf16 %v1853, %v1852
        %v1879 = vpack.c.bf16 %v1855, %v1854
        %v1880 = vpack.c.bf16 %v1857, %v1856
        %v1881 = vpack.c.bf16 %v1859, %v1858
        %v1882 = vpack.c.bf16 %v1861, %v1860
        %v1883 = vpack.c.bf16 %v1863, %v1862
        %v1884 = vpack.c.bf16 %v1865, %v1864
        %v1885 = vpack.c.bf16 %v1867, %v1866
        %v1886 = vpack.c.bf16 %v1869, %v1868
        %v1887 = vpack.c.bf16 %v1871, %v1870
        %v1888 = vld [vmem:[#allocation2 + $0x108] sm:$0xff]
        %v1889 = vld [vmem:[#allocation2 + $0x110] sm:$0xff]
        %v1890 = vpack.c.bf16 %v1889, %v1888
        %v1891 = vld [vmem:[#allocation2 + $0x109] sm:$0xff]
        %v1892 = vld [vmem:[#allocation2 + $0x111] sm:$0xff]
        %v1893 = vsel %vm1598, %v1760, 0.0
        %v1894 = vsel %vm1599, %v1761, 0.0
        %v1895 = vsel %vm1600, %v1762, 0.0
        %v1896 = vsel %vm1601, %v1763, 0.0
        %v1897 = vsel %vm1602, %v1764, 0.0
        %v1898 = vsel %vm1603, %v1765, 0.0
        %v1899 = vsel %vm1604, %v1766, 0.0
        %v1900 = vsel %vm1605, %v1767, 0.0
        %v1901 = vsel %vm1606, %v1768, 0.0
        %v1902 = vsel %vm1607, %v1769, 0.0
        %v1903 = vsel %vm1608, %v1770, 0.0
        %v1904 = vsel %vm1609, %v1771, 0.0
        %v1905 = vsel %vm1610, %v1772, 0.0
        %v1906 = vsel %vm1611, %v1773, 0.0
        %v1907 = vsel %vm1612, %v1774, 0.0
        %v1908 = vsel %vm1613, %v1775, 0.0
        %v1909 = vsel %vm1614, %v1776, 0.0
        %v1910 = vsel %vm1615, %v1777, 0.0
        %v1911 = vsel %vm1616, %v1778, 0.0
        %v1912 = vsel %vm1617, %v1779, 0.0
        %v1913 = vsel %vm1618, %v1780, 0.0
        %v1914 = vsel %vm1619, %v1781, 0.0
        %v1915 = vsel %vm1620, %v1782, 0.0
        %v1916 = vsel %vm1621, %v1783, 0.0
        %v1917 = vsel %vm1622, %v1784, 0.0
        %v1918 = vsel %vm1623, %v1785, 0.0
        %v1919 = vsel %vm1624, %v1786, 0.0
        %v1920 = vsel %vm1625, %v1787, 0.0
        %v1921 = vsel %vm1626, %v1788, 0.0
        %v1922 = vsel %vm1627, %v1789, 0.0
        %v1923 = vsel %vm1628, %v1891, 0.0
        %v1924 = vsel %vm1629, %v1892, 0.0
        %v1925 = vpack.c.bf16 %v1894, %v1893
        %v1926 = vpack.c.bf16 %v1896, %v1895
        %v1927 = vpack.c.bf16 %v1898, %v1897
        %v1928 = vpack.c.bf16 %v1900, %v1899
        %v1929 = vpack.c.bf16 %v1902, %v1901
        %v1930 = vpack.c.bf16 %v1904, %v1903
        %v1931 = vpack.c.bf16 %v1906, %v1905
        %v1932 = vpack.c.bf16 %v1908, %v1907
        %v1933 = vpack.c.bf16 %v1910, %v1909
        %v1934 = vpack.c.bf16 %v1912, %v1911
        %v1935 = vpack.c.bf16 %v1914, %v1913
        %v1936 = vpack.c.bf16 %v1916, %v1915
        %v1937 = vpack.c.bf16 %v1918, %v1917
        %v1938 = vpack.c.bf16 %v1920, %v1919
        %v1939 = vpack.c.bf16 %v1922, %v1921
        %v1940 = vpack.c.bf16 %v1924, %v1923
        %v1941 = vld [vmem:[#allocation2 + $0x117] sm:$0xff]
        %v1942 = vld [vmem:[#allocation2 + $0x11f] sm:$0xff]
        %v1943 = vsel %vm1566, %v1634, 0.0
        %v1944 = vsel %vm1567, %v1635, 0.0
        %v1945 = vsel %vm1568, %v1636, 0.0
        %v1946 = vsel %vm1569, %v1637, 0.0
        %v1947 = vsel %vm1570, %v1638, 0.0
        %v1948 = vsel %vm1571, %v1639, 0.0
        %v1949 = vsel %vm1572, %v1640, 0.0
        %v1950 = vsel %vm1573, %v1641, 0.0
        %v1951 = vsel %vm1574, %v1642, 0.0
        %v1952 = vsel %vm1575, %v1643, 0.0
        %v1953 = vsel %vm1576, %v1644, 0.0
        %v1954 = vsel %vm1577, %v1645, 0.0
        %v1955 = vsel %vm1578, %v1646, 0.0
        %v1956 = vsel %vm1579, %v1647, 0.0
        %v1957 = vsel %vm1580, %v1648, 0.0
        %v1958 = vsel %vm1581, %v1649, 0.0
        %v1959 = vsel %vm1582, %v1650, 0.0
        %v1960 = vsel %vm1583, %v1651, 0.0
        %v1961 = vsel %vm1584, %v1652, 0.0
        %v1962 = vsel %vm1585, %v1653, 0.0
        %v1963 = vsel %vm1586, %v1654, 0.0
        %v1964 = vsel %vm1587, %v1655, 0.0
        %v1965 = vsel %vm1588, %v1656, 0.0
        %v1966 = vsel %vm1589, %v1657, 0.0
        %v1967 = vsel %vm1590, %v1658, 0.0
        %v1968 = vsel %vm1591, %v1659, 0.0
        %v1969 = vsel %vm1592, %v1660, 0.0
        %v1970 = vsel %vm1593, %v1661, 0.0
        %v1971 = vsel %vm1594, %v1838, 0.0
        %v1972 = vsel %vm1595, %v1839, 0.0
        %v1973 = vsel %vm1596, %v1941, 0.0
        %v1974 = vsel %vm1597, %v1942, 0.0
        %v1975 = vpack.c.bf16 %v1944, %v1943
        %v1976 = vpack.c.bf16 %v1946, %v1945
        %v1977 = vpack.c.bf16 %v1948, %v1947
        %v1978 = vpack.c.bf16 %v1950, %v1949
        %v1979 = vpack.c.bf16 %v1952, %v1951
        %v1980 = vpack.c.bf16 %v1954, %v1953
        %v1981 = vpack.c.bf16 %v1956, %v1955
        %v1982 = vpack.c.bf16 %v1958, %v1957
        %v1983 = vpack.c.bf16 %v1960, %v1959
        %v1984 = vpack.c.bf16 %v1962, %v1961
        %v1985 = vpack.c.bf16 %v1964, %v1963
        %v1986 = vpack.c.bf16 %v1966, %v1965
        %v1987 = vpack.c.bf16 %v1968, %v1967
        %v1988 = vpack.c.bf16 %v1970, %v1969
        %v1989 = vpack.c.bf16 %v1972, %v1971
        %v1990 = vpack.c.bf16 %v1974, %v1973
        %v1991 = vld [vmem:[#allocation2 + $0x118] sm:$0xff]
        %v1992 = vld [vmem:[#allocation2 + $0x120] sm:$0xff]
        %v1993 = vpack.c.bf16 %v1992, %v1991
        %v1994 = vld [vmem:[#allocation2 + $0x119] sm:$0xff]
        %v1995 = vld [vmem:[#allocation2 + $0x121] sm:$0xff]
        %v1996 = vsel %vm1598, %v1762, 0.0
        %v1997 = vsel %vm1599, %v1763, 0.0
        %v1998 = vsel %vm1600, %v1764, 0.0
        %v1999 = vsel %vm1601, %v1765, 0.0
        %v2000 = vsel %vm1602, %v1766, 0.0
        %v2001 = vsel %vm1603, %v1767, 0.0
        %v2002 = vsel %vm1604, %v1768, 0.0
        %v2003 = vsel %vm1605, %v1769, 0.0
        %v2004 = vsel %vm1606, %v1770, 0.0
        %v2005 = vsel %vm1607, %v1771, 0.0
        %v2006 = vsel %vm1608, %v1772, 0.0
        %v2007 = vsel %vm1609, %v1773, 0.0
        %v2008 = vsel %vm1610, %v1774, 0.0
        %v2009 = vsel %vm1611, %v1775, 0.0
        %v2010 = vsel %vm1612, %v1776, 0.0
        %v2011 = vsel %vm1613, %v1777, 0.0
        %v2012 = vsel %vm1614, %v1778, 0.0
        %v2013 = vsel %vm1615, %v1779, 0.0
        %v2014 = vsel %vm1616, %v1780, 0.0
        %v2015 = vsel %vm1617, %v1781, 0.0
        %v2016 = vsel %vm1618, %v1782, 0.0
        %v2017 = vsel %vm1619, %v1783, 0.0
        %v2018 = vsel %vm1620, %v1784, 0.0
        %v2019 = vsel %vm1621, %v1785, 0.0
        %v2020 = vsel %vm1622, %v1786, 0.0
        %v2021 = vsel %vm1623, %v1787, 0.0
        %v2022 = vsel %vm1624, %v1788, 0.0
        %v2023 = vsel %vm1625, %v1789, 0.0
        %v2024 = vsel %vm1626, %v1891, 0.0
        %v2025 = vsel %vm1627, %v1892, 0.0
        %v2026 = vsel %vm1628, %v1994, 0.0
        %v2027 = vsel %vm1629, %v1995, 0.0
        %v2028 = vpack.c.bf16 %v1997, %v1996
        %v2029 = vpack.c.bf16 %v1999, %v1998
        %v2030 = vpack.c.bf16 %v2001, %v2000
        %v2031 = vpack.c.bf16 %v2003, %v2002
        %v2032 = vpack.c.bf16 %v2005, %v2004
        %v2033 = vpack.c.bf16 %v2007, %v2006
        %v2034 = vpack.c.bf16 %v2009, %v2008
        %v2035 = vpack.c.bf16 %v2011, %v2010
        %v2036 = vpack.c.bf16 %v2013, %v2012
        %v2037 = vpack.c.bf16 %v2015, %v2014
        %v2038 = vpack.c.bf16 %v2017, %v2016
        %v2039 = vpack.c.bf16 %v2019, %v2018
        %v2040 = vpack.c.bf16 %v2021, %v2020
        %v2041 = vpack.c.bf16 %v2023, %v2022
        %v2042 = vpack.c.bf16 %v2025, %v2024
        %v2043 = vpack.c.bf16 %v2027, %v2026
        %v2044 = vld [vmem:[#allocation8] sm:$0xf]
        %v2045 = vld [vmem:[#allocation8 + $0x4] sm:$0xf]
        %v2046 = vld [vmem:[#allocation8 + $0x8] sm:$0xf]
        %v2047 = vld [vmem:[#allocation8 + $0xc] sm:$0xf]
        %v2048 = vld [vmem:[#allocation8 + $0x10] sm:$0xf]
        %v2049 = vld [vmem:[#allocation8 + $0x14] sm:$0xf]
        %v2050 = vld [vmem:[#allocation8 + $0x18] sm:$0xf]
        %v2051 = vld [vmem:[#allocation8 + $0x1c] sm:$0xf]
        %v2052 = vld [vmem:[#allocation8 + $0x20] sm:$0xf]
        %v2053 = vld [vmem:[#allocation8 + $0x24] sm:$0xf]
        %v2054 = vld [vmem:[#allocation8 + $0x28] sm:$0xf]
        %v2055 = vld [vmem:[#allocation8 + $0x2c] sm:$0xf]
        %v2056 = vld [vmem:[#allocation8 + $0x30] sm:$0xf]
        %v2057 = vld [vmem:[#allocation8 + $0x34] sm:$0xf]
        %v2058 = vld [vmem:[#allocation8 + $0x38] sm:$0xf]
        %v2059 = vld [vmem:[#allocation8 + $0x3c] sm:$0xf]
        %v2060 = vld [vmem:[#allocation8 + $0x40] sm:$0xf]
        %v2061 = vld [vmem:[#allocation8 + $0x44] sm:$0xf]
        %v2062 = vld [vmem:[#allocation8 + $0x48] sm:$0xf]
        %v2063 = vld [vmem:[#allocation8 + $0x4c] sm:$0xf]
        %v2064 = vld [vmem:[#allocation8 + $0x50] sm:$0xf]
        %v2065 = vld [vmem:[#allocation8 + $0x54] sm:$0xf]
        %v2066 = vld [vmem:[#allocation8 + $0x58] sm:$0xf]
        %v2067 = vld [vmem:[#allocation8 + $0x5c] sm:$0xf]
        %v2068 = vld [vmem:[#allocation8 + $0x60] sm:$0xf]
        %v2069 = vld [vmem:[#allocation8 + $0x64] sm:$0xf]
        %v2070 = vld [vmem:[#allocation8 + $0x68] sm:$0xf]
        %v2071 = vld [vmem:[#allocation8 + $0x6c] sm:$0xf]
        %v2072 = vld [vmem:[#allocation8 + $0x70] sm:$0xf]
        %v2073 = vld [vmem:[#allocation8 + $0x74] sm:$0xf]
        %v2074 = vld [vmem:[#allocation8 + $0x78] sm:$0xf]
        %v2075 = vld [vmem:[#allocation8 + $0x7c] sm:$0xf]
        %v2076 = vld [vmem:[#allocation8 + $0x80] sm:$0xf]
        %v2077 = vld [vmem:[#allocation8 + $0x84] sm:$0xf]
        %v2078 = vld [vmem:[#allocation8 + $0x88] sm:$0xf]
        %v2079 = vld [vmem:[#allocation8 + $0x8c] sm:$0xf]
        %v2080 = vld [vmem:[#allocation8 + $0x90] sm:$0xf]
        %v2081 = vld [vmem:[#allocation8 + $0x94] sm:$0xf]
        %v2082 = vld [vmem:[#allocation8 + $0x98] sm:$0xf]
        %v2083 = vld [vmem:[#allocation8 + $0x9c] sm:$0xf]
        %v2084 = vld [vmem:[#allocation8 + $0xa0] sm:$0xf]
        %v2085 = vld [vmem:[#allocation8 + $0xa4] sm:$0xf]
        %v2086 = vld [vmem:[#allocation8 + $0xa8] sm:$0xf]
        %v2087 = vld [vmem:[#allocation8 + $0xac] sm:$0xf]
        %v2088 = vld [vmem:[#allocation8 + $0xb0] sm:$0xf]
        %v2089 = vld [vmem:[#allocation8 + $0xb4] sm:$0xf]
        %v2090 = vld [vmem:[#allocation8 + $0xb8] sm:$0xf]
        %v2091 = vld [vmem:[#allocation8 + $0xbc] sm:$0xf]
        %v2092 = vld [vmem:[#allocation8 + $0xc0] sm:$0xf]
        %v2093 = vld [vmem:[#allocation8 + $0xc4] sm:$0xf]
        %v2094 = vld [vmem:[#allocation8 + $0xc8] sm:$0xf]
        %v2095 = vld [vmem:[#allocation8 + $0xcc] sm:$0xf]
        %v2096 = vld [vmem:[#allocation8 + $0xd0] sm:$0xf]
        %v2097 = vld [vmem:[#allocation8 + $0xd4] sm:$0xf]
        %v2098 = vld [vmem:[#allocation8 + $0xd8] sm:$0xf]
        %v2099 = vld [vmem:[#allocation8 + $0xdc] sm:$0xf]
        %v2100 = vld [vmem:[#allocation8 + $0xe0] sm:$0xf]
        %v2101 = vld [vmem:[#allocation8 + $0xe4] sm:$0xf]
        %v2102 = vld [vmem:[#allocation8 + $0xe8] sm:$0xf]
        %v2103 = vld [vmem:[#allocation8 + $0xec] sm:$0xf]
        %v2104 = vld [vmem:[#allocation8 + $0xf0] sm:$0xf]
        %v2105 = vld [vmem:[#allocation8 + $0xf4] sm:$0xf]
        %v2106 = vld [vmem:[#allocation8 + $0xf8] sm:$0xf]
        %v2107 = vld [vmem:[#allocation8 + $0xfc] sm:$0xf]
        %v2108 = vld [vmem:[#allocation8 + $0x100] sm:$0xf]
        %v2109 = vld [vmem:[#allocation8 + $0x104] sm:$0xf]
        %v2110 = vld [vmem:[#allocation8 + $0x108] sm:$0xf]
        %v2111 = vld [vmem:[#allocation8 + $0x10c] sm:$0xf]
        %v2112 = vld [vmem:[#allocation8 + $0x110] sm:$0xf]
        %v2113 = vld [vmem:[#allocation8 + $0x114] sm:$0xf]
        %v2114 = vld [vmem:[#allocation8 + $0x118] sm:$0xf]
        %v2115 = vld [vmem:[#allocation8 + $0x11c] sm:$0xf]
        %v2116 = vld [vmem:[#allocation8 + $0x120] sm:$0xf]
        %v2117 = vld [vmem:[#allocation8 + $0x124] sm:$0xf]
        %v2118 = vld [vmem:[#allocation8 + $0x128] sm:$0xf]
        %v2119 = vld [vmem:[#allocation8 + $0x12c] sm:$0xf]
        %v2120 = vld [vmem:[#allocation8 + $0x130] sm:$0xf]
        %v2121 = vld [vmem:[#allocation8 + $0x134] sm:$0xf]
        %v2122 = vld [vmem:[#allocation8 + $0x138] sm:$0xf]
        %v2123 = vld [vmem:[#allocation8 + $0x13c] sm:$0xf]
        %v2124 = vld [vmem:[#allocation8 + $0x140] sm:$0xf]
        %v2125 = vld [vmem:[#allocation8 + $0x144] sm:$0xf]
        %v2126 = vld [vmem:[#allocation8 + $0x148] sm:$0xf]
        %v2127 = vld [vmem:[#allocation8 + $0x14c] sm:$0xf]
        %v2128 = vld [vmem:[#allocation8 + $0x150] sm:$0xf]
        %v2129 = vld [vmem:[#allocation8 + $0x154] sm:$0xf]
        %v2130 = vld [vmem:[#allocation8 + $0x158] sm:$0xf]
        %v2131 = vld [vmem:[#allocation8 + $0x15c] sm:$0xf]
        %v2132 = vld [vmem:[#allocation8 + $0x160] sm:$0xf]
        %v2133 = vld [vmem:[#allocation8 + $0x164] sm:$0xf]
        %v2134 = vld [vmem:[#allocation8 + $0x168] sm:$0xf]
        %v2135 = vld [vmem:[#allocation8 + $0x16c] sm:$0xf]
        %v2136 = vld [vmem:[#allocation8 + $0x170] sm:$0xf]
        %v2137 = vld [vmem:[#allocation8 + $0x174] sm:$0xf]
        %v2138 = vld [vmem:[#allocation8 + $0x178] sm:$0xf]
        %v2139 = vld [vmem:[#allocation8 + $0x17c] sm:$0xf]
        %v2140 = vld [vmem:[#allocation8 + $0x180] sm:$0xf]
        %v2141 = vld [vmem:[#allocation8 + $0x184] sm:$0xf]
        %v2142 = vld [vmem:[#allocation8 + $0x188] sm:$0xf]
        %v2143 = vld [vmem:[#allocation8 + $0x18c] sm:$0xf]
        %v2144 = vld [vmem:[#allocation8 + $0x190] sm:$0xf]
        %v2145 = vld [vmem:[#allocation8 + $0x194] sm:$0xf]
        %v2146 = vld [vmem:[#allocation8 + $0x198] sm:$0xf]
        %v2147 = vld [vmem:[#allocation8 + $0x19c] sm:$0xf]
        %v2148 = vld [vmem:[#allocation8 + $0x1a0] sm:$0xf]
        %v2149 = vld [vmem:[#allocation8 + $0x1a4] sm:$0xf]
        %v2150 = vld [vmem:[#allocation8 + $0x1a8] sm:$0xf]
        %v2151 = vld [vmem:[#allocation8 + $0x1ac] sm:$0xf]
        %v2152 = vld [vmem:[#allocation8 + $0x1b0] sm:$0xf]
        %v2153 = vld [vmem:[#allocation8 + $0x1b4] sm:$0xf]
        %v2154 = vld [vmem:[#allocation8 + $0x1b8] sm:$0xf]
        %v2155 = vld [vmem:[#allocation8 + $0x1bc] sm:$0xf]
        %v2156 = vld [vmem:[#allocation8 + $0x1c0] sm:$0xf]
        %v2157 = vld [vmem:[#allocation8 + $0x1c4] sm:$0xf]
        %v2158 = vld [vmem:[#allocation8 + $0x1c8] sm:$0xf]
        %v2159 = vld [vmem:[#allocation8 + $0x1cc] sm:$0xf]
        %v2160 = vld [vmem:[#allocation8 + $0x1d0] sm:$0xf]
        %v2161 = vld [vmem:[#allocation8 + $0x1d4] sm:$0xf]
        %v2162 = vld [vmem:[#allocation8 + $0x1d8] sm:$0xf]
        %v2163 = vld [vmem:[#allocation8 + $0x1dc] sm:$0xf]
        %v2164 = vld [vmem:[#allocation8 + $0x1e0] sm:$0xf]
        %v2165 = vld [vmem:[#allocation8 + $0x1e4] sm:$0xf]
        %v2166 = vld [vmem:[#allocation8 + $0x1e8] sm:$0xf]
        %v2167 = vld [vmem:[#allocation8 + $0x1ec] sm:$0xf]
        %v2168 = vld [vmem:[#allocation8 + $0x1f0] sm:$0xf]
        %v2169 = vld [vmem:[#allocation8 + $0x1f4] sm:$0xf]
        %v2170 = vld [vmem:[#allocation8 + $0x1f8] sm:$0xf]
        %v2171 = vld [vmem:[#allocation8 + $0x1fc] sm:$0xf]
        %v2172 = vld [vmem:[#allocation8 + $0x200] sm:$0xf]
        %v2173 = vld [vmem:[#allocation8 + $0x204] sm:$0xf]
        %v2174 = vld [vmem:[#allocation8 + $0x208] sm:$0xf]
        %v2175 = vld [vmem:[#allocation8 + $0x20c] sm:$0xf]
        %v2176 = vld [vmem:[#allocation8 + $0x210] sm:$0xf]
        %v2177 = vld [vmem:[#allocation8 + $0x214] sm:$0xf]
        %v2178 = vld [vmem:[#allocation8 + $0x218] sm:$0xf]
        %v2179 = vld [vmem:[#allocation8 + $0x21c] sm:$0xf]
        %v2180 = vld [vmem:[#allocation8 + $0x220] sm:$0xf]
        %v2181 = vld [vmem:[#allocation8 + $0x224] sm:$0xf]
        %v2182 = vld [vmem:[#allocation8 + $0x228] sm:$0xf]
        %v2183 = vld [vmem:[#allocation8 + $0x22c] sm:$0xf]
        %v2184 = vld [vmem:[#allocation8 + $0x230] sm:$0xf]
        %v2185 = vld [vmem:[#allocation8 + $0x234] sm:$0xf]
        %v2186 = vld [vmem:[#allocation8 + $0x238] sm:$0xf]
        %v2187 = vld [vmem:[#allocation8 + $0x23c] sm:$0xf]
        %v2332 = vunpack.c.l.b16 %v2044
        %v2333 = vunpack.c.l.b16 %v2045
        %v2334 = vunpack.c.l.b16 %v2046
        %v2335 = vunpack.c.l.b16 %v2047
        %v2336 = vunpack.c.l.b16 %v2048
        %v2337 = vunpack.c.l.b16 %v2049
        %v2338 = vunpack.c.l.b16 %v2050
        %v2339 = vunpack.c.l.b16 %v2051
        %v2340 = vunpack.c.l.b16 %v2052
        %v2341 = vunpack.c.l.b16 %v2053
        %v2342 = vunpack.c.l.b16 %v2054
        %v2343 = vunpack.c.l.b16 %v2055
        %v2344 = vunpack.c.l.b16 %v2056
        %v2345 = vunpack.c.l.b16 %v2057
        %v2346 = vunpack.c.l.b16 %v2058
        %v2347 = vunpack.c.l.b16 %v2059
        %v2348 = vunpack.c.l.b16 %v2060
        %v2349 = vunpack.c.l.b16 %v2061
        %v2350 = vunpack.c.l.b16 %v2062
        %v2351 = vunpack.c.l.b16 %v2063
        %v2352 = vunpack.c.l.b16 %v2064
        %v2353 = vunpack.c.l.b16 %v2065
        %v2354 = vunpack.c.l.b16 %v2066
        %v2355 = vunpack.c.l.b16 %v2067
        %v2356 = vunpack.c.l.b16 %v2068
        %v2357 = vunpack.c.l.b16 %v2069
        %v2358 = vunpack.c.l.b16 %v2070
        %v2359 = vunpack.c.l.b16 %v2071
        %v2360 = vunpack.c.l.b16 %v2072
        %v2361 = vunpack.c.l.b16 %v2073
        %v2362 = vunpack.c.l.b16 %v2074
        %v2363 = vunpack.c.l.b16 %v2075
        %v2364 = vunpack.c.l.b16 %v2076
        %v2365 = vunpack.c.l.b16 %v2077
        %v2366 = vunpack.c.l.b16 %v2078
        %v2367 = vunpack.c.l.b16 %v2079
        %v2368 = vunpack.c.l.b16 %v2080
        %v2369 = vunpack.c.l.b16 %v2081
        %v2370 = vunpack.c.l.b16 %v2082
        %v2371 = vunpack.c.l.b16 %v2083
        %v2372 = vunpack.c.l.b16 %v2084
        %v2373 = vunpack.c.l.b16 %v2085
        %v2374 = vunpack.c.l.b16 %v2086
        %v2375 = vunpack.c.l.b16 %v2087
        %v2376 = vunpack.c.l.b16 %v2088
        %v2377 = vunpack.c.l.b16 %v2089
        %v2378 = vunpack.c.l.b16 %v2090
        %v2379 = vunpack.c.l.b16 %v2091
        %v2380 = vunpack.c.l.b16 %v2092
        %v2381 = vunpack.c.l.b16 %v2093
        %v2382 = vunpack.c.l.b16 %v2094
        %v2383 = vunpack.c.l.b16 %v2095
        %v2384 = vunpack.c.l.b16 %v2096
        %v2385 = vunpack.c.l.b16 %v2097
        %v2386 = vunpack.c.l.b16 %v2098
        %v2387 = vunpack.c.l.b16 %v2099
        %v2388 = vunpack.c.l.b16 %v2100
        %v2389 = vunpack.c.l.b16 %v2101
        %v2390 = vunpack.c.l.b16 %v2102
        %v2391 = vunpack.c.l.b16 %v2103
        %v2392 = vunpack.c.l.b16 %v2104
        %v2393 = vunpack.c.l.b16 %v2105
        %v2394 = vunpack.c.l.b16 %v2106
        %v2395 = vunpack.c.l.b16 %v2107
        %v2396 = vunpack.c.l.b16 %v2108
        %v2397 = vunpack.c.l.b16 %v2109
        %v2398 = vunpack.c.l.b16 %v2110
        %v2399 = vunpack.c.l.b16 %v2111
        %v2400 = vunpack.c.l.b16 %v2112
        %v2401 = vunpack.c.l.b16 %v2113
        %v2402 = vunpack.c.l.b16 %v2114
        %v2403 = vunpack.c.l.b16 %v2115
        %v2404 = vunpack.c.l.b16 %v2116
        %v2405 = vunpack.c.l.b16 %v2117
        %v2406 = vunpack.c.l.b16 %v2118
        %v2407 = vunpack.c.l.b16 %v2119
        %v2408 = vunpack.c.l.b16 %v2120
        %v2409 = vunpack.c.l.b16 %v2121
        %v2410 = vunpack.c.l.b16 %v2122
        %v2411 = vunpack.c.l.b16 %v2123
        %v2412 = vunpack.c.l.b16 %v2124
        %v2413 = vunpack.c.l.b16 %v2125
        %v2414 = vunpack.c.l.b16 %v2126
        %v2415 = vunpack.c.l.b16 %v2127
        %v2416 = vunpack.c.l.b16 %v2128
        %v2417 = vunpack.c.l.b16 %v2129
        %v2418 = vunpack.c.l.b16 %v2130
        %v2419 = vunpack.c.l.b16 %v2131
        %v2420 = vunpack.c.l.b16 %v2132
        %v2421 = vunpack.c.l.b16 %v2133
        %v2422 = vunpack.c.l.b16 %v2134
        %v2423 = vunpack.c.l.b16 %v2135
        %v2424 = vunpack.c.l.b16 %v2136
        %v2425 = vunpack.c.l.b16 %v2137
        %v2426 = vunpack.c.l.b16 %v2138
        %v2427 = vunpack.c.l.b16 %v2139
        %v2428 = vunpack.c.l.b16 %v2140
        %v2429 = vunpack.c.l.b16 %v2141
        %v2430 = vunpack.c.l.b16 %v2142
        %v2431 = vunpack.c.l.b16 %v2143
        %v2432 = vunpack.c.l.b16 %v2144
        %v2433 = vunpack.c.l.b16 %v2145
        %v2434 = vunpack.c.l.b16 %v2146
        %v2435 = vunpack.c.l.b16 %v2147
        %v2436 = vunpack.c.l.b16 %v2148
        %v2437 = vunpack.c.l.b16 %v2149
        %v2438 = vunpack.c.l.b16 %v2150
        %v2439 = vunpack.c.l.b16 %v2151
        %v2440 = vunpack.c.l.b16 %v2152
        %v2441 = vunpack.c.l.b16 %v2153
        %v2442 = vunpack.c.l.b16 %v2154
        %v2443 = vunpack.c.l.b16 %v2155
        %v2444 = vunpack.c.l.b16 %v2156
        %v2445 = vunpack.c.l.b16 %v2157
        %v2446 = vunpack.c.l.b16 %v2158
        %v2447 = vunpack.c.l.b16 %v2159
        %v2448 = vunpack.c.l.b16 %v2160
        %v2449 = vunpack.c.l.b16 %v2161
        %v2450 = vunpack.c.l.b16 %v2162
        %v2451 = vunpack.c.l.b16 %v2163
        %v2452 = vunpack.c.l.b16 %v2164
        %v2453 = vunpack.c.l.b16 %v2165
        %v2454 = vunpack.c.l.b16 %v2166
        %v2455 = vunpack.c.l.b16 %v2167
        %v2456 = vunpack.c.l.b16 %v2168
        %v2457 = vunpack.c.l.b16 %v2169
        %v2458 = vunpack.c.l.b16 %v2170
        %v2459 = vunpack.c.l.b16 %v2171
        %v2460 = vunpack.c.l.b16 %v2172
        %v2461 = vunpack.c.l.b16 %v2173
        %v2462 = vunpack.c.l.b16 %v2174
        %v2463 = vunpack.c.l.b16 %v2175
        %v2464 = vunpack.c.l.b16 %v2176
        %v2465 = vunpack.c.l.b16 %v2177
        %v2466 = vunpack.c.l.b16 %v2178
        %v2467 = vunpack.c.l.b16 %v2179
        %v2468 = vunpack.c.l.b16 %v2180
        %v2469 = vunpack.c.l.b16 %v2181
        %v2470 = vunpack.c.l.b16 %v2182
        %v2471 = vunpack.c.l.b16 %v2183
        %v2472 = vunpack.c.l.b16 %v2184
        %v2473 = vunpack.c.l.b16 %v2185
        %v2474 = vunpack.c.l.b16 %v2186
        %v2475 = vunpack.c.l.b16 %v2187
        %v2476 = vpack.c.b16 %v2333, %v2332
        %v2477 = vpack.c.b16 %v2335, %v2334
        %v2478 = vpack.c.b16 %v2337, %v2336
        %v2479 = vpack.c.b16 %v2339, %v2338
        %v2480 = vpack.c.b16 %v2341, %v2340
        %v2481 = vpack.c.b16 %v2343, %v2342
        %v2482 = vpack.c.b16 %v2345, %v2344
        %v2483 = vpack.c.b16 %v2347, %v2346
        %v2484 = vpack.c.b16 %v2349, %v2348
        %v2485 = vpack.c.b16 %v2351, %v2350
        %v2486 = vpack.c.b16 %v2353, %v2352
        %v2487 = vpack.c.b16 %v2355, %v2354
        %v2488 = vpack.c.b16 %v2357, %v2356
        %v2489 = vpack.c.b16 %v2359, %v2358
        %v2490 = vpack.c.b16 %v2361, %v2360
        %v2491 = vpack.c.b16 %v2363, %v2362
        %v2492 = vpack.c.b16 %v2365, %v2364
        %v2493 = vpack.c.b16 %v2367, %v2366
        %v2494 = vpack.c.b16 %v2369, %v2368
        %v2495 = vpack.c.b16 %v2371, %v2370
        %v2496 = vpack.c.b16 %v2373, %v2372
        %v2497 = vpack.c.b16 %v2375, %v2374
        %v2498 = vpack.c.b16 %v2377, %v2376
        %v2499 = vpack.c.b16 %v2379, %v2378
        %v2500 = vpack.c.b16 %v2381, %v2380
        %v2501 = vpack.c.b16 %v2383, %v2382
        %v2502 = vpack.c.b16 %v2385, %v2384
        %v2503 = vpack.c.b16 %v2387, %v2386
        %v2504 = vpack.c.b16 %v2389, %v2388
        %v2505 = vpack.c.b16 %v2391, %v2390
        %v2506 = vpack.c.b16 %v2393, %v2392
        %v2507 = vpack.c.b16 %v2395, %v2394
        %v2508 = vpack.c.b16 %v2397, %v2396
        %v2509 = vpack.c.b16 %v2399, %v2398
        %v2510 = vpack.c.b16 %v2401, %v2400
        %v2511 = vpack.c.b16 %v2403, %v2402
        %v2512 = vpack.c.b16 %v2405, %v2404
        %v2513 = vpack.c.b16 %v2407, %v2406
        %v2514 = vpack.c.b16 %v2409, %v2408
        %v2515 = vpack.c.b16 %v2411, %v2410
        %v2516 = vpack.c.b16 %v2413, %v2412
        %v2517 = vpack.c.b16 %v2415, %v2414
        %v2518 = vpack.c.b16 %v2417, %v2416
        %v2519 = vpack.c.b16 %v2419, %v2418
        %v2520 = vpack.c.b16 %v2421, %v2420
        %v2521 = vpack.c.b16 %v2423, %v2422
        %v2522 = vpack.c.b16 %v2425, %v2424
        %v2523 = vpack.c.b16 %v2427, %v2426
        %v2524 = vpack.c.b16 %v2429, %v2428
        %v2525 = vpack.c.b16 %v2431, %v2430
        %v2526 = vpack.c.b16 %v2433, %v2432
        %v2527 = vpack.c.b16 %v2435, %v2434
        %v2528 = vpack.c.b16 %v2437, %v2436
        %v2529 = vpack.c.b16 %v2439, %v2438
        %v2530 = vpack.c.b16 %v2441, %v2440
        %v2531 = vpack.c.b16 %v2443, %v2442
        %v2532 = vpack.c.b16 %v2445, %v2444
        %v2533 = vpack.c.b16 %v2447, %v2446
        %v2534 = vpack.c.b16 %v2449, %v2448
        %v2535 = vpack.c.b16 %v2451, %v2450
        %v2536 = vpack.c.b16 %v2453, %v2452
        %v2537 = vpack.c.b16 %v2455, %v2454
        %v2538 = vpack.c.b16 %v2457, %v2456
        %v2539 = vpack.c.b16 %v2459, %v2458
        %v2540 = vpack.c.b16 %v2461, %v2460
        %v2541 = vpack.c.b16 %v2463, %v2462
        %v2542 = vpack.c.b16 %v2465, %v2464
        %v2543 = vpack.c.b16 %v2467, %v2466
        %v2544 = vpack.c.b16 %v2469, %v2468
        %v2545 = vpack.c.b16 %v2471, %v2470
        %v2546 = vpack.c.b16 %v2473, %v2472
        %v2547 = vpack.c.b16 %v2475, %v2474
        %2620 = vmatprep.subr.bf16.mxu0 0
        %2621 = vmatpush1.bf16.msra.mxu0 %v2476
        %2622 = vmatprep.subr.bf16.mxu0 0
        %2623 = vmatpush1.bf16.msra.mxu0 %v2477
        %2624 = vmatprep.subr.bf16.mxu0 0
        %2625 = vmatpush1.bf16.msra.mxu0 %v2478
        %2626 = vmatprep.subr.bf16.mxu0 0
        %2627 = vmatpush1.bf16.msra.mxu0 %v2479
        %2628 = vmatprep.subr.bf16.mxu0 0
        %2629 = vmatpush1.bf16.msra.mxu0 %v2480
        %2630 = vmatprep.subr.bf16.mxu0 0
        %2631 = vmatpush1.bf16.msra.mxu0 %v2481
        %2632 = vmatprep.subr.bf16.mxu0 0
        %2633 = vmatpush1.bf16.msra.mxu0 %v2482
        %2634 = vmatprep.subr.bf16.mxu0 0
        %2635 = vmatpush1.bf16.msra.mxu0 %v2483
        %2636 = vmatprep.subr.bf16.mxu0 0
        %2637 = vmatpush1.bf16.msra.mxu0 %v2484
        %2638 = vmatprep.subr.bf16.mxu0 0
        %2639 = vmatpush1.bf16.msra.mxu0 %v2485
        %2640 = vmatprep.subr.bf16.mxu0 0
        %2641 = vmatpush1.bf16.msra.mxu0 %v2486
        %2642 = vmatprep.subr.bf16.mxu0 0
        %2643 = vmatpush1.bf16.msra.mxu0 %v2487
        %2644 = vmatprep.subr.bf16.mxu0 0
        %2645 = vmatpush1.bf16.msra.mxu0 %v2488
        %2646 = vmatprep.subr.bf16.mxu0 0
        %2647 = vmatpush1.bf16.msra.mxu0 %v2489
        %2648 = vmatprep.subr.bf16.mxu0 0
        %2649 = vmatpush1.bf16.msra.mxu0 %v2490
        %2650 = vmatprep.subr.bf16.mxu0 0
        %2651 = vmatpush1.bf16.msra.mxu0 %v2491
        %2652 = vmatprep.mubr.bf16.mxu0 %v1742
        %2653 = vmatmul.mubr.bf16.gmra.mrb[0].mxu0 %v1694
        %v2654 = vpop.f32.mrb[0].mxu0
        %v2655 = vadd.f32 0.0, %v2654
        %v2656 = vpop.f32.mrb[0].mxu0
        %v2657 = vpop.f32.mrb[0].mxu0
        %v2658 = vadd.f32 0.0, %v2657
        %v2659 = vpop.f32.mrb[0].mxu0
        %2660 = vmatprep.mubr.bf16.mxu0 %v1743
        %2661 = vmatmul.mubr.bf16.gmra.mrb[0].mxu0 %v1695
        %v2662 = vpop.f32.mrb[0].mxu0
        %v2663 = vadd.f32 0.0, %v2662
        %v2664 = vpop.f32.mrb[0].mxu0
        %v2665 = vpop.f32.mrb[0].mxu0
        %v2666 = vadd.f32 0.0, %v2665
        %v2667 = vpop.f32.mrb[0].mxu0
        %2668 = vmatprep.mubr.bf16.mxu0 %v1744
        %2669 = vmatmul.mubr.bf16.gmra.mrb[0].mxu0 %v1696
        %v2670 = vpop.f32.mrb[0].mxu0
        %v2671 = vadd.f32 0.0, %v2670
        %v2672 = vpop.f32.mrb[0].mxu0
        %v2673 = vpop.f32.mrb[0].mxu0
        %v2674 = vadd.f32 0.0, %v2673
        %v2675 = vpop.f32.mrb[0].mxu0
        %2676 = vmatprep.mubr.bf16.mxu0 %v1745
        %2677 = vmatmul.mubr.bf16.gmra.mrb[0].mxu0 %v1697
        %v2678 = vpop.f32.mrb[0].mxu0
        %v2679 = vadd.f32 0.0, %v2678
        %v2680 = vpop.f32.mrb[0].mxu0
        %v2681 = vpop.f32.mrb[0].mxu0
        %v2682 = vadd.f32 0.0, %v2681
        %v2683 = vpop.f32.mrb[0].mxu0
        %2684 = vmatprep.mubr.bf16.mxu0 %v1746
        %2685 = vmatmul.mubr.bf16.gmra.mrb[0].mxu0 %v1698
        %v2686 = vpop.f32.mrb[0].mxu0
        %v2687 = vadd.f32 0.0, %v2686
        %v2688 = vpop.f32.mrb[0].mxu0
        %v2689 = vpop.f32.mrb[0].mxu0
        %v2690 = vadd.f32 0.0, %v2689
        %v2691 = vpop.f32.mrb[0].mxu0
        %2692 = vmatprep.mubr.bf16.mxu0 %v1747
        %2693 = vmatmul.mubr.bf16.gmra.mrb[0].mxu0 %v1699
        %v2694 = vpop.f32.mrb[0].mxu0
        %v2695 = vadd.f32 0.0, %v2694
        %v2696 = vpop.f32.mrb[0].mxu0
        %v2697 = vpop.f32.mrb[0].mxu0
        %v2698 = vadd.f32 0.0, %v2697
        %v2699 = vpop.f32.mrb[0].mxu0
        %2700 = vmatprep.mubr.bf16.mxu0 %v1748
        %2701 = vmatmul.mubr.bf16.gmra.mrb[0].mxu0 %v1700
        %v2702 = vpop.f32.mrb[0].mxu0
        %v2703 = vadd.f32 0.0, %v2702
        %v2704 = vpop.f32.mrb[0].mxu0
        %v2705 = vpop.f32.mrb[0].mxu0
        %v2706 = vadd.f32 0.0, %v2705
        %v2707 = vpop.f32.mrb[0].mxu0
        %2708 = vmatprep.mubr.bf16.mxu0 %v1749
        %2709 = vmatmul.mubr.bf16.gmra.mrb[0].mxu0 %v1701
        %v2710 = vpop.f32.mrb[0].mxu0
        %v2711 = vadd.f32 0.0, %v2710
        %v2712 = vpop.f32.mrb[0].mxu0
        %v2713 = vpop.f32.mrb[0].mxu0
        %v2714 = vadd.f32 0.0, %v2713
        %v2715 = vpop.f32.mrb[0].mxu0
        %2716 = vmatprep.mubr.bf16.mxu0 %v1750
        %2717 = vmatmul.mubr.bf16.gmra.mrb[0].mxu0 %v1702
        %v2718 = vpop.f32.mrb[0].mxu0
        %v2719 = vadd.f32 0.0, %v2718
        %v2720 = vpop.f32.mrb[0].mxu0
        %v2721 = vpop.f32.mrb[0].mxu0
        %v2722 = vadd.f32 0.0, %v2721
        %v2723 = vpop.f32.mrb[0].mxu0
        %2724 = vmatprep.mubr.bf16.mxu0 %v1751
        %2725 = vmatmul.mubr.bf16.gmra.mrb[0].mxu0 %v1703
        %v2726 = vpop.f32.mrb[0].mxu0
        %v2727 = vadd.f32 0.0, %v2726
        %v2728 = vpop.f32.mrb[0].mxu0
        %v2729 = vpop.f32.mrb[0].mxu0
        %v2730 = vadd.f32 0.0, %v2729
        %v2731 = vpop.f32.mrb[0].mxu0
        %2732 = vmatprep.mubr.bf16.mxu0 %v1752
        %2733 = vmatmul.mubr.bf16.gmra.mrb[0].mxu0 %v1704
        %v2734 = vpop.f32.mrb[0].mxu0
        %v2735 = vadd.f32 0.0, %v2734
        %v2736 = vpop.f32.mrb[0].mxu0
        %v2737 = vpop.f32.mrb[0].mxu0
        %v2738 = vadd.f32 0.0, %v2737
        %v2739 = vpop.f32.mrb[0].mxu0
        %2740 = vmatprep.mubr.bf16.mxu0 %v1753
        %2741 = vmatmul.mubr.bf16.gmra.mrb[0].mxu0 %v1705
        %v2742 = vpop.f32.mrb[0].mxu0
        %v2743 = vadd.f32 0.0, %v2742
        %v2744 = vpop.f32.mrb[0].mxu0
        %v2745 = vpop.f32.mrb[0].mxu0
        %v2746 = vadd.f32 0.0, %v2745
        %v2747 = vpop.f32.mrb[0].mxu0
        %2748 = vmatprep.mubr.bf16.mxu0 %v1754
        %2749 = vmatmul.mubr.bf16.gmra.mrb[0].mxu0 %v1706
        %v2750 = vpop.f32.mrb[0].mxu0
        %v2751 = vadd.f32 0.0, %v2750
        %v2752 = vpop.f32.mrb[0].mxu0
        %v2753 = vpop.f32.mrb[0].mxu0
        %v2754 = vadd.f32 0.0, %v2753
        %v2755 = vpop.f32.mrb[0].mxu0
        %2756 = vmatprep.mubr.bf16.mxu0 %v1755
        %2757 = vmatmul.mubr.bf16.gmra.mrb[0].mxu0 %v1707
        %v2758 = vpop.f32.mrb[0].mxu0
        %v2759 = vadd.f32 0.0, %v2758
        %v2760 = vpop.f32.mrb[0].mxu0
        %v2761 = vpop.f32.mrb[0].mxu0
        %v2762 = vadd.f32 0.0, %v2761
        %v2763 = vpop.f32.mrb[0].mxu0
        %2764 = vmatprep.mubr.bf16.mxu0 %v1756
        %2765 = vmatmul.mubr.bf16.gmra.mrb[0].mxu0 %v1708
        %v2766 = vpop.f32.mrb[0].mxu0
        %v2767 = vadd.f32 0.0, %v2766
        %v2768 = vpop.f32.mrb[0].mxu0
        %v2769 = vpop.f32.mrb[0].mxu0
        %v2770 = vadd.f32 0.0, %v2769
        %v2771 = vpop.f32.mrb[0].mxu0
        %2772 = vmatprep.mubr.bf16.mxu0 %v1757
        %2773 = vmatmul.mubr.bf16.gmra.mrb[0].mxu0 %v1709
        %v2774 = vpop.f32.mrb[0].mxu0
        %v2775 = vadd.f32 0.0, %v2774
        %v2776 = vpop.f32.mrb[0].mxu0
        %v2777 = vpop.f32.mrb[0].mxu0
        %v2778 = vadd.f32 0.0, %v2777
        %v2779 = vpop.f32.mrb[0].mxu0
        %2780 = vdwg.mxu0
        %2781 = vmatprep.subr.bf16.mxu0 0
        %2782 = vmatpush1.bf16.msra.mxu0 %v2492
        %2783 = vmatprep.subr.bf16.mxu0 0
        %2784 = vmatpush1.bf16.msra.mxu0 %v2493
        %2785 = vmatprep.subr.bf16.mxu0 0
        %2786 = vmatpush1.bf16.msra.mxu0 %v2494
        %2787 = vmatprep.subr.bf16.mxu0 0
        %2788 = vmatpush1.bf16.msra.mxu0 %v2495
        %2789 = vmatprep.subr.bf16.mxu0 0
        %2790 = vmatpush1.bf16.msra.mxu0 %v2496
        %2791 = vmatprep.subr.bf16.mxu0 0
        %2792 = vmatpush1.bf16.msra.mxu0 %v2497
        %2793 = vmatprep.subr.bf16.mxu0 0
        %2794 = vmatpush1.bf16.msra.mxu0 %v2498
        %2795 = vmatprep.subr.bf16.mxu0 0
        %2796 = vmatpush1.bf16.msra.mxu0 %v2499
        %2797 = vmatprep.subr.bf16.mxu0 0
        %2798 = vmatpush1.bf16.msra.mxu0 %v2500
        %2799 = vmatprep.subr.bf16.mxu0 0
        %2800 = vmatpush1.bf16.msra.mxu0 %v2501
        %2801 = vmatprep.subr.bf16.mxu0 0
        %2802 = vmatpush1.bf16.msra.mxu0 %v2502
        %2803 = vmatprep.subr.bf16.mxu0 0
        %2804 = vmatpush1.bf16.msra.mxu0 %v2503
        %2805 = vmatprep.subr.bf16.mxu0 0
        %2806 = vmatpush1.bf16.msra.mxu0 %v2504
        %2807 = vmatprep.subr.bf16.mxu0 0
        %2808 = vmatpush1.bf16.msra.mxu0 %v2505
        %2809 = vmatprep.subr.bf16.mxu0 0
        %2810 = vmatpush1.bf16.msra.mxu0 %v2506
        %2811 = vmatprep.subr.bf16.mxu0 0
        %2812 = vmatpush1.bf16.msra.mxu0 %v2507
        %2813 = vmatprep.mubr.bf16.mxu0 %v1872
        %2814 = vmatmul.mubr.bf16.gmra.mrb[0].mxu0 %v1822
        %v2815 = vpop.f32.mrb[0].mxu0
        %v2816 = vadd.f32 %v2655, %v2815
        %v2817 = vpop.f32.mrb[0].mxu0
        %v2818 = vpop.f32.mrb[0].mxu0
        %v2819 = vadd.f32 %v2658, %v2818
        %v2820 = vpop.f32.mrb[0].mxu0
        %2821 = vmatprep.mubr.bf16.mxu0 %v1873
        %2822 = vmatmul.mubr.bf16.gmra.mrb[0].mxu0 %v1823
        %v2823 = vpop.f32.mrb[0].mxu0
        %v2824 = vadd.f32 %v2663, %v2823
        %v2825 = vpop.f32.mrb[0].mxu0
        %v2826 = vpop.f32.mrb[0].mxu0
        %v2827 = vadd.f32 %v2666, %v2826
        %v2828 = vpop.f32.mrb[0].mxu0
        %2829 = vmatprep.mubr.bf16.mxu0 %v1874
        %2830 = vmatmul.mubr.bf16.gmra.mrb[0].mxu0 %v1824
        %v2831 = vpop.f32.mrb[0].mxu0
        %v2832 = vadd.f32 %v2671, %v2831
        %v2833 = vpop.f32.mrb[0].mxu0
        %v2834 = vpop.f32.mrb[0].mxu0
        %v2835 = vadd.f32 %v2674, %v2834
        %v2836 = vpop.f32.mrb[0].mxu0
        %2837 = vmatprep.mubr.bf16.mxu0 %v1875
        %2838 = vmatmul.mubr.bf16.gmra.mrb[0].mxu0 %v1825
        %v2839 = vpop.f32.mrb[0].mxu0
        %v2840 = vadd.f32 %v2679, %v2839
        %v2841 = vpop.f32.mrb[0].mxu0
        %v2842 = vpop.f32.mrb[0].mxu0
        %v2843 = vadd.f32 %v2682, %v2842
        %v2844 = vpop.f32.mrb[0].mxu0
        %2845 = vmatprep.mubr.bf16.mxu0 %v1876
        %2846 = vmatmul.mubr.bf16.gmra.mrb[0].mxu0 %v1826
        %v2847 = vpop.f32.mrb[0].mxu0
        %v2848 = vadd.f32 %v2687, %v2847
        %v2849 = vpop.f32.mrb[0].mxu0
        %v2850 = vpop.f32.mrb[0].mxu0
        %v2851 = vadd.f32 %v2690, %v2850
        %v2852 = vpop.f32.mrb[0].mxu0
        %2853 = vmatprep.mubr.bf16.mxu0 %v1877
        %2854 = vmatmul.mubr.bf16.gmra.mrb[0].mxu0 %v1827
        %v2855 = vpop.f32.mrb[0].mxu0
        %v2856 = vadd.f32 %v2695, %v2855
        %v2857 = vpop.f32.mrb[0].mxu0
        %v2858 = vpop.f32.mrb[0].mxu0
        %v2859 = vadd.f32 %v2698, %v2858
        %v2860 = vpop.f32.mrb[0].mxu0
        %2861 = vmatprep.mubr.bf16.mxu0 %v1878
        %2862 = vmatmul.mubr.bf16.gmra.mrb[0].mxu0 %v1828
        %v2863 = vpop.f32.mrb[0].mxu0
        %v2864 = vadd.f32 %v2703, %v2863
        %v2865 = vpop.f32.mrb[0].mxu0
        %v2866 = vpop.f32.mrb[0].mxu0
        %v2867 = vadd.f32 %v2706, %v2866
        %v2868 = vpop.f32.mrb[0].mxu0
        %2869 = vmatprep.mubr.bf16.mxu0 %v1879
        %2870 = vmatmul.mubr.bf16.gmra.mrb[0].mxu0 %v1829
        %v2871 = vpop.f32.mrb[0].mxu0
        %v2872 = vadd.f32 %v2711, %v2871
        %v2873 = vpop.f32.mrb[0].mxu0
        %v2874 = vpop.f32.mrb[0].mxu0
        %v2875 = vadd.f32 %v2714, %v2874
        %v2876 = vpop.f32.mrb[0].mxu0
        %2877 = vmatprep.mubr.bf16.mxu0 %v1880
        %2878 = vmatmul.mubr.bf16.gmra.mrb[0].mxu0 %v1830
        %v2879 = vpop.f32.mrb[0].mxu0
        %v2880 = vadd.f32 %v2719, %v2879
        %v2881 = vpop.f32.mrb[0].mxu0
        %v2882 = vpop.f32.mrb[0].mxu0
        %v2883 = vadd.f32 %v2722, %v2882
        %v2884 = vpop.f32.mrb[0].mxu0
        %2885 = vmatprep.mubr.bf16.mxu0 %v1881
        %2886 = vmatmul.mubr.bf16.gmra.mrb[0].mxu0 %v1831
        %v2887 = vpop.f32.mrb[0].mxu0
        %v2888 = vadd.f32 %v2727, %v2887
        %v2889 = vpop.f32.mrb[0].mxu0
        %v2890 = vpop.f32.mrb[0].mxu0
        %v2891 = vadd.f32 %v2730, %v2890
        %v2892 = vpop.f32.mrb[0].mxu0
        %2893 = vmatprep.mubr.bf16.mxu0 %v1882
        %2894 = vmatmul.mubr.bf16.gmra.mrb[0].mxu0 %v1832
        %v2895 = vpop.f32.mrb[0].mxu0
        %v2896 = vadd.f32 %v2735, %v2895
        %v2897 = vpop.f32.mrb[0].mxu0
        %v2898 = vpop.f32.mrb[0].mxu0
        %v2899 = vadd.f32 %v2738, %v2898
        %v2900 = vpop.f32.mrb[0].mxu0
        %2901 = vmatprep.mubr.bf16.mxu0 %v1883
        %2902 = vmatmul.mubr.bf16.gmra.mrb[0].mxu0 %v1833
        %v2903 = vpop.f32.mrb[0].mxu0
        %v2904 = vadd.f32 %v2743, %v2903
        %v2905 = vpop.f32.mrb[0].mxu0
        %v2906 = vpop.f32.mrb[0].mxu0
        %v2907 = vadd.f32 %v2746, %v2906
        %v2908 = vpop.f32.mrb[0].mxu0
        %2909 = vmatprep.mubr.bf16.mxu0 %v1884
        %2910 = vmatmul.mubr.bf16.gmra.mrb[0].mxu0 %v1834
        %v2911 = vpop.f32.mrb[0].mxu0
        %v2912 = vadd.f32 %v2751, %v2911
        %v2913 = vpop.f32.mrb[0].mxu0
        %v2914 = vpop.f32.mrb[0].mxu0
        %v2915 = vadd.f32 %v2754, %v2914
        %v2916 = vpop.f32.mrb[0].mxu0
        %2917 = vmatprep.mubr.bf16.mxu0 %v1885
        %2918 = vmatmul.mubr.bf16.gmra.mrb[0].mxu0 %v1835
        %v2919 = vpop.f32.mrb[0].mxu0
        %v2920 = vadd.f32 %v2759, %v2919
        %v2921 = vpop.f32.mrb[0].mxu0
        %v2922 = vpop.f32.mrb[0].mxu0
        %v2923 = vadd.f32 %v2762, %v2922
        %v2924 = vpop.f32.mrb[0].mxu0
        %2925 = vmatprep.mubr.bf16.mxu0 %v1886
        %2926 = vmatmul.mubr.bf16.gmra.mrb[0].mxu0 %v1836
        %v2927 = vpop.f32.mrb[0].mxu0
        %v2928 = vadd.f32 %v2767, %v2927
        %v2929 = vpop.f32.mrb[0].mxu0
        %v2930 = vpop.f32.mrb[0].mxu0
        %v2931 = vadd.f32 %v2770, %v2930
        %v2932 = vpop.f32.mrb[0].mxu0
        %2933 = vmatprep.mubr.bf16.mxu0 %v1887
        %2934 = vmatmul.mubr.bf16.gmra.mrb[0].mxu0 %v1837
        %v2935 = vpop.f32.mrb[0].mxu0
        %v2936 = vadd.f32 %v2775, %v2935
        %v2937 = vpop.f32.mrb[0].mxu0
        %v2938 = vpop.f32.mrb[0].mxu0
        %v2939 = vadd.f32 %v2778, %v2938
        %v2940 = vpop.f32.mrb[0].mxu0
        %2941 = vdwg.mxu0
        %2942 = vmatprep.subr.bf16.mxu0 0
        %2943 = vmatpush1.bf16.msra.mxu0 %v2508
        %2944 = vmatprep.subr.bf16.mxu0 0
        %2945 = vmatpush1.bf16.msra.mxu0 %v2509
        %2946 = vmatprep.subr.bf16.mxu0 0
        %2947 = vmatpush1.bf16.msra.mxu0 %v2510
        %2948 = vmatprep.subr.bf16.mxu0 0
        %2949 = vmatpush1.bf16.msra.mxu0 %v2511
        %2950 = vmatprep.subr.bf16.mxu0 0
        %2951 = vmatpush1.bf16.msra.mxu0 %v2512
        %2952 = vmatprep.subr.bf16.mxu0 0
        %2953 = vmatpush1.bf16.msra.mxu0 %v2513
        %2954 = vmatprep.subr.bf16.mxu0 0
        %2955 = vmatpush1.bf16.msra.mxu0 %v2514
        %2956 = vmatprep.subr.bf16.mxu0 0
        %2957 = vmatpush1.bf16.msra.mxu0 %v2515
        %2958 = vmatprep.subr.bf16.mxu0 0
        %2959 = vmatpush1.bf16.msra.mxu0 %v2516
        %2960 = vmatprep.subr.bf16.mxu0 0
        %2961 = vmatpush1.bf16.msra.mxu0 %v2517
        %2962 = vmatprep.subr.bf16.mxu0 0
        %2963 = vmatpush1.bf16.msra.mxu0 %v2518
        %2964 = vmatprep.subr.bf16.mxu0 0
        %2965 = vmatpush1.bf16.msra.mxu0 %v2519
        %2966 = vmatprep.subr.bf16.mxu0 0
        %2967 = vmatpush1.bf16.msra.mxu0 %v2520
        %2968 = vmatprep.subr.bf16.mxu0 0
        %2969 = vmatpush1.bf16.msra.mxu0 %v2521
        %2970 = vmatprep.subr.bf16.mxu0 0
        %2971 = vmatpush1.bf16.msra.mxu0 %v2522
        %2972 = vmatprep.subr.bf16.mxu0 0
        %2973 = vmatpush1.bf16.msra.mxu0 %v2523
        %2974 = vmatprep.mubr.bf16.mxu0 %v1925
        %2975 = vmatmul.mubr.bf16.gmra.mrb[0].mxu0 %v1743
        %v2976 = vpop.f32.mrb[0].mxu0
        %v2977 = vadd.f32 %v2816, %v2976
        %v2978 = vpop.f32.mrb[0].mxu0
        %v2979 = vpop.f32.mrb[0].mxu0
        %v2980 = vadd.f32 %v2819, %v2979
        %v2981 = vpop.f32.mrb[0].mxu0
        %2982 = vmatprep.mubr.bf16.mxu0 %v1926
        %2983 = vmatmul.mubr.bf16.gmra.mrb[0].mxu0 %v1744
        %v2984 = vpop.f32.mrb[0].mxu0
        %v2985 = vadd.f32 %v2824, %v2984
        %v2986 = vpop.f32.mrb[0].mxu0
        %v2987 = vpop.f32.mrb[0].mxu0
        %v2988 = vadd.f32 %v2827, %v2987
        %v2989 = vpop.f32.mrb[0].mxu0
        %2990 = vmatprep.mubr.bf16.mxu0 %v1927
        %2991 = vmatmul.mubr.bf16.gmra.mrb[0].mxu0 %v1745
        %v2992 = vpop.f32.mrb[0].mxu0
        %v2993 = vadd.f32 %v2832, %v2992
        %v2994 = vpop.f32.mrb[0].mxu0
        %v2995 = vpop.f32.mrb[0].mxu0
        %v2996 = vadd.f32 %v2835, %v2995
        %v2997 = vpop.f32.mrb[0].mxu0
        %2998 = vmatprep.mubr.bf16.mxu0 %v1928
        %2999 = vmatmul.mubr.bf16.gmra.mrb[0].mxu0 %v1746
        %v3000 = vpop.f32.mrb[0].mxu0
        %v3001 = vadd.f32 %v2840, %v3000
        %v3002 = vpop.f32.mrb[0].mxu0
        %v3003 = vpop.f32.mrb[0].mxu0
        %v3004 = vadd.f32 %v2843, %v3003
        %v3005 = vpop.f32.mrb[0].mxu0
        %3006 = vmatprep.mubr.bf16.mxu0 %v1929
        %3007 = vmatmul.mubr.bf16.gmra.mrb[0].mxu0 %v1747
        %v3008 = vpop.f32.mrb[0].mxu0
        %v3009 = vadd.f32 %v2848, %v3008
        %v3010 = vpop.f32.mrb[0].mxu0
        %v3011 = vpop.f32.mrb[0].mxu0
        %v3012 = vadd.f32 %v2851, %v3011
        %v3013 = vpop.f32.mrb[0].mxu0
        %3014 = vmatprep.mubr.bf16.mxu0 %v1930
        %3015 = vmatmul.mubr.bf16.gmra.mrb[0].mxu0 %v1748
        %v3016 = vpop.f32.mrb[0].mxu0
        %v3017 = vadd.f32 %v2856, %v3016
        %v3018 = vpop.f32.mrb[0].mxu0
        %v3019 = vpop.f32.mrb[0].mxu0
        %v3020 = vadd.f32 %v2859, %v3019
        %v3021 = vpop.f32.mrb[0].mxu0
        %3022 = vmatprep.mubr.bf16.mxu0 %v1931
        %3023 = vmatmul.mubr.bf16.gmra.mrb[0].mxu0 %v1749
        %v3024 = vpop.f32.mrb[0].mxu0
        %v3025 = vadd.f32 %v2864, %v3024
        %v3026 = vpop.f32.mrb[0].mxu0
        %v3027 = vpop.f32.mrb[0].mxu0
        %v3028 = vadd.f32 %v2867, %v3027
        %v3029 = vpop.f32.mrb[0].mxu0
        %3030 = vmatprep.mubr.bf16.mxu0 %v1932
        %3031 = vmatmul.mubr.bf16.gmra.mrb[0].mxu0 %v1750
        %v3032 = vpop.f32.mrb[0].mxu0
        %v3033 = vadd.f32 %v2872, %v3032
        %v3034 = vpop.f32.mrb[0].mxu0
        %v3035 = vpop.f32.mrb[0].mxu0
        %v3036 = vadd.f32 %v2875, %v3035
        %v3037 = vpop.f32.mrb[0].mxu0
        %3038 = vmatprep.mubr.bf16.mxu0 %v1933
        %3039 = vmatmul.mubr.bf16.gmra.mrb[0].mxu0 %v1751
        %v3040 = vpop.f32.mrb[0].mxu0
        %v3041 = vadd.f32 %v2880, %v3040
        %v3042 = vpop.f32.mrb[0].mxu0
        %v3043 = vpop.f32.mrb[0].mxu0
        %v3044 = vadd.f32 %v2883, %v3043
        %v3045 = vpop.f32.mrb[0].mxu0
        %3046 = vmatprep.mubr.bf16.mxu0 %v1934
        %3047 = vmatmul.mubr.bf16.gmra.mrb[0].mxu0 %v1752
        %v3048 = vpop.f32.mrb[0].mxu0
        %v3049 = vadd.f32 %v2888, %v3048
        %v3050 = vpop.f32.mrb[0].mxu0
        %v3051 = vpop.f32.mrb[0].mxu0
        %v3052 = vadd.f32 %v2891, %v3051
        %v3053 = vpop.f32.mrb[0].mxu0
        %3054 = vmatprep.mubr.bf16.mxu0 %v1935
        %3055 = vmatmul.mubr.bf16.gmra.mrb[0].mxu0 %v1753
        %v3056 = vpop.f32.mrb[0].mxu0
        %v3057 = vadd.f32 %v2896, %v3056
        %v3058 = vpop.f32.mrb[0].mxu0
        %v3059 = vpop.f32.mrb[0].mxu0
        %v3060 = vadd.f32 %v2899, %v3059
        %v3061 = vpop.f32.mrb[0].mxu0
        %3062 = vmatprep.mubr.bf16.mxu0 %v1936
        %3063 = vmatmul.mubr.bf16.gmra.mrb[0].mxu0 %v1754
        %v3064 = vpop.f32.mrb[0].mxu0
        %v3065 = vadd.f32 %v2904, %v3064
        %v3066 = vpop.f32.mrb[0].mxu0
        %v3067 = vpop.f32.mrb[0].mxu0
        %v3068 = vadd.f32 %v2907, %v3067
        %v3069 = vpop.f32.mrb[0].mxu0
        %3070 = vmatprep.mubr.bf16.mxu0 %v1937
        %3071 = vmatmul.mubr.bf16.gmra.mrb[0].mxu0 %v1755
        %v3072 = vpop.f32.mrb[0].mxu0
        %v3073 = vadd.f32 %v2912, %v3072
        %v3074 = vpop.f32.mrb[0].mxu0
        %v3075 = vpop.f32.mrb[0].mxu0
        %v3076 = vadd.f32 %v2915, %v3075
        %v3077 = vpop.f32.mrb[0].mxu0
        %3078 = vmatprep.mubr.bf16.mxu0 %v1938
        %3079 = vmatmul.mubr.bf16.gmra.mrb[0].mxu0 %v1756
        %v3080 = vpop.f32.mrb[0].mxu0
        %v3081 = vadd.f32 %v2920, %v3080
        %v3082 = vpop.f32.mrb[0].mxu0
        %v3083 = vpop.f32.mrb[0].mxu0
        %v3084 = vadd.f32 %v2923, %v3083
        %v3085 = vpop.f32.mrb[0].mxu0
        %3086 = vmatprep.mubr.bf16.mxu0 %v1939
        %3087 = vmatmul.mubr.bf16.gmra.mrb[0].mxu0 %v1757
        %v3088 = vpop.f32.mrb[0].mxu0
        %v3089 = vadd.f32 %v2928, %v3088
        %v3090 = vpop.f32.mrb[0].mxu0
        %v3091 = vpop.f32.mrb[0].mxu0
        %v3092 = vadd.f32 %v2931, %v3091
        %v3093 = vpop.f32.mrb[0].mxu0
        %3094 = vmatprep.mubr.bf16.mxu0 %v1940
        %3095 = vmatmul.mubr.bf16.gmra.mrb[0].mxu0 %v1890
        %v3096 = vpop.f32.mrb[0].mxu0
        %v3097 = vadd.f32 %v2936, %v3096
        %v3098 = vpop.f32.mrb[0].mxu0
        %v3099 = vpop.f32.mrb[0].mxu0
        %v3100 = vadd.f32 %v2939, %v3099
        %v3101 = vpop.f32.mrb[0].mxu0
        %3102 = vdwg.mxu0
        %3103 = vmatprep.subr.bf16.mxu0 0
        %3104 = vmatpush1.bf16.msra.mxu0 %v2524
        %3105 = vmatprep.subr.bf16.mxu0 0
        %3106 = vmatpush1.bf16.msra.mxu0 %v2525
        %3107 = vmatprep.subr.bf16.mxu0 0
        %3108 = vmatpush1.bf16.msra.mxu0 %v2526
        %3109 = vmatprep.subr.bf16.mxu0 0
        %3110 = vmatpush1.bf16.msra.mxu0 %v2527
        %3111 = vmatprep.subr.bf16.mxu0 0
        %3112 = vmatpush1.bf16.msra.mxu0 %v2528
        %3113 = vmatprep.subr.bf16.mxu0 0
        %3114 = vmatpush1.bf16.msra.mxu0 %v2529
        %3115 = vmatprep.subr.bf16.mxu0 0
        %3116 = vmatpush1.bf16.msra.mxu0 %v2530
        %3117 = vmatprep.subr.bf16.mxu0 0
        %3118 = vmatpush1.bf16.msra.mxu0 %v2531
        %3119 = vmatprep.subr.bf16.mxu0 0
        %3120 = vmatpush1.bf16.msra.mxu0 %v2532
        %3121 = vmatprep.subr.bf16.mxu0 0
        %3122 = vmatpush1.bf16.msra.mxu0 %v2533
        %3123 = vmatprep.subr.bf16.mxu0 0
        %3124 = vmatpush1.bf16.msra.mxu0 %v2534
        %3125 = vmatprep.subr.bf16.mxu0 0
        %3126 = vmatpush1.bf16.msra.mxu0 %v2535
        %3127 = vmatprep.subr.bf16.mxu0 0
        %3128 = vmatpush1.bf16.msra.mxu0 %v2536
        %3129 = vmatprep.subr.bf16.mxu0 0
        %3130 = vmatpush1.bf16.msra.mxu0 %v2537
        %3131 = vmatprep.subr.bf16.mxu0 0
        %3132 = vmatpush1.bf16.msra.mxu0 %v2538
        %3133 = vmatprep.subr.bf16.mxu0 0
        %3134 = vmatpush1.bf16.msra.mxu0 %v2539
        %3135 = vmatprep.mubr.bf16.mxu0 %v1744
        %3136 = vmatmul.mubr.bf16.gmra.mrb[0].mxu0 %v1975
        %v3137 = vpop.f32.mrb[0].mxu0
        %v3138 = vadd.f32 %v2977, %v3137
        %v3139 = vpop.f32.mrb[0].mxu0
        %v3140 = vpop.f32.mrb[0].mxu0
        %v3141 = vadd.f32 %v2980, %v3140
        %v3142 = vpop.f32.mrb[0].mxu0
        %3143 = vmatprep.mubr.bf16.mxu0 %v1745
        %3144 = vmatmul.mubr.bf16.gmra.mrb[0].mxu0 %v1976
        %v3145 = vpop.f32.mrb[0].mxu0
        %v3146 = vadd.f32 %v2985, %v3145
        %v3147 = vpop.f32.mrb[0].mxu0
        %v3148 = vpop.f32.mrb[0].mxu0
        %v3149 = vadd.f32 %v2988, %v3148
        %v3150 = vpop.f32.mrb[0].mxu0
        %3151 = vmatprep.mubr.bf16.mxu0 %v1746
        %3152 = vmatmul.mubr.bf16.gmra.mrb[0].mxu0 %v1977
        %v3153 = vpop.f32.mrb[0].mxu0
        %v3154 = vadd.f32 %v2993, %v3153
        %v3155 = vpop.f32.mrb[0].mxu0
        %v3156 = vpop.f32.mrb[0].mxu0
        %v3157 = vadd.f32 %v2996, %v3156
        %v3158 = vpop.f32.mrb[0].mxu0
        %3159 = vmatprep.mubr.bf16.mxu0 %v1747
        %3160 = vmatmul.mubr.bf16.gmra.mrb[0].mxu0 %v1978
        %v3161 = vpop.f32.mrb[0].mxu0
        %v3162 = vadd.f32 %v3001, %v3161
        %v3163 = vpop.f32.mrb[0].mxu0
        %v3164 = vpop.f32.mrb[0].mxu0
        %v3165 = vadd.f32 %v3004, %v3164
        %v3166 = vpop.f32.mrb[0].mxu0
        %3167 = vmatprep.mubr.bf16.mxu0 %v1748
        %3168 = vmatmul.mubr.bf16.gmra.mrb[0].mxu0 %v1979
        %v3169 = vpop.f32.mrb[0].mxu0
        %v3170 = vadd.f32 %v3009, %v3169
        %v3171 = vpop.f32.mrb[0].mxu0
        %v3172 = vpop.f32.mrb[0].mxu0
        %v3173 = vadd.f32 %v3012, %v3172
        %v3174 = vpop.f32.mrb[0].mxu0
        %3175 = vmatprep.mubr.bf16.mxu0 %v1749
        %3176 = vmatmul.mubr.bf16.gmra.mrb[0].mxu0 %v1980
        %v3177 = vpop.f32.mrb[0].mxu0
        %v3178 = vadd.f32 %v3017, %v3177
        %v3179 = vpop.f32.mrb[0].mxu0
        %v3180 = vpop.f32.mrb[0].mxu0
        %v3181 = vadd.f32 %v3020, %v3180
        %v3182 = vpop.f32.mrb[0].mxu0
        %3183 = vmatprep.mubr.bf16.mxu0 %v1750
        %3184 = vmatmul.mubr.bf16.gmra.mrb[0].mxu0 %v1981
        %v3185 = vpop.f32.mrb[0].mxu0
        %v3186 = vadd.f32 %v3025, %v3185
        %v3187 = vpop.f32.mrb[0].mxu0
        %v3188 = vpop.f32.mrb[0].mxu0
        %v3189 = vadd.f32 %v3028, %v3188
        %v3190 = vpop.f32.mrb[0].mxu0
        %3191 = vmatprep.mubr.bf16.mxu0 %v1751
        %3192 = vmatmul.mubr.bf16.gmra.mrb[0].mxu0 %v1982
        %v3193 = vpop.f32.mrb[0].mxu0
        %v3194 = vadd.f32 %v3033, %v3193
        %v3195 = vpop.f32.mrb[0].mxu0
        %v3196 = vpop.f32.mrb[0].mxu0
        %v3197 = vadd.f32 %v3036, %v3196
        %v3198 = vpop.f32.mrb[0].mxu0
        %3199 = vmatprep.mubr.bf16.mxu0 %v1752
        %3200 = vmatmul.mubr.bf16.gmra.mrb[0].mxu0 %v1983
        %v3201 = vpop.f32.mrb[0].mxu0
        %v3202 = vadd.f32 %v3041, %v3201
        %v3203 = vpop.f32.mrb[0].mxu0
        %v3204 = vpop.f32.mrb[0].mxu0
        %v3205 = vadd.f32 %v3044, %v3204
        %v3206 = vpop.f32.mrb[0].mxu0
        %3207 = vmatprep.mubr.bf16.mxu0 %v1753
        %3208 = vmatmul.mubr.bf16.gmra.mrb[0].mxu0 %v1984
        %v3209 = vpop.f32.mrb[0].mxu0
        %v3210 = vadd.f32 %v3049, %v3209
        %v3211 = vpop.f32.mrb[0].mxu0
        %v3212 = vpop.f32.mrb[0].mxu0
        %v3213 = vadd.f32 %v3052, %v3212
        %v3214 = vpop.f32.mrb[0].mxu0
        %3215 = vmatprep.mubr.bf16.mxu0 %v1754
        %3216 = vmatmul.mubr.bf16.gmra.mrb[0].mxu0 %v1985
        %v3217 = vpop.f32.mrb[0].mxu0
        %v3218 = vadd.f32 %v3057, %v3217
        %v3219 = vpop.f32.mrb[0].mxu0
        %v3220 = vpop.f32.mrb[0].mxu0
        %v3221 = vadd.f32 %v3060, %v3220
        %v3222 = vpop.f32.mrb[0].mxu0
        %3223 = vmatprep.mubr.bf16.mxu0 %v1755
        %3224 = vmatmul.mubr.bf16.gmra.mrb[0].mxu0 %v1986
        %v3225 = vpop.f32.mrb[0].mxu0
        %v3226 = vadd.f32 %v3065, %v3225
        %v3227 = vpop.f32.mrb[0].mxu0
        %v3228 = vpop.f32.mrb[0].mxu0
        %v3229 = vadd.f32 %v3068, %v3228
        %v3230 = vpop.f32.mrb[0].mxu0
        %3231 = vmatprep.mubr.bf16.mxu0 %v1756
        %3232 = vmatmul.mubr.bf16.gmra.mrb[0].mxu0 %v1987
        %v3233 = vpop.f32.mrb[0].mxu0
        %v3234 = vadd.f32 %v3073, %v3233
        %v3235 = vpop.f32.mrb[0].mxu0
        %v3236 = vpop.f32.mrb[0].mxu0
        %v3237 = vadd.f32 %v3076, %v3236
        %v3238 = vpop.f32.mrb[0].mxu0
        %3239 = vmatprep.mubr.bf16.mxu0 %v1757
        %3240 = vmatmul.mubr.bf16.gmra.mrb[0].mxu0 %v1988
        %v3241 = vpop.f32.mrb[0].mxu0
        %v3242 = vadd.f32 %v3081, %v3241
        %v3243 = vpop.f32.mrb[0].mxu0
        %v3244 = vpop.f32.mrb[0].mxu0
        %v3245 = vadd.f32 %v3084, %v3244
        %v3246 = vpop.f32.mrb[0].mxu0
        %3247 = vmatprep.mubr.bf16.mxu0 %v1890
        %3248 = vmatmul.mubr.bf16.gmra.mrb[0].mxu0 %v1989
        %v3249 = vpop.f32.mrb[0].mxu0
        %v3250 = vadd.f32 %v3089, %v3249
        %v3251 = vpop.f32.mrb[0].mxu0
        %v3252 = vpop.f32.mrb[0].mxu0
        %v3253 = vadd.f32 %v3092, %v3252
        %v3254 = vpop.f32.mrb[0].mxu0
        %3255 = vmatprep.mubr.bf16.mxu0 %v1993
        %3256 = vmatmul.mubr.bf16.gmra.mrb[0].mxu0 %v1990
        %v3257 = vpop.f32.mrb[0].mxu0
        %v3258 = vadd.f32 %v3097, %v3257
        %v3259 = vpop.f32.mrb[0].mxu0
        %v3260 = vpop.f32.mrb[0].mxu0
        %v3261 = vadd.f32 %v3100, %v3260
        %v3262 = vpop.f32.mrb[0].mxu0
        %3263 = vdwg.mxu0
        %3264 = vmatprep.subr.bf16.mxu0 0
        %3265 = vmatpush1.bf16.msra.mxu0 %v2540
        %3266 = vmatprep.subr.bf16.mxu0 0
        %3267 = vmatpush1.bf16.msra.mxu0 %v2541
        %3268 = vmatprep.subr.bf16.mxu0 0
        %3269 = vmatpush1.bf16.msra.mxu0 %v2542
        %3270 = vmatprep.subr.bf16.mxu0 0
        %3271 = vmatpush1.bf16.msra.mxu0 %v2543
        %3272 = vmatprep.subr.bf16.mxu0 0
        %3273 = vmatpush1.bf16.msra.mxu0 %v2544
        %3274 = vmatprep.subr.bf16.mxu0 0
        %3275 = vmatpush1.bf16.msra.mxu0 %v2545
        %3276 = vmatprep.subr.bf16.mxu0 0
        %3277 = vmatpush1.bf16.msra.mxu0 %v2546
        %3278 = vmatprep.subr.bf16.mxu0 0
        %3279 = vmatpush1.bf16.msra.mxu0 %v2547
        %3280 = vmatprep.subr.bf16.mxu0 0
        %3281 = vmatpush1.bf16.msra.mxu0 0
        %3282 = vmatprep.subr.bf16.mxu0 0
        %3283 = vmatpush1.bf16.msra.mxu0 0
        %3284 = vmatprep.subr.bf16.mxu0 0
        %3285 = vmatpush1.bf16.msra.mxu0 0
        %3286 = vmatprep.subr.bf16.mxu0 0
        %3287 = vmatpush1.bf16.msra.mxu0 0
        %3288 = vmatprep.subr.bf16.mxu0 0
        %3289 = vmatpush1.bf16.msra.mxu0 0
        %3290 = vmatprep.subr.bf16.mxu0 0
        %3291 = vmatpush1.bf16.msra.mxu0 0
        %3292 = vmatprep.subr.bf16.mxu0 0
        %3293 = vmatpush1.bf16.msra.mxu0 0
        %3294 = vmatprep.subr.bf16.mxu0 0
        %3295 = vmatpush1.bf16.msra.mxu0 0
        %3296 = vmatprep.mubr.bf16.mxu0 0
        %3297 = vmatmul.mubr.bf16.gmra.mrb[0].mxu0 %v2028
        %v3298 = vpop.f32.mrb[0].mxu0
        %v3299 = vadd.f32 %v3138, %v3298
        %v3300 = vpop.f32.mrb[0].mxu0
        %v3301 = vpop.f32.mrb[0].mxu0
        %v3302 = vadd.f32 %v3141, %v3301
        %v3303 = vpop.f32.mrb[0].mxu0
        %3304 = vmatprep.mubr.bf16.mxu0 0
        %3305 = vmatmul.mubr.bf16.gmra.mrb[0].mxu0 %v2029
        %v3306 = vpop.f32.mrb[0].mxu0
        %v3307 = vadd.f32 %v3146, %v3306
        %v3308 = vpop.f32.mrb[0].mxu0
        %v3309 = vpop.f32.mrb[0].mxu0
        %v3310 = vadd.f32 %v3149, %v3309
        %v3311 = vpop.f32.mrb[0].mxu0
        %3312 = vmatprep.mubr.bf16.mxu0 0
        %3313 = vmatmul.mubr.bf16.gmra.mrb[0].mxu0 %v2030
        %v3314 = vpop.f32.mrb[0].mxu0
        %v3315 = vadd.f32 %v3154, %v3314
        %v3316 = vpop.f32.mrb[0].mxu0
        %v3317 = vpop.f32.mrb[0].mxu0
        %v3318 = vadd.f32 %v3157, %v3317
        %v3319 = vpop.f32.mrb[0].mxu0
        %3320 = vmatprep.mubr.bf16.mxu0 0
        %3321 = vmatmul.mubr.bf16.gmra.mrb[0].mxu0 %v2031
        %v3322 = vpop.f32.mrb[0].mxu0
        %v3323 = vadd.f32 %v3162, %v3322
        %v3324 = vpop.f32.mrb[0].mxu0
        %v3325 = vpop.f32.mrb[0].mxu0
        %v3326 = vadd.f32 %v3165, %v3325
        %v3327 = vpop.f32.mrb[0].mxu0
        %3328 = vmatprep.mubr.bf16.mxu0 0
        %3329 = vmatmul.mubr.bf16.gmra.mrb[0].mxu0 %v2032
        %v3330 = vpop.f32.mrb[0].mxu0
        %v3331 = vadd.f32 %v3170, %v3330
        %v3332 = vpop.f32.mrb[0].mxu0
        %v3333 = vpop.f32.mrb[0].mxu0
        %v3334 = vadd.f32 %v3173, %v3333
        %v3335 = vpop.f32.mrb[0].mxu0
        %3336 = vmatprep.mubr.bf16.mxu0 0
        %3337 = vmatmul.mubr.bf16.gmra.mrb[0].mxu0 %v2033
        %v3338 = vpop.f32.mrb[0].mxu0
        %v3339 = vadd.f32 %v3178, %v3338
        %v3340 = vpop.f32.mrb[0].mxu0
        %v3341 = vpop.f32.mrb[0].mxu0
        %v3342 = vadd.f32 %v3181, %v3341
        %v3343 = vpop.f32.mrb[0].mxu0
        %3344 = vmatprep.mubr.bf16.mxu0 0
        %3345 = vmatmul.mubr.bf16.gmra.mrb[0].mxu0 %v2034
        %v3346 = vpop.f32.mrb[0].mxu0
        %v3347 = vadd.f32 %v3186, %v3346
        %v3348 = vpop.f32.mrb[0].mxu0
        %v3349 = vpop.f32.mrb[0].mxu0
        %v3350 = vadd.f32 %v3189, %v3349
        %v3351 = vpop.f32.mrb[0].mxu0
        %3352 = vmatprep.mubr.bf16.mxu0 0
        %3353 = vmatmul.mubr.bf16.gmra.mrb[0].mxu0 %v2035
        %v3354 = vpop.f32.mrb[0].mxu0
        %v3355 = vadd.f32 %v3194, %v3354
        %v3356 = vpop.f32.mrb[0].mxu0
        %v3357 = vpop.f32.mrb[0].mxu0
        %v3358 = vadd.f32 %v3197, %v3357
        %v3359 = vpop.f32.mrb[0].mxu0
        %3360 = vmatprep.mubr.bf16.mxu0 0
        %3361 = vmatmul.mubr.bf16.gmra.mrb[0].mxu0 %v2036
        %v3362 = vpop.f32.mrb[0].mxu0
        %v3363 = vadd.f32 %v3202, %v3362
        %v3364 = vpop.f32.mrb[0].mxu0
        %v3365 = vpop.f32.mrb[0].mxu0
        %v3366 = vadd.f32 %v3205, %v3365
        %v3367 = vpop.f32.mrb[0].mxu0
        %3368 = vmatprep.mubr.bf16.mxu0 0
        %3369 = vmatmul.mubr.bf16.gmra.mrb[0].mxu0 %v2037
        %v3370 = vpop.f32.mrb[0].mxu0
        %v3371 = vadd.f32 %v3210, %v3370
        %v3372 = vpop.f32.mrb[0].mxu0
        %v3373 = vpop.f32.mrb[0].mxu0
        %v3374 = vadd.f32 %v3213, %v3373
        %v3375 = vpop.f32.mrb[0].mxu0
        %3376 = vmatprep.mubr.bf16.mxu0 0
        %3377 = vmatmul.mubr.bf16.gmra.mrb[0].mxu0 %v2038
        %v3378 = vpop.f32.mrb[0].mxu0
        %v3379 = vadd.f32 %v3218, %v3378
        %v3380 = vpop.f32.mrb[0].mxu0
        %v3381 = vpop.f32.mrb[0].mxu0
        %v3382 = vadd.f32 %v3221, %v3381
        %v3383 = vpop.f32.mrb[0].mxu0
        %3384 = vmatprep.mubr.bf16.mxu0 0
        %3385 = vmatmul.mubr.bf16.gmra.mrb[0].mxu0 %v2039
        %v3386 = vpop.f32.mrb[0].mxu0
        %v3387 = vadd.f32 %v3226, %v3386
        %v3388 = vpop.f32.mrb[0].mxu0
        %v3389 = vpop.f32.mrb[0].mxu0
        %v3390 = vadd.f32 %v3229, %v3389
        %v3391 = vpop.f32.mrb[0].mxu0
        %3392 = vmatprep.mubr.bf16.mxu0 0
        %3393 = vmatmul.mubr.bf16.gmra.mrb[0].mxu0 %v2040
        %v3394 = vpop.f32.mrb[0].mxu0
        %v3395 = vadd.f32 %v3234, %v3394
        %v3396 = vpop.f32.mrb[0].mxu0
        %v3397 = vpop.f32.mrb[0].mxu0
        %v3398 = vadd.f32 %v3237, %v3397
        %v3399 = vpop.f32.mrb[0].mxu0
        %3400 = vmatprep.mubr.bf16.mxu0 0
        %3401 = vmatmul.mubr.bf16.gmra.mrb[0].mxu0 %v2041
        %v3402 = vpop.f32.mrb[0].mxu0
        %v3403 = vadd.f32 %v3242, %v3402
        %v3404 = vpop.f32.mrb[0].mxu0
        %v3405 = vpop.f32.mrb[0].mxu0
        %v3406 = vadd.f32 %v3245, %v3405
        %v3407 = vpop.f32.mrb[0].mxu0
        %3408 = vmatprep.mubr.bf16.mxu0 0
        %3409 = vmatmul.mubr.bf16.gmra.mrb[0].mxu0 %v2042
        %v3410 = vpop.f32.mrb[0].mxu0
        %v3411 = vadd.f32 %v3250, %v3410
        %v3412 = vpop.f32.mrb[0].mxu0
        %v3413 = vpop.f32.mrb[0].mxu0
        %v3414 = vadd.f32 %v3253, %v3413
        %v3415 = vpop.f32.mrb[0].mxu0
        %3416 = vmatprep.mubr.bf16.mxu0 0
        %3417 = vmatmul.mubr.bf16.gmra.mrb[0].mxu0 %v2043
        %v3418 = vpop.f32.mrb[0].mxu0
        %v3419 = vadd.f32 %v3258, %v3418
        %v3420 = vpop.f32.mrb[0].mxu0
        %v3421 = vpop.f32.mrb[0].mxu0
        %v3422 = vadd.f32 %v3261, %v3421
        %v3423 = vpop.f32.mrb[0].mxu0
        %3424 = vdwg.mxu0
        %v3425 = vld [vmem:[%s6] sm:$0x1]
        %v3427 = vlaneseq
        %v3428 = vshrl.u32 %v3427, 7
        %v3429 = vsub.s32 0, %v3428
        %v3430 = vrot.slane %v3425, %v3429
        %v3432 = vmul.f32 %v3299, %v3430
        %v3433 = vmul.f32 %v3302, %v3430
        %v3434 = vmul.f32 %v3307, %v3430
        %v3435 = vmul.f32 %v3310, %v3430
        %v3436 = vmul.f32 %v3315, %v3430
        %v3437 = vmul.f32 %v3318, %v3430
        %v3438 = vmul.f32 %v3323, %v3430
        %v3439 = vmul.f32 %v3326, %v3430
        %v3440 = vmul.f32 %v3331, %v3430
        %v3441 = vmul.f32 %v3334, %v3430
        %v3442 = vmul.f32 %v3339, %v3430
        %v3443 = vmul.f32 %v3342, %v3430
        %v3444 = vmul.f32 %v3347, %v3430
        %v3445 = vmul.f32 %v3350, %v3430
        %v3446 = vmul.f32 %v3355, %v3430
        %v3447 = vmul.f32 %v3358, %v3430
        %v3448 = vmul.f32 %v3363, %v3430
        %v3449 = vmul.f32 %v3366, %v3430
        %v3450 = vmul.f32 %v3371, %v3430
        %v3451 = vmul.f32 %v3374, %v3430
        %v3452 = vmul.f32 %v3379, %v3430
        %v3453 = vmul.f32 %v3382, %v3430
        %v3454 = vmul.f32 %v3387, %v3430
        %v3455 = vmul.f32 %v3390, %v3430
        %v3456 = vmul.f32 %v3395, %v3430
        %v3457 = vmul.f32 %v3398, %v3430
        %v3458 = vmul.f32 %v3403, %v3430
        %v3459 = vmul.f32 %v3406, %v3430
        %v3460 = vmul.f32 %v3411, %v3430
        %v3461 = vmul.f32 %v3414, %v3430
        %v3462 = vmul.f32 %v3419, %v3430
        %v3463 = vmul.f32 %v3422, %v3430
        %v3464 = vld [vmem:[%s7] sm:$0x1]
        %v3466 = vlaneseq
        %v3467 = vshrl.u32 %v3466, 7
        %v3468 = vsub.s32 0, %v3467
        %v3469 = vrot.slane %v3464, %v3468
        %v3471 = vadd.f32 %v3432, %v3469
        %v3472 = vadd.f32 %v3433, %v3469
        %v3473 = vadd.f32 %v3434, %v3469
        %v3474 = vadd.f32 %v3435, %v3469
        %v3475 = vadd.f32 %v3436, %v3469
        %v3476 = vadd.f32 %v3437, %v3469
        %v3477 = vadd.f32 %v3438, %v3469
        %v3478 = vadd.f32 %v3439, %v3469
        %v3479 = vadd.f32 %v3440, %v3469
        %v3480 = vadd.f32 %v3441, %v3469
        %v3481 = vadd.f32 %v3442, %v3469
        %v3482 = vadd.f32 %v3443, %v3469
        %v3483 = vadd.f32 %v3444, %v3469
        %v3484 = vadd.f32 %v3445, %v3469
        %v3485 = vadd.f32 %v3446, %v3469
        %v3486 = vadd.f32 %v3447, %v3469
        %v3487 = vadd.f32 %v3448, %v3469
        %v3488 = vadd.f32 %v3449, %v3469
        %v3489 = vadd.f32 %v3450, %v3469
        %v3490 = vadd.f32 %v3451, %v3469
        %v3491 = vadd.f32 %v3452, %v3469
        %v3492 = vadd.f32 %v3453, %v3469
        %v3493 = vadd.f32 %v3454, %v3469
        %v3494 = vadd.f32 %v3455, %v3469
        %v3495 = vadd.f32 %v3456, %v3469
        %v3496 = vadd.f32 %v3457, %v3469
        %v3497 = vadd.f32 %v3458, %v3469
        %v3498 = vadd.f32 %v3459, %v3469
        %v3499 = vadd.f32 %v3460, %v3469
        %v3500 = vadd.f32 %v3461, %v3469
        %v3501 = vadd.f32 %v3462, %v3469
        %v3502 = vadd.f32 %v3463, %v3469
        %v3503 = vmax.f32 %v3471, 0.0
        %v3504 = vmax.f32 %v3472, 0.0
        %v3505 = vmax.f32 %v3473, 0.0
        %v3506 = vmax.f32 %v3474, 0.0
        %v3507 = vmax.f32 %v3475, 0.0
        %v3508 = vmax.f32 %v3476, 0.0
        %v3509 = vmax.f32 %v3477, 0.0
        %v3510 = vmax.f32 %v3478, 0.0
        %v3511 = vmax.f32 %v3479, 0.0
        %v3512 = vmax.f32 %v3480, 0.0
        %v3513 = vmax.f32 %v3481, 0.0
        %v3514 = vmax.f32 %v3482, 0.0
        %v3515 = vmax.f32 %v3483, 0.0
        %v3516 = vmax.f32 %v3484, 0.0
        %v3517 = vmax.f32 %v3485, 0.0
        %v3518 = vmax.f32 %v3486, 0.0
        %v3519 = vmax.f32 %v3487, 0.0
        %v3520 = vmax.f32 %v3488, 0.0
        %v3521 = vmax.f32 %v3489, 0.0
        %v3522 = vmax.f32 %v3490, 0.0
        %v3523 = vmax.f32 %v3491, 0.0
        %v3524 = vmax.f32 %v3492, 0.0
        %v3525 = vmax.f32 %v3493, 0.0
        %v3526 = vmax.f32 %v3494, 0.0
        %v3527 = vmax.f32 %v3495, 0.0
        %v3528 = vmax.f32 %v3496, 0.0
        %v3529 = vmax.f32 %v3497, 0.0
        %v3530 = vmax.f32 %v3498, 0.0
        %v3531 = vmax.f32 %v3499, 0.0
        %v3532 = vmax.f32 %v3500, 0.0
        %v3533 = vmax.f32 %v3501, 0.0
        %v3534 = vmax.f32 %v3502, 0.0
        %v3535 = vpack.c.bf16 %v3504, %v3503
        %v3536 = vpack.c.bf16 %v3506, %v3505
        %v3537 = vpack.c.bf16 %v3508, %v3507
        %v3538 = vpack.c.bf16 %v3510, %v3509
        %v3539 = vpack.c.bf16 %v3512, %v3511
        %v3540 = vpack.c.bf16 %v3514, %v3513
        %v3541 = vpack.c.bf16 %v3516, %v3515
        %v3542 = vpack.c.bf16 %v3518, %v3517
        %v3543 = vpack.c.bf16 %v3520, %v3519
        %v3544 = vpack.c.bf16 %v3522, %v3521
        %v3545 = vpack.c.bf16 %v3524, %v3523
        %v3546 = vpack.c.bf16 %v3526, %v3525
        %v3547 = vpack.c.bf16 %v3528, %v3527
        %v3548 = vpack.c.bf16 %v3530, %v3529
        %v3549 = vpack.c.bf16 %v3532, %v3531
        %v3550 = vpack.c.bf16 %v3534, %v3533
        %v3551 = vld [vmem:[#allocation9] sm:$0xff]
        %v3552 = vld [vmem:[#allocation9 + $0x8] sm:$0xff]
        %v3553 = vld [vmem:[#allocation9 + $0x10] sm:$0xff]
        %v3554 = vld [vmem:[#allocation9 + $0x18] sm:$0xff]
        %v3555 = vld [vmem:[#allocation9 + $0x20] sm:$0xff]
        %v3556 = vld [vmem:[#allocation9 + $0x28] sm:$0xff]
        %v3557 = vld [vmem:[#allocation9 + $0x30] sm:$0xff]
        %v3558 = vld [vmem:[#allocation9 + $0x38] sm:$0xff]
        %v3559 = vld [vmem:[#allocation9 + $0x40] sm:$0xff]
        %v3560 = vld [vmem:[#allocation9 + $0x48] sm:$0xff]
        %v3561 = vld [vmem:[#allocation9 + $0x50] sm:$0xff]
        %v3562 = vld [vmem:[#allocation9 + $0x58] sm:$0xff]
        %v3563 = vld [vmem:[#allocation9 + $0x60] sm:$0xff]
        %v3564 = vld [vmem:[#allocation9 + $0x68] sm:$0xff]
        %v3565 = vld [vmem:[#allocation9 + $0x70] sm:$0xff]
        %v3566 = vld [vmem:[#allocation9 + $0x78] sm:$0xff]
        %v3567 = vld [vmem:[#allocation9 + $0x80] sm:$0xff]
        %v3568 = vld [vmem:[#allocation9 + $0x88] sm:$0xff]
        %v3569 = vld [vmem:[#allocation9 + $0x90] sm:$0xff]
        %v3570 = vld [vmem:[#allocation9 + $0x98] sm:$0xff]
        %v3571 = vld [vmem:[#allocation9 + $0xa0] sm:$0xff]
        %v3572 = vld [vmem:[#allocation9 + $0xa8] sm:$0xff]
        %v3573 = vld [vmem:[#allocation9 + $0xb0] sm:$0xff]
        %v3574 = vld [vmem:[#allocation9 + $0xb8] sm:$0xff]
        %v3575 = vld [vmem:[#allocation9 + $0xc0] sm:$0xff]
        %v3576 = vld [vmem:[#allocation9 + $0xc8] sm:$0xff]
        %v3577 = vld [vmem:[#allocation9 + $0xd0] sm:$0xff]
        %v3578 = vld [vmem:[#allocation9 + $0xd8] sm:$0xff]
        %v3579 = vld [vmem:[#allocation9 + $0xe0] sm:$0xff]
        %v3580 = vld [vmem:[#allocation9 + $0xe8] sm:$0xff]
        %v3581 = vld [vmem:[#allocation9 + $0xf0] sm:$0xff]
        %v3582 = vld [vmem:[#allocation9 + $0xf8] sm:$0xff]
        %v3615 = vunpack.c.l.b16 %v3551
        %v3616 = vunpack.c.h.b16 %v3551
        %v3617 = vunpack.c.l.b16 %v3552
        %v3618 = vunpack.c.h.b16 %v3552
        %v3619 = vunpack.c.l.b16 %v3553
        %v3620 = vunpack.c.h.b16 %v3553
        %v3621 = vunpack.c.l.b16 %v3554
        %v3622 = vunpack.c.h.b16 %v3554
        %v3623 = vunpack.c.l.b16 %v3555
        %v3624 = vunpack.c.h.b16 %v3555
        %v3625 = vunpack.c.l.b16 %v3556
        %v3626 = vunpack.c.h.b16 %v3556
        %v3627 = vunpack.c.l.b16 %v3557
        %v3628 = vunpack.c.h.b16 %v3557
        %v3629 = vunpack.c.l.b16 %v3558
        %v3630 = vunpack.c.h.b16 %v3558
        %v3631 = vunpack.c.l.b16 %v3559
        %v3632 = vunpack.c.h.b16 %v3559
        %v3633 = vunpack.c.l.b16 %v3560
        %v3634 = vunpack.c.h.b16 %v3560
        %v3635 = vunpack.c.l.b16 %v3561
        %v3636 = vunpack.c.h.b16 %v3561
        %v3637 = vunpack.c.l.b16 %v3562
        %v3638 = vunpack.c.h.b16 %v3562
        %v3639 = vunpack.c.l.b16 %v3563
        %v3640 = vunpack.c.h.b16 %v3563
        %v3641 = vunpack.c.l.b16 %v3564
        %v3642 = vunpack.c.h.b16 %v3564
        %v3643 = vunpack.c.l.b16 %v3565
        %v3644 = vunpack.c.h.b16 %v3565
        %v3645 = vunpack.c.l.b16 %v3566
        %v3646 = vunpack.c.h.b16 %v3566
        %v3647 = vunpack.c.l.b16 %v3567
        %v3648 = vunpack.c.h.b16 %v3567
        %v3649 = vunpack.c.l.b16 %v3568
        %v3650 = vunpack.c.h.b16 %v3568
        %v3651 = vunpack.c.l.b16 %v3569
        %v3652 = vunpack.c.h.b16 %v3569
        %v3653 = vunpack.c.l.b16 %v3570
        %v3654 = vunpack.c.h.b16 %v3570
        %v3655 = vunpack.c.l.b16 %v3571
        %v3656 = vunpack.c.h.b16 %v3571
        %v3657 = vunpack.c.l.b16 %v3572
        %v3658 = vunpack.c.h.b16 %v3572
        %v3659 = vunpack.c.l.b16 %v3573
        %v3660 = vunpack.c.h.b16 %v3573
        %v3661 = vunpack.c.l.b16 %v3574
        %v3662 = vunpack.c.h.b16 %v3574
        %v3663 = vunpack.c.l.b16 %v3575
        %v3664 = vunpack.c.h.b16 %v3575
        %v3665 = vunpack.c.l.b16 %v3576
        %v3666 = vunpack.c.h.b16 %v3576
        %v3667 = vunpack.c.l.b16 %v3577
        %v3668 = vunpack.c.h.b16 %v3577
        %v3669 = vunpack.c.l.b16 %v3578
        %v3670 = vunpack.c.h.b16 %v3578
        %v3671 = vunpack.c.l.b16 %v3579
        %v3672 = vunpack.c.h.b16 %v3579
        %v3673 = vunpack.c.l.b16 %v3580
        %v3674 = vunpack.c.h.b16 %v3580
        %v3675 = vunpack.c.l.b16 %v3581
        %v3676 = vunpack.c.h.b16 %v3581
        %v3677 = vunpack.c.l.b16 %v3582
        %v3678 = vunpack.c.h.b16 %v3582
        %v3679 = vpack.c.b16 %v3619, %v3615
        %v3680 = vpack.c.b16 %v3620, %v3616
        %v3681 = vpack.c.b16 %v3621, %v3617
        %v3682 = vpack.c.b16 %v3622, %v3618
        %v3683 = vpack.c.b16 %v3627, %v3623
        %v3684 = vpack.c.b16 %v3628, %v3624
        %v3685 = vpack.c.b16 %v3629, %v3625
        %v3686 = vpack.c.b16 %v3630, %v3626
        %v3687 = vpack.c.b16 %v3635, %v3631
        %v3688 = vpack.c.b16 %v3636, %v3632
        %v3689 = vpack.c.b16 %v3637, %v3633
        %v3690 = vpack.c.b16 %v3638, %v3634
        %v3691 = vpack.c.b16 %v3643, %v3639
        %v3692 = vpack.c.b16 %v3644, %v3640
        %v3693 = vpack.c.b16 %v3645, %v3641
        %v3694 = vpack.c.b16 %v3646, %v3642
        %v3695 = vpack.c.b16 %v3651, %v3647
        %v3696 = vpack.c.b16 %v3652, %v3648
        %v3697 = vpack.c.b16 %v3653, %v3649
        %v3698 = vpack.c.b16 %v3654, %v3650
        %v3699 = vpack.c.b16 %v3659, %v3655
        %v3700 = vpack.c.b16 %v3660, %v3656
        %v3701 = vpack.c.b16 %v3661, %v3657
        %v3702 = vpack.c.b16 %v3662, %v3658
        %v3703 = vpack.c.b16 %v3667, %v3663
        %v3704 = vpack.c.b16 %v3668, %v3664
        %v3705 = vpack.c.b16 %v3669, %v3665
        %v3706 = vpack.c.b16 %v3670, %v3666
        %v3707 = vpack.c.b16 %v3675, %v3671
        %v3708 = vpack.c.b16 %v3676, %v3672
        %v3709 = vpack.c.b16 %v3677, %v3673
        %v3710 = vpack.c.b16 %v3678, %v3674
        %3743 = vmatprep.subr.bf16.mxu0 %v3680
        %3744 = vmatpush1.bf16.msra.mxu0 %v3679
        %3745 = vmatprep.subr.bf16.mxu0 %v3684
        %3746 = vmatpush1.bf16.msra.mxu0 %v3683
        %3747 = vmatprep.subr.bf16.mxu0 %v3688
        %3748 = vmatpush1.bf16.msra.mxu0 %v3687
        %3749 = vmatprep.subr.bf16.mxu0 %v3692
        %3750 = vmatpush1.bf16.msra.mxu0 %v3691
        %3751 = vmatprep.subr.bf16.mxu0 %v3696
        %3752 = vmatpush1.bf16.msra.mxu0 %v3695
        %3753 = vmatprep.subr.bf16.mxu0 %v3700
        %3754 = vmatpush1.bf16.msra.mxu0 %v3699
        %3755 = vmatprep.subr.bf16.mxu0 %v3704
        %3756 = vmatpush1.bf16.msra.mxu0 %v3703
        %3757 = vmatprep.subr.bf16.mxu0 %v3708
        %3758 = vmatpush1.bf16.msra.mxu0 %v3707
        %3759 = vmatprep.subr.bf16.mxu0 0
        %3760 = vmatpush1.bf16.msra.mxu0 0
        %3761 = vmatprep.subr.bf16.mxu0 0
        %3762 = vmatpush1.bf16.msra.mxu0 0
        %3763 = vmatprep.subr.bf16.mxu0 0
        %3764 = vmatpush1.bf16.msra.mxu0 0
        %3765 = vmatprep.subr.bf16.mxu0 0
        %3766 = vmatpush1.bf16.msra.mxu0 0
        %3767 = vmatprep.subr.bf16.mxu0 0
        %3768 = vmatpush1.bf16.msra.mxu0 0
        %3769 = vmatprep.subr.bf16.mxu0 0
        %3770 = vmatpush1.bf16.msra.mxu0 0
        %3771 = vmatprep.subr.bf16.mxu0 0
        %3772 = vmatpush1.bf16.msra.mxu0 0
        %3773 = vmatprep.subr.bf16.mxu0 0
        %3774 = vmatpush1.bf16.msra.mxu0 0
        %3775 = vmatprep.mubr.bf16.mxu0 0
        %3776 = vmatmul.mubr.bf16.gmra.mrb[0].mxu0 %v3535
        %v3777 = vpop.f32.mrb[0].mxu0
        %v3778 = vadd.f32 0.0, %v3777
        %v3779 = vpop.f32.mrb[0].mxu0
        %v3780 = vadd.f32 0.0, %v3779
        %v3781 = vpop.f32.mrb[0].mxu0
        %v3782 = vadd.f32 0.0, %v3781
        %v3783 = vpop.f32.mrb[0].mxu0
        %v3784 = vadd.f32 0.0, %v3783
        %3785 = vmatprep.mubr.bf16.mxu0 0
        %3786 = vmatmul.mubr.bf16.gmra.mrb[0].mxu0 %v3536
        %v3787 = vpop.f32.mrb[0].mxu0
        %v3788 = vadd.f32 0.0, %v3787
        %v3789 = vpop.f32.mrb[0].mxu0
        %v3790 = vadd.f32 0.0, %v3789
        %v3791 = vpop.f32.mrb[0].mxu0
        %v3792 = vadd.f32 0.0, %v3791
        %v3793 = vpop.f32.mrb[0].mxu0
        %v3794 = vadd.f32 0.0, %v3793
        %3795 = vmatprep.mubr.bf16.mxu0 0
        %3796 = vmatmul.mubr.bf16.gmra.mrb[0].mxu0 %v3537
        %v3797 = vpop.f32.mrb[0].mxu0
        %v3798 = vadd.f32 0.0, %v3797
        %v3799 = vpop.f32.mrb[0].mxu0
        %v3800 = vadd.f32 0.0, %v3799
        %v3801 = vpop.f32.mrb[0].mxu0
        %v3802 = vadd.f32 0.0, %v3801
        %v3803 = vpop.f32.mrb[0].mxu0
        %v3804 = vadd.f32 0.0, %v3803
        %3805 = vmatprep.mubr.bf16.mxu0 0
        %3806 = vmatmul.mubr.bf16.gmra.mrb[0].mxu0 %v3538
        %v3807 = vpop.f32.mrb[0].mxu0
        %v3808 = vadd.f32 0.0, %v3807
        %v3809 = vpop.f32.mrb[0].mxu0
        %v3810 = vadd.f32 0.0, %v3809
        %v3811 = vpop.f32.mrb[0].mxu0
        %v3812 = vadd.f32 0.0, %v3811
        %v3813 = vpop.f32.mrb[0].mxu0
        %v3814 = vadd.f32 0.0, %v3813
        %3815 = vmatprep.mubr.bf16.mxu0 0
        %3816 = vmatmul.mubr.bf16.gmra.mrb[0].mxu0 %v3539
        %v3817 = vpop.f32.mrb[0].mxu0
        %v3818 = vadd.f32 0.0, %v3817
        %v3819 = vpop.f32.mrb[0].mxu0
        %v3820 = vadd.f32 0.0, %v3819
        %v3821 = vpop.f32.mrb[0].mxu0
        %v3822 = vadd.f32 0.0, %v3821
        %v3823 = vpop.f32.mrb[0].mxu0
        %v3824 = vadd.f32 0.0, %v3823
        %3825 = vmatprep.mubr.bf16.mxu0 0
        %3826 = vmatmul.mubr.bf16.gmra.mrb[0].mxu0 %v3540
        %v3827 = vpop.f32.mrb[0].mxu0
        %v3828 = vadd.f32 0.0, %v3827
        %v3829 = vpop.f32.mrb[0].mxu0
        %v3830 = vadd.f32 0.0, %v3829
        %v3831 = vpop.f32.mrb[0].mxu0
        %v3832 = vadd.f32 0.0, %v3831
        %v3833 = vpop.f32.mrb[0].mxu0
        %v3834 = vadd.f32 0.0, %v3833
        %3835 = vmatprep.mubr.bf16.mxu0 0
        %3836 = vmatmul.mubr.bf16.gmra.mrb[0].mxu0 %v3541
        %v3837 = vpop.f32.mrb[0].mxu0
        %v3838 = vadd.f32 0.0, %v3837
        %v3839 = vpop.f32.mrb[0].mxu0
        %v3840 = vadd.f32 0.0, %v3839
        %v3841 = vpop.f32.mrb[0].mxu0
        %v3842 = vadd.f32 0.0, %v3841
        %v3843 = vpop.f32.mrb[0].mxu0
        %v3844 = vadd.f32 0.0, %v3843
        %3845 = vmatprep.mubr.bf16.mxu0 0
        %3846 = vmatmul.mubr.bf16.gmra.mrb[0].mxu0 %v3542
        %v3847 = vpop.f32.mrb[0].mxu0
        %v3848 = vadd.f32 0.0, %v3847
        %v3849 = vpop.f32.mrb[0].mxu0
        %v3850 = vadd.f32 0.0, %v3849
        %v3851 = vpop.f32.mrb[0].mxu0
        %v3852 = vadd.f32 0.0, %v3851
        %v3853 = vpop.f32.mrb[0].mxu0
        %v3854 = vadd.f32 0.0, %v3853
        %3855 = vmatprep.mubr.bf16.mxu0 0
        %3856 = vmatmul.mubr.bf16.gmra.mrb[0].mxu0 %v3543
        %v3857 = vpop.f32.mrb[0].mxu0
        %v3858 = vadd.f32 0.0, %v3857
        %v3859 = vpop.f32.mrb[0].mxu0
        %v3860 = vadd.f32 0.0, %v3859
        %v3861 = vpop.f32.mrb[0].mxu0
        %v3862 = vadd.f32 0.0, %v3861
        %v3863 = vpop.f32.mrb[0].mxu0
        %v3864 = vadd.f32 0.0, %v3863
        %3865 = vmatprep.mubr.bf16.mxu0 0
        %3866 = vmatmul.mubr.bf16.gmra.mrb[0].mxu0 %v3544
        %v3867 = vpop.f32.mrb[0].mxu0
        %v3868 = vadd.f32 0.0, %v3867
        %v3869 = vpop.f32.mrb[0].mxu0
        %v3870 = vadd.f32 0.0, %v3869
        %v3871 = vpop.f32.mrb[0].mxu0
        %v3872 = vadd.f32 0.0, %v3871
        %v3873 = vpop.f32.mrb[0].mxu0
        %v3874 = vadd.f32 0.0, %v3873
        %3875 = vmatprep.mubr.bf16.mxu0 0
        %3876 = vmatmul.mubr.bf16.gmra.mrb[0].mxu0 %v3545
        %v3877 = vpop.f32.mrb[0].mxu0
        %v3878 = vadd.f32 0.0, %v3877
        %v3879 = vpop.f32.mrb[0].mxu0
        %v3880 = vadd.f32 0.0, %v3879
        %v3881 = vpop.f32.mrb[0].mxu0
        %v3882 = vadd.f32 0.0, %v3881
        %v3883 = vpop.f32.mrb[0].mxu0
        %v3884 = vadd.f32 0.0, %v3883
        %3885 = vmatprep.mubr.bf16.mxu0 0
        %3886 = vmatmul.mubr.bf16.gmra.mrb[0].mxu0 %v3546
        %v3887 = vpop.f32.mrb[0].mxu0
        %v3888 = vadd.f32 0.0, %v3887
        %v3889 = vpop.f32.mrb[0].mxu0
        %v3890 = vadd.f32 0.0, %v3889
        %v3891 = vpop.f32.mrb[0].mxu0
        %v3892 = vadd.f32 0.0, %v3891
        %v3893 = vpop.f32.mrb[0].mxu0
        %v3894 = vadd.f32 0.0, %v3893
        %3895 = vmatprep.mubr.bf16.mxu0 0
        %3896 = vmatmul.mubr.bf16.gmra.mrb[0].mxu0 %v3547
        %v3897 = vpop.f32.mrb[0].mxu0
        %v3898 = vadd.f32 0.0, %v3897
        %v3899 = vpop.f32.mrb[0].mxu0
        %v3900 = vadd.f32 0.0, %v3899
        %v3901 = vpop.f32.mrb[0].mxu0
        %v3902 = vadd.f32 0.0, %v3901
        %v3903 = vpop.f32.mrb[0].mxu0
        %v3904 = vadd.f32 0.0, %v3903
        %3905 = vmatprep.mubr.bf16.mxu0 0
        %3906 = vmatmul.mubr.bf16.gmra.mrb[0].mxu0 %v3548
        %v3907 = vpop.f32.mrb[0].mxu0
        %v3908 = vadd.f32 0.0, %v3907
        %v3909 = vpop.f32.mrb[0].mxu0
        %v3910 = vadd.f32 0.0, %v3909
        %v3911 = vpop.f32.mrb[0].mxu0
        %v3912 = vadd.f32 0.0, %v3911
        %v3913 = vpop.f32.mrb[0].mxu0
        %v3914 = vadd.f32 0.0, %v3913
        %3915 = vmatprep.mubr.bf16.mxu0 0
        %3916 = vmatmul.mubr.bf16.gmra.mrb[0].mxu0 %v3549
        %v3917 = vpop.f32.mrb[0].mxu0
        %v3918 = vadd.f32 0.0, %v3917
        %v3919 = vpop.f32.mrb[0].mxu0
        %v3920 = vadd.f32 0.0, %v3919
        %v3921 = vpop.f32.mrb[0].mxu0
        %v3922 = vadd.f32 0.0, %v3921
        %v3923 = vpop.f32.mrb[0].mxu0
        %v3924 = vadd.f32 0.0, %v3923
        %3925 = vmatprep.mubr.bf16.mxu0 0
        %3926 = vmatmul.mubr.bf16.gmra.mrb[0].mxu0 %v3550
        %v3927 = vpop.f32.mrb[0].mxu0
        %v3928 = vadd.f32 0.0, %v3927
        %v3929 = vpop.f32.mrb[0].mxu0
        %v3930 = vadd.f32 0.0, %v3929
        %v3931 = vpop.f32.mrb[0].mxu0
        %v3932 = vadd.f32 0.0, %v3931
        %v3933 = vpop.f32.mrb[0].mxu0
        %v3934 = vadd.f32 0.0, %v3933
        %3935 = vdwg.mxu0
        %3936 = vmatprep.subr.bf16.mxu0 %v3682
        %3937 = vmatpush1.bf16.msra.mxu0 %v3681
        %3938 = vmatprep.subr.bf16.mxu0 %v3686
        %3939 = vmatpush1.bf16.msra.mxu0 %v3685
        %3940 = vmatprep.subr.bf16.mxu0 %v3690
        %3941 = vmatpush1.bf16.msra.mxu0 %v3689
        %3942 = vmatprep.subr.bf16.mxu0 %v3694
        %3943 = vmatpush1.bf16.msra.mxu0 %v3693
        %3944 = vmatprep.subr.bf16.mxu0 %v3698
        %3945 = vmatpush1.bf16.msra.mxu0 %v3697
        %3946 = vmatprep.subr.bf16.mxu0 %v3702
        %3947 = vmatpush1.bf16.msra.mxu0 %v3701
        %3948 = vmatprep.subr.bf16.mxu0 %v3706
        %3949 = vmatpush1.bf16.msra.mxu0 %v3705
        %3950 = vmatprep.subr.bf16.mxu0 %v3710
        %3951 = vmatpush1.bf16.msra.mxu0 %v3709
        %3952 = vmatprep.subr.bf16.mxu0 0
        %3953 = vmatpush1.bf16.msra.mxu0 0
        %3954 = vmatprep.subr.bf16.mxu0 0
        %3955 = vmatpush1.bf16.msra.mxu0 0
        %3956 = vmatprep.subr.bf16.mxu0 0
        %3957 = vmatpush1.bf16.msra.mxu0 0
        %3958 = vmatprep.subr.bf16.mxu0 0
        %3959 = vmatpush1.bf16.msra.mxu0 0
        %3960 = vmatprep.subr.bf16.mxu0 0
        %3961 = vmatpush1.bf16.msra.mxu0 0
        %3962 = vmatprep.subr.bf16.mxu0 0
        %3963 = vmatpush1.bf16.msra.mxu0 0
        %3964 = vmatprep.subr.bf16.mxu0 0
        %3965 = vmatpush1.bf16.msra.mxu0 0
        %3966 = vmatprep.subr.bf16.mxu0 0
        %3967 = vmatpush1.bf16.msra.mxu0 0
        %3968 = vmatprep.mubr.bf16.mxu0 0
        %3969 = vmatmul.mubr.bf16.gmra.mrb[0].mxu0 %v3535
        %v3970 = vpop.f32.mrb[0].mxu0
        %v3971 = vadd.f32 0.0, %v3970
        %v3972 = vpop.f32.mrb[0].mxu0
        %v3973 = vadd.f32 0.0, %v3972
        %v3974 = vpop.f32.mrb[0].mxu0
        %v3975 = vadd.f32 0.0, %v3974
        %v3976 = vpop.f32.mrb[0].mxu0
        %v3977 = vadd.f32 0.0, %v3976
        %3978 = vmatprep.mubr.bf16.mxu0 0
        %3979 = vmatmul.mubr.bf16.gmra.mrb[0].mxu0 %v3536
        %v3980 = vpop.f32.mrb[0].mxu0
        %v3981 = vadd.f32 0.0, %v3980
        %v3982 = vpop.f32.mrb[0].mxu0
        %v3983 = vadd.f32 0.0, %v3982
        %v3984 = vpop.f32.mrb[0].mxu0
        %v3985 = vadd.f32 0.0, %v3984
        %v3986 = vpop.f32.mrb[0].mxu0
        %v3987 = vadd.f32 0.0, %v3986
        %3988 = vmatprep.mubr.bf16.mxu0 0
        %3989 = vmatmul.mubr.bf16.gmra.mrb[0].mxu0 %v3537
        %v3990 = vpop.f32.mrb[0].mxu0
        %v3991 = vadd.f32 0.0, %v3990
        %v3992 = vpop.f32.mrb[0].mxu0
        %v3993 = vadd.f32 0.0, %v3992
        %v3994 = vpop.f32.mrb[0].mxu0
        %v3995 = vadd.f32 0.0, %v3994
        %v3996 = vpop.f32.mrb[0].mxu0
        %v3997 = vadd.f32 0.0, %v3996
        %3998 = vmatprep.mubr.bf16.mxu0 0
        %3999 = vmatmul.mubr.bf16.gmra.mrb[0].mxu0 %v3538
        %v4000 = vpop.f32.mrb[0].mxu0
        %v4001 = vadd.f32 0.0, %v4000
        %v4002 = vpop.f32.mrb[0].mxu0
        %v4003 = vadd.f32 0.0, %v4002
        %v4004 = vpop.f32.mrb[0].mxu0
        %v4005 = vadd.f32 0.0, %v4004
        %v4006 = vpop.f32.mrb[0].mxu0
        %v4007 = vadd.f32 0.0, %v4006
        %4008 = vmatprep.mubr.bf16.mxu0 0
        %4009 = vmatmul.mubr.bf16.gmra.mrb[0].mxu0 %v3539
        %v4010 = vpop.f32.mrb[0].mxu0
        %v4011 = vadd.f32 0.0, %v4010
        %v4012 = vpop.f32.mrb[0].mxu0
        %v4013 = vadd.f32 0.0, %v4012
        %v4014 = vpop.f32.mrb[0].mxu0
        %v4015 = vadd.f32 0.0, %v4014
        %v4016 = vpop.f32.mrb[0].mxu0
        %v4017 = vadd.f32 0.0, %v4016
        %4018 = vmatprep.mubr.bf16.mxu0 0
        %4019 = vmatmul.mubr.bf16.gmra.mrb[0].mxu0 %v3540
        %v4020 = vpop.f32.mrb[0].mxu0
        %v4021 = vadd.f32 0.0, %v4020
        %v4022 = vpop.f32.mrb[0].mxu0
        %v4023 = vadd.f32 0.0, %v4022
        %v4024 = vpop.f32.mrb[0].mxu0
        %v4025 = vadd.f32 0.0, %v4024
        %v4026 = vpop.f32.mrb[0].mxu0
        %v4027 = vadd.f32 0.0, %v4026
        %4028 = vmatprep.mubr.bf16.mxu0 0
        %4029 = vmatmul.mubr.bf16.gmra.mrb[0].mxu0 %v3541
        %v4030 = vpop.f32.mrb[0].mxu0
        %v4031 = vadd.f32 0.0, %v4030
        %v4032 = vpop.f32.mrb[0].mxu0
        %v4033 = vadd.f32 0.0, %v4032
        %v4034 = vpop.f32.mrb[0].mxu0
        %v4035 = vadd.f32 0.0, %v4034
        %v4036 = vpop.f32.mrb[0].mxu0
        %v4037 = vadd.f32 0.0, %v4036
        %4038 = vmatprep.mubr.bf16.mxu0 0
        %4039 = vmatmul.mubr.bf16.gmra.mrb[0].mxu0 %v3542
        %v4040 = vpop.f32.mrb[0].mxu0
        %v4041 = vadd.f32 0.0, %v4040
        %v4042 = vpop.f32.mrb[0].mxu0
        %v4043 = vadd.f32 0.0, %v4042
        %v4044 = vpop.f32.mrb[0].mxu0
        %v4045 = vadd.f32 0.0, %v4044
        %v4046 = vpop.f32.mrb[0].mxu0
        %v4047 = vadd.f32 0.0, %v4046
        %4048 = vmatprep.mubr.bf16.mxu0 0
        %4049 = vmatmul.mubr.bf16.gmra.mrb[0].mxu0 %v3543
        %v4050 = vpop.f32.mrb[0].mxu0
        %v4051 = vadd.f32 0.0, %v4050
        %v4052 = vpop.f32.mrb[0].mxu0
        %v4053 = vadd.f32 0.0, %v4052
        %v4054 = vpop.f32.mrb[0].mxu0
        %v4055 = vadd.f32 0.0, %v4054
        %v4056 = vpop.f32.mrb[0].mxu0
        %v4057 = vadd.f32 0.0, %v4056
        %4058 = vmatprep.mubr.bf16.mxu0 0
        %4059 = vmatmul.mubr.bf16.gmra.mrb[0].mxu0 %v3544
        %v4060 = vpop.f32.mrb[0].mxu0
        %v4061 = vadd.f32 0.0, %v4060
        %v4062 = vpop.f32.mrb[0].mxu0
        %v4063 = vadd.f32 0.0, %v4062
        %v4064 = vpop.f32.mrb[0].mxu0
        %v4065 = vadd.f32 0.0, %v4064
        %v4066 = vpop.f32.mrb[0].mxu0
        %v4067 = vadd.f32 0.0, %v4066
        %4068 = vmatprep.mubr.bf16.mxu0 0
        %4069 = vmatmul.mubr.bf16.gmra.mrb[0].mxu0 %v3545
        %v4070 = vpop.f32.mrb[0].mxu0
        %v4071 = vadd.f32 0.0, %v4070
        %v4072 = vpop.f32.mrb[0].mxu0
        %v4073 = vadd.f32 0.0, %v4072
        %v4074 = vpop.f32.mrb[0].mxu0
        %v4075 = vadd.f32 0.0, %v4074
        %v4076 = vpop.f32.mrb[0].mxu0
        %v4077 = vadd.f32 0.0, %v4076
        %4078 = vmatprep.mubr.bf16.mxu0 0
        %4079 = vmatmul.mubr.bf16.gmra.mrb[0].mxu0 %v3546
        %v4080 = vpop.f32.mrb[0].mxu0
        %v4081 = vadd.f32 0.0, %v4080
        %v4082 = vpop.f32.mrb[0].mxu0
        %v4083 = vadd.f32 0.0, %v4082
        %v4084 = vpop.f32.mrb[0].mxu0
        %v4085 = vadd.f32 0.0, %v4084
        %v4086 = vpop.f32.mrb[0].mxu0
        %v4087 = vadd.f32 0.0, %v4086
        %4088 = vmatprep.mubr.bf16.mxu0 0
        %4089 = vmatmul.mubr.bf16.gmra.mrb[0].mxu0 %v3547
        %v4090 = vpop.f32.mrb[0].mxu0
        %v4091 = vadd.f32 0.0, %v4090
        %v4092 = vpop.f32.mrb[0].mxu0
        %v4093 = vadd.f32 0.0, %v4092
        %v4094 = vpop.f32.mrb[0].mxu0
        %v4095 = vadd.f32 0.0, %v4094
        %v4096 = vpop.f32.mrb[0].mxu0
        %v4097 = vadd.f32 0.0, %v4096
        %4098 = vmatprep.mubr.bf16.mxu0 0
        %4099 = vmatmul.mubr.bf16.gmra.mrb[0].mxu0 %v3548
        %v4100 = vpop.f32.mrb[0].mxu0
        %v4101 = vadd.f32 0.0, %v4100
        %v4102 = vpop.f32.mrb[0].mxu0
        %v4103 = vadd.f32 0.0, %v4102
        %v4104 = vpop.f32.mrb[0].mxu0
        %v4105 = vadd.f32 0.0, %v4104
        %v4106 = vpop.f32.mrb[0].mxu0
        %v4107 = vadd.f32 0.0, %v4106
        %4108 = vmatprep.mubr.bf16.mxu0 0
        %4109 = vmatmul.mubr.bf16.gmra.mrb[0].mxu0 %v3549
        %v4110 = vpop.f32.mrb[0].mxu0
        %v4111 = vadd.f32 0.0, %v4110
        %v4112 = vpop.f32.mrb[0].mxu0
        %v4113 = vadd.f32 0.0, %v4112
        %v4114 = vpop.f32.mrb[0].mxu0
        %v4115 = vadd.f32 0.0, %v4114
        %v4116 = vpop.f32.mrb[0].mxu0
        %v4117 = vadd.f32 0.0, %v4116
        %4118 = vmatprep.mubr.bf16.mxu0 0
        %4119 = vmatmul.mubr.bf16.gmra.mrb[0].mxu0 %v3550
        %v4120 = vpop.f32.mrb[0].mxu0
        %v4121 = vadd.f32 0.0, %v4120
        %v4122 = vpop.f32.mrb[0].mxu0
        %v4123 = vadd.f32 0.0, %v4122
        %v4124 = vpop.f32.mrb[0].mxu0
        %v4125 = vadd.f32 0.0, %v4124
        %v4126 = vpop.f32.mrb[0].mxu0
        %v4127 = vadd.f32 0.0, %v4126
        %4128 = vdwg.mxu0
        %v4129 = vld [vmem:[%s8] sm:$0xf]
        %v4131 = vlaneseq
        %v4132 = vshrl.u32 %v4131, 7
        %v4133 = vsub.s32 0, %v4132
        %v4134 = vrot.slane %v4129, %v4133
        %v4135 = vlaneseq
        %v4136 = vshrl.u32 %v4135, 7
        %v4137 = vsub.s32 1, %v4136
        %v4138 = vrot.slane %v4129, %v4137
        %v4139 = vlaneseq
        %v4140 = vshrl.u32 %v4139, 7
        %v4141 = vsub.s32 2, %v4140
        %v4142 = vrot.slane %v4129, %v4141
        %v4143 = vlaneseq
        %v4144 = vshrl.u32 %v4143, 7
        %v4145 = vsub.s32 3, %v4144
        %v4146 = vrot.slane %v4129, %v4145
        %v4151 = vmul.f32 %v3778, %v4134
        %v4152 = vmul.f32 %v3780, %v4138
        %v4153 = vmul.f32 %v3971, %v4142
        %v4154 = vmul.f32 %v3973, %v4146
        %v4155 = vmul.f32 %v3782, %v4134
        %v4156 = vmul.f32 %v3784, %v4138
        %v4157 = vmul.f32 %v3975, %v4142
        %v4158 = vmul.f32 %v3977, %v4146
        %v4159 = vmul.f32 %v3788, %v4134
        %v4160 = vmul.f32 %v3790, %v4138
        %v4161 = vmul.f32 %v3981, %v4142
        %v4162 = vmul.f32 %v3983, %v4146
        %v4163 = vmul.f32 %v3792, %v4134
        %v4164 = vmul.f32 %v3794, %v4138
        %v4165 = vmul.f32 %v3985, %v4142
        %v4166 = vmul.f32 %v3987, %v4146
        %v4167 = vmul.f32 %v3798, %v4134
        %v4168 = vmul.f32 %v3800, %v4138
        %v4169 = vmul.f32 %v3991, %v4142
        %v4170 = vmul.f32 %v3993, %v4146
        %v4171 = vmul.f32 %v3802, %v4134
        %v4172 = vmul.f32 %v3804, %v4138
        %v4173 = vmul.f32 %v3995, %v4142
        %v4174 = vmul.f32 %v3997, %v4146
        %v4175 = vmul.f32 %v3808, %v4134
        %v4176 = vmul.f32 %v3810, %v4138
        %v4177 = vmul.f32 %v4001, %v4142
        %v4178 = vmul.f32 %v4003, %v4146
        %v4179 = vmul.f32 %v3812, %v4134
        %v4180 = vmul.f32 %v3814, %v4138
        %v4181 = vmul.f32 %v4005, %v4142
        %v4182 = vmul.f32 %v4007, %v4146
        %v4183 = vmul.f32 %v3818, %v4134
        %v4184 = vmul.f32 %v3820, %v4138
        %v4185 = vmul.f32 %v4011, %v4142
        %v4186 = vmul.f32 %v4013, %v4146
        %v4187 = vmul.f32 %v3822, %v4134
        %v4188 = vmul.f32 %v3824, %v4138
        %v4189 = vmul.f32 %v4015, %v4142
        %v4190 = vmul.f32 %v4017, %v4146
        %v4191 = vmul.f32 %v3828, %v4134
        %v4192 = vmul.f32 %v3830, %v4138
        %v4193 = vmul.f32 %v4021, %v4142
        %v4194 = vmul.f32 %v4023, %v4146
        %v4195 = vmul.f32 %v3832, %v4134
        %v4196 = vmul.f32 %v3834, %v4138
        %v4197 = vmul.f32 %v4025, %v4142
        %v4198 = vmul.f32 %v4027, %v4146
        %v4199 = vmul.f32 %v3838, %v4134
        %v4200 = vmul.f32 %v3840, %v4138
        %v4201 = vmul.f32 %v4031, %v4142
        %v4202 = vmul.f32 %v4033, %v4146
        %v4203 = vmul.f32 %v3842, %v4134
        %v4204 = vmul.f32 %v3844, %v4138
        %v4205 = vmul.f32 %v4035, %v4142
        %v4206 = vmul.f32 %v4037, %v4146
        %v4207 = vmul.f32 %v3848, %v4134
        %v4208 = vmul.f32 %v3850, %v4138
        %v4209 = vmul.f32 %v4041, %v4142
        %v4210 = vmul.f32 %v4043, %v4146
        %v4211 = vmul.f32 %v3852, %v4134
        %v4212 = vmul.f32 %v3854, %v4138
        %v4213 = vmul.f32 %v4045, %v4142
        %v4214 = vmul.f32 %v4047, %v4146
        %v4215 = vmul.f32 %v3858, %v4134
        %v4216 = vmul.f32 %v3860, %v4138
        %v4217 = vmul.f32 %v4051, %v4142
        %v4218 = vmul.f32 %v4053, %v4146
        %v4219 = vmul.f32 %v3862, %v4134
        %v4220 = vmul.f32 %v3864, %v4138
        %v4221 = vmul.f32 %v4055, %v4142
        %v4222 = vmul.f32 %v4057, %v4146
        %v4223 = vmul.f32 %v3868, %v4134
        %v4224 = vmul.f32 %v3870, %v4138
        %v4225 = vmul.f32 %v4061, %v4142
        %v4226 = vmul.f32 %v4063, %v4146
        %v4227 = vmul.f32 %v3872, %v4134
        %v4228 = vmul.f32 %v3874, %v4138
        %v4229 = vmul.f32 %v4065, %v4142
        %v4230 = vmul.f32 %v4067, %v4146
        %v4231 = vmul.f32 %v3878, %v4134
        %v4232 = vmul.f32 %v3880, %v4138
        %v4233 = vmul.f32 %v4071, %v4142
        %v4234 = vmul.f32 %v4073, %v4146
        %v4235 = vmul.f32 %v3882, %v4134
        %v4236 = vmul.f32 %v3884, %v4138
        %v4237 = vmul.f32 %v4075, %v4142
        %v4238 = vmul.f32 %v4077, %v4146
        %v4239 = vmul.f32 %v3888, %v4134
        %v4240 = vmul.f32 %v3890, %v4138
        %v4241 = vmul.f32 %v4081, %v4142
        %v4242 = vmul.f32 %v4083, %v4146
        %v4243 = vmul.f32 %v3892, %v4134
        %v4244 = vmul.f32 %v3894, %v4138
        %v4245 = vmul.f32 %v4085, %v4142
        %v4246 = vmul.f32 %v4087, %v4146
        %v4247 = vmul.f32 %v3898, %v4134
        %v4248 = vmul.f32 %v3900, %v4138
        %v4249 = vmul.f32 %v4091, %v4142
        %v4250 = vmul.f32 %v4093, %v4146
        %v4251 = vmul.f32 %v3902, %v4134
        %v4252 = vmul.f32 %v3904, %v4138
        %v4253 = vmul.f32 %v4095, %v4142
        %v4254 = vmul.f32 %v4097, %v4146
        %v4255 = vmul.f32 %v3908, %v4134
        %v4256 = vmul.f32 %v3910, %v4138
        %v4257 = vmul.f32 %v4101, %v4142
        %v4258 = vmul.f32 %v4103, %v4146
        %v4259 = vmul.f32 %v3912, %v4134
        %v4260 = vmul.f32 %v3914, %v4138
        %v4261 = vmul.f32 %v4105, %v4142
        %v4262 = vmul.f32 %v4107, %v4146
        %v4263 = vmul.f32 %v3918, %v4134
        %v4264 = vmul.f32 %v3920, %v4138
        %v4265 = vmul.f32 %v4111, %v4142
        %v4266 = vmul.f32 %v4113, %v4146
        %v4267 = vmul.f32 %v3922, %v4134
        %v4268 = vmul.f32 %v3924, %v4138
        %v4269 = vmul.f32 %v4115, %v4142
        %v4270 = vmul.f32 %v4117, %v4146
        %v4271 = vmul.f32 %v3928, %v4134
        %v4272 = vmul.f32 %v3930, %v4138
        %v4273 = vmul.f32 %v4121, %v4142
        %v4274 = vmul.f32 %v4123, %v4146
        %v4275 = vmul.f32 %v3932, %v4134
        %v4276 = vmul.f32 %v3934, %v4138
        %v4277 = vmul.f32 %v4125, %v4142
        %v4278 = vmul.f32 %v4127, %v4146
        %v4279 = vld [vmem:[%s9] sm:$0xf]
        %v4281 = vlaneseq
        %v4282 = vshrl.u32 %v4281, 7
        %v4283 = vsub.s32 0, %v4282
        %v4284 = vrot.slane %v4279, %v4283
        %v4285 = vlaneseq
        %v4286 = vshrl.u32 %v4285, 7
        %v4287 = vsub.s32 1, %v4286
        %v4288 = vrot.slane %v4279, %v4287
        %v4289 = vlaneseq
        %v4290 = vshrl.u32 %v4289, 7
        %v4291 = vsub.s32 2, %v4290
        %v4292 = vrot.slane %v4279, %v4291
        %v4293 = vlaneseq
        %v4294 = vshrl.u32 %v4293, 7
        %v4295 = vsub.s32 3, %v4294
        %v4296 = vrot.slane %v4279, %v4295
        %v4301 = vadd.f32 %v4151, %v4284
        %v4302 = vadd.f32 %v4152, %v4288
        %v4303 = vadd.f32 %v4153, %v4292
        %v4304 = vadd.f32 %v4154, %v4296
        %v4305 = vadd.f32 %v4155, %v4284
        %v4306 = vadd.f32 %v4156, %v4288
        %v4307 = vadd.f32 %v4157, %v4292
        %v4308 = vadd.f32 %v4158, %v4296
        %v4309 = vadd.f32 %v4159, %v4284
        %v4310 = vadd.f32 %v4160, %v4288
        %v4311 = vadd.f32 %v4161, %v4292
        %v4312 = vadd.f32 %v4162, %v4296
        %v4313 = vadd.f32 %v4163, %v4284
        %v4314 = vadd.f32 %v4164, %v4288
        %v4315 = vadd.f32 %v4165, %v4292
        %v4316 = vadd.f32 %v4166, %v4296
        %v4317 = vadd.f32 %v4167, %v4284
        %v4318 = vadd.f32 %v4168, %v4288
        %v4319 = vadd.f32 %v4169, %v4292
        %v4320 = vadd.f32 %v4170, %v4296
        %v4321 = vadd.f32 %v4171, %v4284
        %v4322 = vadd.f32 %v4172, %v4288
        %v4323 = vadd.f32 %v4173, %v4292
        %v4324 = vadd.f32 %v4174, %v4296
        %v4325 = vadd.f32 %v4175, %v4284
        %v4326 = vadd.f32 %v4176, %v4288
        %v4327 = vadd.f32 %v4177, %v4292
        %v4328 = vadd.f32 %v4178, %v4296
        %v4329 = vadd.f32 %v4179, %v4284
        %v4330 = vadd.f32 %v4180, %v4288
        %v4331 = vadd.f32 %v4181, %v4292
        %v4332 = vadd.f32 %v4182, %v4296
        %v4333 = vadd.f32 %v4183, %v4284
        %v4334 = vadd.f32 %v4184, %v4288
        %v4335 = vadd.f32 %v4185, %v4292
        %v4336 = vadd.f32 %v4186, %v4296
        %v4337 = vadd.f32 %v4187, %v4284
        %v4338 = vadd.f32 %v4188, %v4288
        %v4339 = vadd.f32 %v4189, %v4292
        %v4340 = vadd.f32 %v4190, %v4296
        %v4341 = vadd.f32 %v4191, %v4284
        %v4342 = vadd.f32 %v4192, %v4288
        %v4343 = vadd.f32 %v4193, %v4292
        %v4344 = vadd.f32 %v4194, %v4296
        %v4345 = vadd.f32 %v4195, %v4284
        %v4346 = vadd.f32 %v4196, %v4288
        %v4347 = vadd.f32 %v4197, %v4292
        %v4348 = vadd.f32 %v4198, %v4296
        %v4349 = vadd.f32 %v4199, %v4284
        %v4350 = vadd.f32 %v4200, %v4288
        %v4351 = vadd.f32 %v4201, %v4292
        %v4352 = vadd.f32 %v4202, %v4296
        %v4353 = vadd.f32 %v4203, %v4284
        %v4354 = vadd.f32 %v4204, %v4288
        %v4355 = vadd.f32 %v4205, %v4292
        %v4356 = vadd.f32 %v4206, %v4296
        %v4357 = vadd.f32 %v4207, %v4284
        %v4358 = vadd.f32 %v4208, %v4288
        %v4359 = vadd.f32 %v4209, %v4292
        %v4360 = vadd.f32 %v4210, %v4296
        %v4361 = vadd.f32 %v4211, %v4284
        %v4362 = vadd.f32 %v4212, %v4288
        %v4363 = vadd.f32 %v4213, %v4292
        %v4364 = vadd.f32 %v4214, %v4296
        %v4365 = vadd.f32 %v4215, %v4284
        %v4366 = vadd.f32 %v4216, %v4288
        %v4367 = vadd.f32 %v4217, %v4292
        %v4368 = vadd.f32 %v4218, %v4296
        %v4369 = vadd.f32 %v4219, %v4284
        %v4370 = vadd.f32 %v4220, %v4288
        %v4371 = vadd.f32 %v4221, %v4292
        %v4372 = vadd.f32 %v4222, %v4296
        %v4373 = vadd.f32 %v4223, %v4284
        %v4374 = vadd.f32 %v4224, %v4288
        %v4375 = vadd.f32 %v4225, %v4292
        %v4376 = vadd.f32 %v4226, %v4296
        %v4377 = vadd.f32 %v4227, %v4284
        %v4378 = vadd.f32 %v4228, %v4288
        %v4379 = vadd.f32 %v4229, %v4292
        %v4380 = vadd.f32 %v4230, %v4296
        %v4381 = vadd.f32 %v4231, %v4284
        %v4382 = vadd.f32 %v4232, %v4288
        %v4383 = vadd.f32 %v4233, %v4292
        %v4384 = vadd.f32 %v4234, %v4296
        %v4385 = vadd.f32 %v4235, %v4284
        %v4386 = vadd.f32 %v4236, %v4288
        %v4387 = vadd.f32 %v4237, %v4292
        %v4388 = vadd.f32 %v4238, %v4296
        %v4389 = vadd.f32 %v4239, %v4284
        %v4390 = vadd.f32 %v4240, %v4288
        %v4391 = vadd.f32 %v4241, %v4292
        %v4392 = vadd.f32 %v4242, %v4296
        %v4393 = vadd.f32 %v4243, %v4284
        %v4394 = vadd.f32 %v4244, %v4288
        %v4395 = vadd.f32 %v4245, %v4292
        %v4396 = vadd.f32 %v4246, %v4296
        %v4397 = vadd.f32 %v4247, %v4284
        %v4398 = vadd.f32 %v4248, %v4288
        %v4399 = vadd.f32 %v4249, %v4292
        %v4400 = vadd.f32 %v4250, %v4296
        %v4401 = vadd.f32 %v4251, %v4284
        %v4402 = vadd.f32 %v4252, %v4288
        %v4403 = vadd.f32 %v4253, %v4292
        %v4404 = vadd.f32 %v4254, %v4296
        %v4405 = vadd.f32 %v4255, %v4284
        %v4406 = vadd.f32 %v4256, %v4288
        %v4407 = vadd.f32 %v4257, %v4292
        %v4408 = vadd.f32 %v4258, %v4296
        %v4409 = vadd.f32 %v4259, %v4284
        %v4410 = vadd.f32 %v4260, %v4288
        %v4411 = vadd.f32 %v4261, %v4292
        %v4412 = vadd.f32 %v4262, %v4296
        %v4413 = vadd.f32 %v4263, %v4284
        %v4414 = vadd.f32 %v4264, %v4288
        %v4415 = vadd.f32 %v4265, %v4292
        %v4416 = vadd.f32 %v4266, %v4296
        %v4417 = vadd.f32 %v4267, %v4284
        %v4418 = vadd.f32 %v4268, %v4288
        %v4419 = vadd.f32 %v4269, %v4292
        %v4420 = vadd.f32 %v4270, %v4296
        %v4421 = vadd.f32 %v4271, %v4284
        %v4422 = vadd.f32 %v4272, %v4288
        %v4423 = vadd.f32 %v4273, %v4292
        %v4424 = vadd.f32 %v4274, %v4296
        %v4425 = vadd.f32 %v4275, %v4284
        %v4426 = vadd.f32 %v4276, %v4288
        %v4427 = vadd.f32 %v4277, %v4292
        %v4428 = vadd.f32 %v4278, %v4296
        %v4429 = vld [vmem:[%s373] sm:$0xff]
        %v4430 = vld [vmem:[%s373 + $0x8] sm:$0xff]
        %v4431 = vld [vmem:[%s373 + $0x10] sm:$0xff]
        %v4432 = vld [vmem:[%s373 + $0x18] sm:$0xff]
        %v4433 = vld [vmem:[%s373 + $0x20] sm:$0xff]
        %v4434 = vld [vmem:[%s373 + $0x28] sm:$0xff]
        %v4435 = vld [vmem:[%s373 + $0x30] sm:$0xff]
        %v4436 = vld [vmem:[%s373 + $0x38] sm:$0xff]
        %v4437 = vld [vmem:[%s373 + $0x40] sm:$0xff]
        %v4438 = vld [vmem:[%s373 + $0x48] sm:$0xff]
        %v4439 = vld [vmem:[%s373 + $0x50] sm:$0xff]
        %v4440 = vld [vmem:[%s373 + $0x58] sm:$0xff]
        %v4441 = vld [vmem:[%s373 + $0x60] sm:$0xff]
        %v4442 = vld [vmem:[%s373 + $0x68] sm:$0xff]
        %v4443 = vld [vmem:[%s373 + $0x70] sm:$0xff]
        %v4444 = vld [vmem:[%s373 + $0x78] sm:$0xff]
        %v4445 = vld [vmem:[%s373 + $0x80] sm:$0xff]
        %v4446 = vld [vmem:[%s373 + $0x88] sm:$0xff]
        %v4447 = vld [vmem:[%s373 + $0x90] sm:$0xff]
        %v4448 = vld [vmem:[%s373 + $0x98] sm:$0xff]
        %v4449 = vld [vmem:[%s373 + $0xa0] sm:$0xff]
        %v4450 = vld [vmem:[%s373 + $0xa8] sm:$0xff]
        %v4451 = vld [vmem:[%s373 + $0xb0] sm:$0xff]
        %v4452 = vld [vmem:[%s373 + $0xb8] sm:$0xff]
        %v4453 = vld [vmem:[%s373 + $0xc0] sm:$0xff]
        %v4454 = vld [vmem:[%s373 + $0xc8] sm:$0xff]
        %v4455 = vld [vmem:[%s373 + $0xd0] sm:$0xff]
        %v4456 = vld [vmem:[%s373 + $0xd8] sm:$0xff]
        %v4457 = vld [vmem:[%s373 + $0xe0] sm:$0xff]
        %v4458 = vld [vmem:[%s373 + $0xe8] sm:$0xff]
        %v4459 = vld [vmem:[%s373 + $0xf0] sm:$0xff]
        %v4460 = vld [vmem:[%s373 + $0xf8] sm:$0xff]
        %v4461 = vld [vmem:[%s373 + $0x100] sm:$0xff]
        %v4462 = vld [vmem:[%s373 + $0x108] sm:$0xff]
        %v4463 = vld [vmem:[%s373 + $0x110] sm:$0xff]
        %v4464 = vld [vmem:[%s373 + $0x118] sm:$0xff]
        %v4465 = vld [vmem:[%s373 + $0x120] sm:$0xff]
        %v4466 = vld [vmem:[%s373 + $0x128] sm:$0xff]
        %v4467 = vld [vmem:[%s373 + $0x130] sm:$0xff]
        %v4468 = vld [vmem:[%s373 + $0x138] sm:$0xff]
        %v4469 = vld [vmem:[%s373 + $0x140] sm:$0xff]
        %v4470 = vld [vmem:[%s373 + $0x148] sm:$0xff]
        %v4471 = vld [vmem:[%s373 + $0x150] sm:$0xff]
        %v4472 = vld [vmem:[%s373 + $0x158] sm:$0xff]
        %v4473 = vld [vmem:[%s373 + $0x160] sm:$0xff]
        %v4474 = vld [vmem:[%s373 + $0x168] sm:$0xff]
        %v4475 = vld [vmem:[%s373 + $0x170] sm:$0xff]
        %v4476 = vld [vmem:[%s373 + $0x178] sm:$0xff]
        %v4477 = vld [vmem:[%s373 + $0x180] sm:$0xff]
        %v4478 = vld [vmem:[%s373 + $0x188] sm:$0xff]
        %v4479 = vld [vmem:[%s373 + $0x190] sm:$0xff]
        %v4480 = vld [vmem:[%s373 + $0x198] sm:$0xff]
        %v4481 = vld [vmem:[%s373 + $0x1a0] sm:$0xff]
        %v4482 = vld [vmem:[%s373 + $0x1a8] sm:$0xff]
        %v4483 = vld [vmem:[%s373 + $0x1b0] sm:$0xff]
        %v4484 = vld [vmem:[%s373 + $0x1b8] sm:$0xff]
        %v4485 = vld [vmem:[%s373 + $0x1c0] sm:$0xff]
        %v4486 = vld [vmem:[%s373 + $0x1c8] sm:$0xff]
        %v4487 = vld [vmem:[%s373 + $0x1d0] sm:$0xff]
        %v4488 = vld [vmem:[%s373 + $0x1d8] sm:$0xff]
        %v4489 = vld [vmem:[%s373 + $0x1e0] sm:$0xff]
        %v4490 = vld [vmem:[%s373 + $0x1e8] sm:$0xff]
        %v4491 = vld [vmem:[%s373 + $0x1f0] sm:$0xff]
        %v4492 = vld [vmem:[%s373 + $0x1f8] sm:$0xff]
        %v4493 = vld [vmem:[%s373 + $0x200] sm:$0xff]
        %v4494 = vld [vmem:[%s373 + $0x208] sm:$0xff]
        %v4495 = vld [vmem:[%s373 + $0x210] sm:$0xff]
        %v4496 = vld [vmem:[%s373 + $0x218] sm:$0xff]
        %v4497 = vld [vmem:[%s373 + $0x220] sm:$0xff]
        %v4498 = vld [vmem:[%s373 + $0x228] sm:$0xff]
        %v4499 = vld [vmem:[%s373 + $0x230] sm:$0xff]
        %v4500 = vld [vmem:[%s373 + $0x238] sm:$0xff]
        %v4501 = vld [vmem:[%s373 + $0x240] sm:$0xff]
        %v4502 = vld [vmem:[%s373 + $0x248] sm:$0xff]
        %v4503 = vld [vmem:[%s373 + $0x250] sm:$0xff]
        %v4504 = vld [vmem:[%s373 + $0x258] sm:$0xff]
        %v4505 = vld [vmem:[%s373 + $0x260] sm:$0xff]
        %v4506 = vld [vmem:[%s373 + $0x268] sm:$0xff]
        %v4507 = vld [vmem:[%s373 + $0x270] sm:$0xff]
        %v4508 = vld [vmem:[%s373 + $0x278] sm:$0xff]
        %v4509 = vld [vmem:[%s373 + $0x280] sm:$0xff]
        %v4510 = vld [vmem:[%s373 + $0x288] sm:$0xff]
        %v4511 = vld [vmem:[%s373 + $0x290] sm:$0xff]
        %v4512 = vld [vmem:[%s373 + $0x298] sm:$0xff]
        %v4513 = vld [vmem:[%s373 + $0x2a0] sm:$0xff]
        %v4514 = vld [vmem:[%s373 + $0x2a8] sm:$0xff]
        %v4515 = vld [vmem:[%s373 + $0x2b0] sm:$0xff]
        %v4516 = vld [vmem:[%s373 + $0x2b8] sm:$0xff]
        %v4517 = vld [vmem:[%s373 + $0x2c0] sm:$0xff]
        %v4518 = vld [vmem:[%s373 + $0x2c8] sm:$0xff]
        %v4519 = vld [vmem:[%s373 + $0x2d0] sm:$0xff]
        %v4520 = vld [vmem:[%s373 + $0x2d8] sm:$0xff]
        %v4521 = vld [vmem:[%s373 + $0x2e0] sm:$0xff]
        %v4522 = vld [vmem:[%s373 + $0x2e8] sm:$0xff]
        %v4523 = vld [vmem:[%s373 + $0x2f0] sm:$0xff]
        %v4524 = vld [vmem:[%s373 + $0x2f8] sm:$0xff]
        %v4525 = vld [vmem:[%s373 + $0x300] sm:$0xff]
        %v4526 = vld [vmem:[%s373 + $0x308] sm:$0xff]
        %v4527 = vld [vmem:[%s373 + $0x310] sm:$0xff]
        %v4528 = vld [vmem:[%s373 + $0x318] sm:$0xff]
        %v4529 = vld [vmem:[%s373 + $0x320] sm:$0xff]
        %v4530 = vld [vmem:[%s373 + $0x328] sm:$0xff]
        %v4531 = vld [vmem:[%s373 + $0x330] sm:$0xff]
        %v4532 = vld [vmem:[%s373 + $0x338] sm:$0xff]
        %v4533 = vld [vmem:[%s373 + $0x340] sm:$0xff]
        %v4534 = vld [vmem:[%s373 + $0x348] sm:$0xff]
        %v4535 = vld [vmem:[%s373 + $0x350] sm:$0xff]
        %v4536 = vld [vmem:[%s373 + $0x358] sm:$0xff]
        %v4537 = vld [vmem:[%s373 + $0x360] sm:$0xff]
        %v4538 = vld [vmem:[%s373 + $0x368] sm:$0xff]
        %v4539 = vld [vmem:[%s373 + $0x370] sm:$0xff]
        %v4540 = vld [vmem:[%s373 + $0x378] sm:$0xff]
        %v4541 = vld [vmem:[%s373 + $0x380] sm:$0xff]
        %v4542 = vld [vmem:[%s373 + $0x388] sm:$0xff]
        %v4543 = vld [vmem:[%s373 + $0x390] sm:$0xff]
        %v4544 = vld [vmem:[%s373 + $0x398] sm:$0xff]
        %v4545 = vld [vmem:[%s373 + $0x3a0] sm:$0xff]
        %v4546 = vld [vmem:[%s373 + $0x3a8] sm:$0xff]
        %v4547 = vld [vmem:[%s373 + $0x3b0] sm:$0xff]
        %v4548 = vld [vmem:[%s373 + $0x3b8] sm:$0xff]
        %v4549 = vld [vmem:[%s373 + $0x3c0] sm:$0xff]
        %v4550 = vld [vmem:[%s373 + $0x3c8] sm:$0xff]
        %v4551 = vld [vmem:[%s373 + $0x3d0] sm:$0xff]
        %v4552 = vld [vmem:[%s373 + $0x3d8] sm:$0xff]
        %v4553 = vld [vmem:[%s373 + $0x3e0] sm:$0xff]
        %v4554 = vld [vmem:[%s373 + $0x3e8] sm:$0xff]
        %v4555 = vld [vmem:[%s373 + $0x3f0] sm:$0xff]
        %v4556 = vld [vmem:[%s373 + $0x3f8] sm:$0xff]
        %v4557 = vadd.f32 %v4301, %v4429
        %v4558 = vadd.f32 %v4302, %v4430
        %v4559 = vadd.f32 %v4303, %v4431
        %v4560 = vadd.f32 %v4304, %v4432
        %v4561 = vadd.f32 %v4305, %v4433
        %v4562 = vadd.f32 %v4306, %v4434
        %v4563 = vadd.f32 %v4307, %v4435
        %v4564 = vadd.f32 %v4308, %v4436
        %v4565 = vadd.f32 %v4309, %v4437
        %v4566 = vadd.f32 %v4310, %v4438
        %v4567 = vadd.f32 %v4311, %v4439
        %v4568 = vadd.f32 %v4312, %v4440
        %v4569 = vadd.f32 %v4313, %v4441
        %v4570 = vadd.f32 %v4314, %v4442
        %v4571 = vadd.f32 %v4315, %v4443
        %v4572 = vadd.f32 %v4316, %v4444
        %v4573 = vadd.f32 %v4317, %v4445
        %v4574 = vadd.f32 %v4318, %v4446
        %v4575 = vadd.f32 %v4319, %v4447
        %v4576 = vadd.f32 %v4320, %v4448
        %v4577 = vadd.f32 %v4321, %v4449
        %v4578 = vadd.f32 %v4322, %v4450
        %v4579 = vadd.f32 %v4323, %v4451
        %v4580 = vadd.f32 %v4324, %v4452
        %v4581 = vadd.f32 %v4325, %v4453
        %v4582 = vadd.f32 %v4326, %v4454
        %v4583 = vadd.f32 %v4327, %v4455
        %v4584 = vadd.f32 %v4328, %v4456
        %v4585 = vadd.f32 %v4329, %v4457
        %v4586 = vadd.f32 %v4330, %v4458
        %v4587 = vadd.f32 %v4331, %v4459
        %v4588 = vadd.f32 %v4332, %v4460
        %v4589 = vadd.f32 %v4333, %v4461
        %v4590 = vadd.f32 %v4334, %v4462
        %v4591 = vadd.f32 %v4335, %v4463
        %v4592 = vadd.f32 %v4336, %v4464
        %v4593 = vadd.f32 %v4337, %v4465
        %v4594 = vadd.f32 %v4338, %v4466
        %v4595 = vadd.f32 %v4339, %v4467
        %v4596 = vadd.f32 %v4340, %v4468
        %v4597 = vadd.f32 %v4341, %v4469
        %v4598 = vadd.f32 %v4342, %v4470
        %v4599 = vadd.f32 %v4343, %v4471
        %v4600 = vadd.f32 %v4344, %v4472
        %v4601 = vadd.f32 %v4345, %v4473
        %v4602 = vadd.f32 %v4346, %v4474
        %v4603 = vadd.f32 %v4347, %v4475
        %v4604 = vadd.f32 %v4348, %v4476
        %v4605 = vadd.f32 %v4349, %v4477
        %v4606 = vadd.f32 %v4350, %v4478
        %v4607 = vadd.f32 %v4351, %v4479
        %v4608 = vadd.f32 %v4352, %v4480
        %v4609 = vadd.f32 %v4353, %v4481
        %v4610 = vadd.f32 %v4354, %v4482
        %v4611 = vadd.f32 %v4355, %v4483
        %v4612 = vadd.f32 %v4356, %v4484
        %v4613 = vadd.f32 %v4357, %v4485
        %v4614 = vadd.f32 %v4358, %v4486
        %v4615 = vadd.f32 %v4359, %v4487
        %v4616 = vadd.f32 %v4360, %v4488
        %v4617 = vadd.f32 %v4361, %v4489
        %v4618 = vadd.f32 %v4362, %v4490
        %v4619 = vadd.f32 %v4363, %v4491
        %v4620 = vadd.f32 %v4364, %v4492
        %v4621 = vadd.f32 %v4365, %v4493
        %v4622 = vadd.f32 %v4366, %v4494
        %v4623 = vadd.f32 %v4367, %v4495
        %v4624 = vadd.f32 %v4368, %v4496
        %v4625 = vadd.f32 %v4369, %v4497
        %v4626 = vadd.f32 %v4370, %v4498
        %v4627 = vadd.f32 %v4371, %v4499
        %v4628 = vadd.f32 %v4372, %v4500
        %v4629 = vadd.f32 %v4373, %v4501
        %v4630 = vadd.f32 %v4374, %v4502
        %v4631 = vadd.f32 %v4375, %v4503
        %v4632 = vadd.f32 %v4376, %v4504
        %v4633 = vadd.f32 %v4377, %v4505
        %v4634 = vadd.f32 %v4378, %v4506
        %v4635 = vadd.f32 %v4379, %v4507
        %v4636 = vadd.f32 %v4380, %v4508
        %v4637 = vadd.f32 %v4381, %v4509
        %v4638 = vadd.f32 %v4382, %v4510
        %v4639 = vadd.f32 %v4383, %v4511
        %v4640 = vadd.f32 %v4384, %v4512
        %v4641 = vadd.f32 %v4385, %v4513
        %v4642 = vadd.f32 %v4386, %v4514
        %v4643 = vadd.f32 %v4387, %v4515
        %v4644 = vadd.f32 %v4388, %v4516
        %v4645 = vadd.f32 %v4389, %v4517
        %v4646 = vadd.f32 %v4390, %v4518
        %v4647 = vadd.f32 %v4391, %v4519
        %v4648 = vadd.f32 %v4392, %v4520
        %v4649 = vadd.f32 %v4393, %v4521
        %v4650 = vadd.f32 %v4394, %v4522
        %v4651 = vadd.f32 %v4395, %v4523
        %v4652 = vadd.f32 %v4396, %v4524
        %v4653 = vadd.f32 %v4397, %v4525
        %v4654 = vadd.f32 %v4398, %v4526
        %v4655 = vadd.f32 %v4399, %v4527
        %v4656 = vadd.f32 %v4400, %v4528
        %v4657 = vadd.f32 %v4401, %v4529
        %v4658 = vadd.f32 %v4402, %v4530
        %v4659 = vadd.f32 %v4403, %v4531
        %v4660 = vadd.f32 %v4404, %v4532
        %v4661 = vadd.f32 %v4405, %v4533
        %v4662 = vadd.f32 %v4406, %v4534
        %v4663 = vadd.f32 %v4407, %v4535
        %v4664 = vadd.f32 %v4408, %v4536
        %v4665 = vadd.f32 %v4409, %v4537
        %v4666 = vadd.f32 %v4410, %v4538
        %v4667 = vadd.f32 %v4411, %v4539
        %v4668 = vadd.f32 %v4412, %v4540
        %v4669 = vadd.f32 %v4413, %v4541
        %v4670 = vadd.f32 %v4414, %v4542
        %v4671 = vadd.f32 %v4415, %v4543
        %v4672 = vadd.f32 %v4416, %v4544
        %v4673 = vadd.f32 %v4417, %v4545
        %v4674 = vadd.f32 %v4418, %v4546
        %v4675 = vadd.f32 %v4419, %v4547
        %v4676 = vadd.f32 %v4420, %v4548
        %v4677 = vadd.f32 %v4421, %v4549
        %v4678 = vadd.f32 %v4422, %v4550
        %v4679 = vadd.f32 %v4423, %v4551
        %v4680 = vadd.f32 %v4424, %v4552
        %v4681 = vadd.f32 %v4425, %v4553
        %v4682 = vadd.f32 %v4426, %v4554
        %v4683 = vadd.f32 %v4427, %v4555
        %v4684 = vadd.f32 %v4428, %v4556
        %v4685 = vmax.f32 %v4557, 0.0
        %v4686 = vmax.f32 %v4558, 0.0
        %v4687 = vmax.f32 %v4559, 0.0
        %v4688 = vmax.f32 %v4560, 0.0
        %v4689 = vmax.f32 %v4561, 0.0
        %v4690 = vmax.f32 %v4562, 0.0
        %v4691 = vmax.f32 %v4563, 0.0
        %v4692 = vmax.f32 %v4564, 0.0
        %v4693 = vmax.f32 %v4565, 0.0
        %v4694 = vmax.f32 %v4566, 0.0
        %v4695 = vmax.f32 %v4567, 0.0
        %v4696 = vmax.f32 %v4568, 0.0
        %v4697 = vmax.f32 %v4569, 0.0
        %v4698 = vmax.f32 %v4570, 0.0
        %v4699 = vmax.f32 %v4571, 0.0
        %v4700 = vmax.f32 %v4572, 0.0
        %v4701 = vmax.f32 %v4573, 0.0
        %v4702 = vmax.f32 %v4574, 0.0
        %v4703 = vmax.f32 %v4575, 0.0
        %v4704 = vmax.f32 %v4576, 0.0
        %v4705 = vmax.f32 %v4577, 0.0
        %v4706 = vmax.f32 %v4578, 0.0
        %v4707 = vmax.f32 %v4579, 0.0
        %v4708 = vmax.f32 %v4580, 0.0
        %v4709 = vmax.f32 %v4581, 0.0
        %v4710 = vmax.f32 %v4582, 0.0
        %v4711 = vmax.f32 %v4583, 0.0
        %v4712 = vmax.f32 %v4584, 0.0
        %v4713 = vmax.f32 %v4585, 0.0
        %v4714 = vmax.f32 %v4586, 0.0
        %v4715 = vmax.f32 %v4587, 0.0
        %v4716 = vmax.f32 %v4588, 0.0
        %v4717 = vmax.f32 %v4589, 0.0
        %v4718 = vmax.f32 %v4590, 0.0
        %v4719 = vmax.f32 %v4591, 0.0
        %v4720 = vmax.f32 %v4592, 0.0
        %v4721 = vmax.f32 %v4593, 0.0
        %v4722 = vmax.f32 %v4594, 0.0
        %v4723 = vmax.f32 %v4595, 0.0
        %v4724 = vmax.f32 %v4596, 0.0
        %v4725 = vmax.f32 %v4597, 0.0
        %v4726 = vmax.f32 %v4598, 0.0
        %v4727 = vmax.f32 %v4599, 0.0
        %v4728 = vmax.f32 %v4600, 0.0
        %v4729 = vmax.f32 %v4601, 0.0
        %v4730 = vmax.f32 %v4602, 0.0
        %v4731 = vmax.f32 %v4603, 0.0
        %v4732 = vmax.f32 %v4604, 0.0
        %v4733 = vmax.f32 %v4605, 0.0
        %v4734 = vmax.f32 %v4606, 0.0
        %v4735 = vmax.f32 %v4607, 0.0
        %v4736 = vmax.f32 %v4608, 0.0
        %v4737 = vmax.f32 %v4609, 0.0
        %v4738 = vmax.f32 %v4610, 0.0
        %v4739 = vmax.f32 %v4611, 0.0
        %v4740 = vmax.f32 %v4612, 0.0
        %v4741 = vmax.f32 %v4613, 0.0
        %v4742 = vmax.f32 %v4614, 0.0
        %v4743 = vmax.f32 %v4615, 0.0
        %v4744 = vmax.f32 %v4616, 0.0
        %v4745 = vmax.f32 %v4617, 0.0
        %v4746 = vmax.f32 %v4618, 0.0
        %v4747 = vmax.f32 %v4619, 0.0
        %v4748 = vmax.f32 %v4620, 0.0
        %v4749 = vmax.f32 %v4621, 0.0
        %v4750 = vmax.f32 %v4622, 0.0
        %v4751 = vmax.f32 %v4623, 0.0
        %v4752 = vmax.f32 %v4624, 0.0
        %v4753 = vmax.f32 %v4625, 0.0
        %v4754 = vmax.f32 %v4626, 0.0
        %v4755 = vmax.f32 %v4627, 0.0
        %v4756 = vmax.f32 %v4628, 0.0
        %v4757 = vmax.f32 %v4629, 0.0
        %v4758 = vmax.f32 %v4630, 0.0
        %v4759 = vmax.f32 %v4631, 0.0
        %v4760 = vmax.f32 %v4632, 0.0
        %v4761 = vmax.f32 %v4633, 0.0
        %v4762 = vmax.f32 %v4634, 0.0
        %v4763 = vmax.f32 %v4635, 0.0
        %v4764 = vmax.f32 %v4636, 0.0
        %v4765 = vmax.f32 %v4637, 0.0
        %v4766 = vmax.f32 %v4638, 0.0
        %v4767 = vmax.f32 %v4639, 0.0
        %v4768 = vmax.f32 %v4640, 0.0
        %v4769 = vmax.f32 %v4641, 0.0
        %v4770 = vmax.f32 %v4642, 0.0
        %v4771 = vmax.f32 %v4643, 0.0
        %v4772 = vmax.f32 %v4644, 0.0
        %v4773 = vmax.f32 %v4645, 0.0
        %v4774 = vmax.f32 %v4646, 0.0
        %v4775 = vmax.f32 %v4647, 0.0
        %v4776 = vmax.f32 %v4648, 0.0
        %v4777 = vmax.f32 %v4649, 0.0
        %v4778 = vmax.f32 %v4650, 0.0
        %v4779 = vmax.f32 %v4651, 0.0
        %v4780 = vmax.f32 %v4652, 0.0
        %v4781 = vmax.f32 %v4653, 0.0
        %v4782 = vmax.f32 %v4654, 0.0
        %v4783 = vmax.f32 %v4655, 0.0
        %v4784 = vmax.f32 %v4656, 0.0
        %v4785 = vmax.f32 %v4657, 0.0
        %v4786 = vmax.f32 %v4658, 0.0
        %v4787 = vmax.f32 %v4659, 0.0
        %v4788 = vmax.f32 %v4660, 0.0
        %v4789 = vmax.f32 %v4661, 0.0
        %v4790 = vmax.f32 %v4662, 0.0
        %v4791 = vmax.f32 %v4663, 0.0
        %v4792 = vmax.f32 %v4664, 0.0
        %v4793 = vmax.f32 %v4665, 0.0
        %v4794 = vmax.f32 %v4666, 0.0
        %v4795 = vmax.f32 %v4667, 0.0
        %v4796 = vmax.f32 %v4668, 0.0
        %v4797 = vmax.f32 %v4669, 0.0
        %v4798 = vmax.f32 %v4670, 0.0
        %v4799 = vmax.f32 %v4671, 0.0
        %v4800 = vmax.f32 %v4672, 0.0
        %v4801 = vmax.f32 %v4673, 0.0
        %v4802 = vmax.f32 %v4674, 0.0
        %v4803 = vmax.f32 %v4675, 0.0
        %v4804 = vmax.f32 %v4676, 0.0
        %v4805 = vmax.f32 %v4677, 0.0
        %v4806 = vmax.f32 %v4678, 0.0
        %v4807 = vmax.f32 %v4679, 0.0
        %v4808 = vmax.f32 %v4680, 0.0
        %v4809 = vmax.f32 %v4681, 0.0
        %v4810 = vmax.f32 %v4682, 0.0
        %v4811 = vmax.f32 %v4683, 0.0
        %v4812 = vmax.f32 %v4684, 0.0
        %4813 = vst [vmem:[%s421] sm:$0xff] %v4685
        %4814 = vst [vmem:[%s421 + $0x8] sm:$0xff] %v4686
        %4815 = vst [vmem:[%s421 + $0x10] sm:$0xff] %v4687
        %4816 = vst [vmem:[%s421 + $0x18] sm:$0xff] %v4688
        %4817 = vst [vmem:[%s421 + $0x20] sm:$0xff] %v4689
        %4818 = vst [vmem:[%s421 + $0x28] sm:$0xff] %v4690
        %4819 = vst [vmem:[%s421 + $0x30] sm:$0xff] %v4691
        %4820 = vst [vmem:[%s421 + $0x38] sm:$0xff] %v4692
        %4821 = vst [vmem:[%s421 + $0x40] sm:$0xff] %v4693
        %4822 = vst [vmem:[%s421 + $0x48] sm:$0xff] %v4694
        %4823 = vst [vmem:[%s421 + $0x50] sm:$0xff] %v4695
        %4824 = vst [vmem:[%s421 + $0x58] sm:$0xff] %v4696
        %4825 = vst [vmem:[%s421 + $0x60] sm:$0xff] %v4697
        %4826 = vst [vmem:[%s421 + $0x68] sm:$0xff] %v4698
        %4827 = vst [vmem:[%s421 + $0x70] sm:$0xff] %v4699
        %4828 = vst [vmem:[%s421 + $0x78] sm:$0xff] %v4700
        %4829 = vst [vmem:[%s421 + $0x80] sm:$0xff] %v4701
        %4830 = vst [vmem:[%s421 + $0x88] sm:$0xff] %v4702
        %4831 = vst [vmem:[%s421 + $0x90] sm:$0xff] %v4703
        %4832 = vst [vmem:[%s421 + $0x98] sm:$0xff] %v4704
        %4833 = vst [vmem:[%s421 + $0xa0] sm:$0xff] %v4705
        %4834 = vst [vmem:[%s421 + $0xa8] sm:$0xff] %v4706
        %4835 = vst [vmem:[%s421 + $0xb0] sm:$0xff] %v4707
        %4836 = vst [vmem:[%s421 + $0xb8] sm:$0xff] %v4708
        %4837 = vst [vmem:[%s421 + $0xc0] sm:$0xff] %v4709
        %4838 = vst [vmem:[%s421 + $0xc8] sm:$0xff] %v4710
        %4839 = vst [vmem:[%s421 + $0xd0] sm:$0xff] %v4711
        %4840 = vst [vmem:[%s421 + $0xd8] sm:$0xff] %v4712
        %4841 = vst [vmem:[%s421 + $0xe0] sm:$0xff] %v4713
        %4842 = vst [vmem:[%s421 + $0xe8] sm:$0xff] %v4714
        %4843 = vst [vmem:[%s421 + $0xf0] sm:$0xff] %v4715
        %4844 = vst [vmem:[%s421 + $0xf8] sm:$0xff] %v4716
        %4845 = vst [vmem:[%s421 + $0x100] sm:$0xff] %v4717
        %4846 = vst [vmem:[%s421 + $0x108] sm:$0xff] %v4718
        %4847 = vst [vmem:[%s421 + $0x110] sm:$0xff] %v4719
        %4848 = vst [vmem:[%s421 + $0x118] sm:$0xff] %v4720
        %4849 = vst [vmem:[%s421 + $0x120] sm:$0xff] %v4721
        %4850 = vst [vmem:[%s421 + $0x128] sm:$0xff] %v4722
        %4851 = vst [vmem:[%s421 + $0x130] sm:$0xff] %v4723
        %4852 = vst [vmem:[%s421 + $0x138] sm:$0xff] %v4724
        %4853 = vst [vmem:[%s421 + $0x140] sm:$0xff] %v4725
        %4854 = vst [vmem:[%s421 + $0x148] sm:$0xff] %v4726
        %4855 = vst [vmem:[%s421 + $0x150] sm:$0xff] %v4727
        %4856 = vst [vmem:[%s421 + $0x158] sm:$0xff] %v4728
        %4857 = vst [vmem:[%s421 + $0x160] sm:$0xff] %v4729
        %4858 = vst [vmem:[%s421 + $0x168] sm:$0xff] %v4730
        %4859 = vst [vmem:[%s421 + $0x170] sm:$0xff] %v4731
        %4860 = vst [vmem:[%s421 + $0x178] sm:$0xff] %v4732
        %4861 = vst [vmem:[%s421 + $0x180] sm:$0xff] %v4733
        %4862 = vst [vmem:[%s421 + $0x188] sm:$0xff] %v4734
        %4863 = vst [vmem:[%s421 + $0x190] sm:$0xff] %v4735
        %4864 = vst [vmem:[%s421 + $0x198] sm:$0xff] %v4736
        %4865 = vst [vmem:[%s421 + $0x1a0] sm:$0xff] %v4737
        %4866 = vst [vmem:[%s421 + $0x1a8] sm:$0xff] %v4738
        %4867 = vst [vmem:[%s421 + $0x1b0] sm:$0xff] %v4739
        %4868 = vst [vmem:[%s421 + $0x1b8] sm:$0xff] %v4740
        %4869 = vst [vmem:[%s421 + $0x1c0] sm:$0xff] %v4741
        %4870 = vst [vmem:[%s421 + $0x1c8] sm:$0xff] %v4742
        %4871 = vst [vmem:[%s421 + $0x1d0] sm:$0xff] %v4743
        %4872 = vst [vmem:[%s421 + $0x1d8] sm:$0xff] %v4744
        %4873 = vst [vmem:[%s421 + $0x1e0] sm:$0xff] %v4745
        %4874 = vst [vmem:[%s421 + $0x1e8] sm:$0xff] %v4746
        %4875 = vst [vmem:[%s421 + $0x1f0] sm:$0xff] %v4747
        %4876 = vst [vmem:[%s421 + $0x1f8] sm:$0xff] %v4748
        %4877 = vst [vmem:[%s421 + $0x200] sm:$0xff] %v4749
        %4878 = vst [vmem:[%s421 + $0x208] sm:$0xff] %v4750
        %4879 = vst [vmem:[%s421 + $0x210] sm:$0xff] %v4751
        %4880 = vst [vmem:[%s421 + $0x218] sm:$0xff] %v4752
        %4881 = vst [vmem:[%s421 + $0x220] sm:$0xff] %v4753
        %4882 = vst [vmem:[%s421 + $0x228] sm:$0xff] %v4754
        %4883 = vst [vmem:[%s421 + $0x230] sm:$0xff] %v4755
        %4884 = vst [vmem:[%s421 + $0x238] sm:$0xff] %v4756
        %4885 = vst [vmem:[%s421 + $0x240] sm:$0xff] %v4757
        %4886 = vst [vmem:[%s421 + $0x248] sm:$0xff] %v4758
        %4887 = vst [vmem:[%s421 + $0x250] sm:$0xff] %v4759
        %4888 = vst [vmem:[%s421 + $0x258] sm:$0xff] %v4760
        %4889 = vst [vmem:[%s421 + $0x260] sm:$0xff] %v4761
        %4890 = vst [vmem:[%s421 + $0x268] sm:$0xff] %v4762
        %4891 = vst [vmem:[%s421 + $0x270] sm:$0xff] %v4763
        %4892 = vst [vmem:[%s421 + $0x278] sm:$0xff] %v4764
        %4893 = vst [vmem:[%s421 + $0x280] sm:$0xff] %v4765
        %4894 = vst [vmem:[%s421 + $0x288] sm:$0xff] %v4766
        %4895 = vst [vmem:[%s421 + $0x290] sm:$0xff] %v4767
        %4896 = vst [vmem:[%s421 + $0x298] sm:$0xff] %v4768
        %4897 = vst [vmem:[%s421 + $0x2a0] sm:$0xff] %v4769
        %4898 = vst [vmem:[%s421 + $0x2a8] sm:$0xff] %v4770
        %4899 = vst [vmem:[%s421 + $0x2b0] sm:$0xff] %v4771
        %4900 = vst [vmem:[%s421 + $0x2b8] sm:$0xff] %v4772
        %4901 = vst [vmem:[%s421 + $0x2c0] sm:$0xff] %v4773
        %4902 = vst [vmem:[%s421 + $0x2c8] sm:$0xff] %v4774
        %4903 = vst [vmem:[%s421 + $0x2d0] sm:$0xff] %v4775
        %4904 = vst [vmem:[%s421 + $0x2d8] sm:$0xff] %v4776
        %4905 = vst [vmem:[%s421 + $0x2e0] sm:$0xff] %v4777
        %4906 = vst [vmem:[%s421 + $0x2e8] sm:$0xff] %v4778
        %4907 = vst [vmem:[%s421 + $0x2f0] sm:$0xff] %v4779
        %4908 = vst [vmem:[%s421 + $0x2f8] sm:$0xff] %v4780
        %4909 = vst [vmem:[%s421 + $0x300] sm:$0xff] %v4781
        %4910 = vst [vmem:[%s421 + $0x308] sm:$0xff] %v4782
        %4911 = vst [vmem:[%s421 + $0x310] sm:$0xff] %v4783
        %4912 = vst [vmem:[%s421 + $0x318] sm:$0xff] %v4784
        %4913 = vst [vmem:[%s421 + $0x320] sm:$0xff] %v4785
        %4914 = vst [vmem:[%s421 + $0x328] sm:$0xff] %v4786
        %4915 = vst [vmem:[%s421 + $0x330] sm:$0xff] %v4787
        %4916 = vst [vmem:[%s421 + $0x338] sm:$0xff] %v4788
        %4917 = vst [vmem:[%s421 + $0x340] sm:$0xff] %v4789
        %4918 = vst [vmem:[%s421 + $0x348] sm:$0xff] %v4790
        %4919 = vst [vmem:[%s421 + $0x350] sm:$0xff] %v4791
        %4920 = vst [vmem:[%s421 + $0x358] sm:$0xff] %v4792
        %4921 = vst [vmem:[%s421 + $0x360] sm:$0xff] %v4793
        %4922 = vst [vmem:[%s421 + $0x368] sm:$0xff] %v4794
        %4923 = vst [vmem:[%s421 + $0x370] sm:$0xff] %v4795
        %4924 = vst [vmem:[%s421 + $0x378] sm:$0xff] %v4796
        %4925 = vst [vmem:[%s421 + $0x380] sm:$0xff] %v4797
        %4926 = vst [vmem:[%s421 + $0x388] sm:$0xff] %v4798
        %4927 = vst [vmem:[%s421 + $0x390] sm:$0xff] %v4799
        %4928 = vst [vmem:[%s421 + $0x398] sm:$0xff] %v4800
        %4929 = vst [vmem:[%s421 + $0x3a0] sm:$0xff] %v4801
        %4930 = vst [vmem:[%s421 + $0x3a8] sm:$0xff] %v4802
        %4931 = vst [vmem:[%s421 + $0x3b0] sm:$0xff] %v4803
        %4932 = vst [vmem:[%s421 + $0x3b8] sm:$0xff] %v4804
        %4933 = vst [vmem:[%s421 + $0x3c0] sm:$0xff] %v4805
        %4934 = vst [vmem:[%s421 + $0x3c8] sm:$0xff] %v4806
        %4935 = vst [vmem:[%s421 + $0x3d0] sm:$0xff] %v4807
        %4936 = vst [vmem:[%s421 + $0x3d8] sm:$0xff] %v4808
        %4937 = vst [vmem:[%s421 + $0x3e0] sm:$0xff] %v4809
        %4938 = vst [vmem:[%s421 + $0x3e8] sm:$0xff] %v4810
        %4939 = vst [vmem:[%s421 + $0x3f0] sm:$0xff] %v4811
        %4940 = vst [vmem:[%s421 + $0x3f8] sm:$0xff] %v4812
        %s4941 = sand.u32 %s252, 1
        %s4942 = scalar_lea.sflag [#allocation5], %s4941
        %s4943 = sand.u32 %s252, 1
        %s4944 = smul.addr %s4943, 1024
        %s4945 = scalar_lea.vmem [#allocation11], %s4944
        // Predicated region
        $region77: #{tpu_custom_call.1} parent=59 // pred_check
          %p4946 = pneg %p262
        $region78: #{tpu_custom_call.1} parent=59 // pred_check_branch
          %4948 = sbr.rel (%p4946) target = $region80
        $region79: #{tpu_custom_call.1} parent=59 // pred_region
          %s4950 = ssub.s32 16384, 16384
          %4951 = vsyncadd %s4942, %s4950
          %s4952 = smul.addr %s29, 128
          %s4953 = smul.addr %s4952, 128
          %s4954 = scalar_lea.hbm %s10, %s4953
          %s4955 = sshll.u32 %s4945, 4
          %s4956 = int_to_ptr.vmem [resolvable:$true] %s4955
          %4961 = dma.vmem_to_hbm [thread:$0]  %s4956, 16384, %s4954, %s4942, 512, 512, 32
        $region80: #{tpu_custom_call.1} parent=59 // pred_fallthru
          _
      $region60: #{tpu_custom_call.1} parent=5 // pred_fallthru
        _
      %p4962 = scmp.le.s32.totalorder 2, %s24
      // Predicated region
      $region81: #{tpu_custom_call.1} parent=5 // pred_check
        %p4963 = pneg %p4962
      $region82: #{tpu_custom_call.1} parent=5 // pred_check_branch
        %4965 = sbr.rel (%p4963) target = $region84
      $region83: #{tpu_custom_call.1} parent=5 // pred_region
        %s4966 = ssub.s32 %s24, 2
        // Predicated region
        $region85: #{tpu_custom_call.1} parent=83 // pred_check
          %p4967 = pneg %p268
        $region86: #{tpu_custom_call.1} parent=83 // pred_check_branch
          %4969 = sbr.rel (%p4967) target = $region88
        $region87: #{tpu_custom_call.1} parent=83 // pred_region
          %s4970 = sand.u32 %s253, 1
          %s4971 = scalar_lea.sflag [#allocation5], %s4970
          %s4972 = sand.u32 %s253, 1
          %s4973 = smul.addr %s4972, 1024
          %s4974 = scalar_lea.vmem [#allocation11], %s4973
          %4975 = dma.done %s4971, 16384
        $region88: #{tpu_custom_call.1} parent=83 // pred_fallthru
          _
      $region84: #{tpu_custom_call.1} parent=5 // pred_fallthru
        _
    $region6: #{tpu_custom_call.1} parent=1 // loop_footer
      %s28 = sadd.s32 1, %s24
    $region7: #{tpu_custom_call.1} parent=1 // loop_footer_branch
      %23 = sbr.rel target = $region3
    $region8: #{tpu_custom_call.1} parent=1 // loop_exit
      _
    %4976 = vsyncpa [#allocation4], 1
    %s4977 = scalar_lea.sflag [#allocation4], 1
    %4978 = vsyncpa %s4977, 1
    %4979 = vsyncpa [#allocation7], 1
    %4980 = vsyncpa [#allocation10], 1
    %4981 = vsyncpa [#allocation5], 1
    %s4982 = scalar_lea.sflag [#allocation5], 1
    %4983 = vsyncpa %s4982, 1

</llo_original>
